<compile_context>
chip_gen: v7x
topology: tpu7x:2x2x1
jax: 0.10.0
libtpu: 0.0.40
codegen_flags: <defaults>
</compile_context>

<pallas_src>
import numpy as np
import jax
import jax.numpy as jnp
from jax import lax
from jax.experimental import pallas as pl
from jax.experimental.pallas import tpu as pltpu

# ------------------------- small, consistent config -------------------------
B = 2              # batch
S_SRC = 8          # source sequence length
S_TRG = 8          # target sequence length
D_MODEL = 32       # d_word_vec == d_model
N_HEAD = 2
D_K = 16
D_V = 16
D_INNER = 64
N_LAYERS = 2
N_POSITION = 200
VOCAB_TRG = 128    # n_trg_vocab (chosen lane-dense: logits last dim = 128)

HK = N_HEAD * D_K            # 32
NEG = -1e9

# ---- "from-D" weight slab segments: [N_WFD, D_MODEL, 128] bf16 --------------
WFD_E_WQKV = 0               # + layer   (width 3*HK = 96)
WFD_E_W1 = 2                 # + layer   (width D_INNER = 64)
WFD_DS_WQKV = 4              # + layer   (width 96)
WFD_DC_WQ = 6                # + layer   (width HK = 32)
WFD_DC_WKV = 8               # both layers packed, width 128 (layer l at cols 64*l)
WFD_D_W1 = 9                 # + layer   (width 64)
WFD_WPRJ = 11                # width 128
N_WFD = 12

# ---- "to-D" weight slab segments: [N_WTD, 128, D_MODEL] bf16 ----------------
WTD_E_WO = 0                 # + layer   (rows H*D_V = 32)
WTD_E_W2 = 2                 # + layer   (rows D_INNER = 64)
WTD_DS_WO = 4                # + layer   (rows 32)
WTD_DC_WO = 6                # + layer   (rows 32)
WTD_D_W2 = 8                 # + layer   (rows 64)
WTD_EMB = 10                 # rows VOCAB_TRG = 128
N_WTD = 11

# ---- bias / LN slab rows: [NB_ROWS, 128] f32 (zero padded per row) ----------
R_ENC_LN0G, R_ENC_LN0B = 0, 1
R_DEC_LN0G, R_DEC_LN0B = 2, 3
R_ENC_BASE = 4               # + 8*l: bqkv, bo, ln1g, ln1b, b1, b2, ln2g, ln2b
R_DC_BKV = R_ENC_BASE + 8 * N_LAYERS          # 20 (both layers packed, width 128)
R_BPRJ = R_DC_BKV + 1                         # 21
R_DEC_BASE = R_BPRJ + 1                       # 22  + 12*l:
#   ds_bqkv, ds_bo, d_ln1g, d_ln1b, dc_bq, dc_bo, d_ln2g, d_ln2b, d_b1, d_b2, d_ln3g, d_ln3b
NB_ROWS = 48                                  # 46 used, padded to a sublane multiple

# ---- activation / mask slab segments: [6, 16, 32] f32 -----------------------
DATA_SRC = 0
DATA_POS_SRC = 1
DATA_POS_TRG = 2
DATA_MASK_ENC = 3            # cols :16 used  (additive, block-diagonal over batch)
DATA_MASK_DEC = 4            # cols :16 used
DATA_MASK_X = 5              # cols :16 used


# ------------------------- host-side helpers --------------------------------
def sinusoid_table(n_position, d_hid):
    """Matches PositionalEncoding._get_sinusoid_encoding_table (numpy, fp32)."""
    pos = np.arange(n_position)[:, None].astype(np.float64)
    hid = np.arange(d_hid)[None, :]
    table = pos / np.power(10000.0, 2.0 * (hid // 2) / d_hid)
    table[:, 0::2] = np.sin(table[:, 0::2])
    table[:, 1::2] = np.cos(table[:, 1::2])
    return table.astype(np.float32)                     # [n_position, d_hid]


# ------------------------- traced-inside-kernel helpers ----------------------
def _ln(x, g, b, eps):
    mu = jnp.mean(x, axis=-1, keepdims=True)
    var = jnp.mean((x - mu) ** 2, axis=-1, keepdims=True)
    return (x - mu) * lax.rsqrt(var + eps) * g + b


def _softmax_rows(s):
    m = jnp.max(s, axis=-1, keepdims=True)
    p = jnp.exp(s - m)
    return p * pl.reciprocal(jnp.sum(p, axis=-1, keepdims=True), approx=True)


def _brow(bln_ref, r, w):
    """Load one bias/LN row as a (1, w) f32 value."""
    return bln_ref[r][None, :w]


def _attend(q, k, v, wo, bo, amask):
    """Multi-head attention, batched over the batch dimension.

    q: [B*sq, H*D_K] f32, k/v: [B*skv, H*D_K|H*D_V] f32.
    wo: [128, D_MODEL] bf16 (rows :H*D_V used), bo: [1, D_MODEL] f32.
    amask: [B*sq, B*skv] additive f32; off-diagonal (cross-batch) blocks hold -1e9,
    so one softmax over all B*skv keys equals the per-batch softmax.
    """
    scale = jnp.float32(1.0 / np.sqrt(D_K))
    sq = q.shape[0]
    acc = jnp.zeros((sq, D_MODEL), jnp.float32)
    for h in range(N_HEAD):                              # static, H = 2
        qh = q[:, h * D_K:(h + 1) * D_K].astype(jnp.bfloat16)
        kh = k[:, h * D_K:(h + 1) * D_K].astype(jnp.bfloat16)
        vh = v[:, h * D_V:(h + 1) * D_V].astype(jnp.bfloat16)
        s = lax.dot_general(qh, kh, (((1,), (1,)), ((), ())),
                            preferred_element_type=jnp.float32) * scale + amask
        p = _softmax_rows(s).astype(jnp.bfloat16)
        ctx = jnp.dot(p, vh, preferred_element_type=jnp.float32)        # [B*sq, D_V]
        acc = acc + jnp.dot(ctx.astype(jnp.bfloat16),
                            wo[h * D_V:(h + 1) * D_V, :],
                            preferred_element_type=jnp.float32)          # [B*sq, D]
    return acc + bo


# ------------------------- the single fused kernel ---------------------------
def transformer_kernel(data_ref, ids_ref, wfd_ref, wtd_ref, bln_ref, out_ref):
    f32 = jnp.float32
    bf16 = jnp.bfloat16

    m_enc = data_ref[DATA_MASK_ENC][:, :B * S_SRC]       # [16, 16] additive
    m_dec = data_ref[DATA_MASK_DEC][:, :B * S_TRG]
    m_x = data_ref[DATA_MASK_X][:, :B * S_SRC]

    # ---------------- Encoder ----------------
    x = data_ref[DATA_SRC]                               # [B*S_SRC, D]
    # Encoder.forward: enc = src + position_enc(src) = 2*src + pos_table (reference quirk)
    x = x + x + data_ref[DATA_POS_SRC]
    x = _ln(x, _brow(bln_ref, R_ENC_LN0G, D_MODEL),
            _brow(bln_ref, R_ENC_LN0B, D_MODEL), 1e-12)

    for l in range(N_LAYERS):                            # static loop, weights resident
        base = R_ENC_BASE + 8 * l
        wqkv = wfd_ref[WFD_E_WQKV + l][:, :3 * HK]
        qkv = jnp.dot(x.astype(bf16), wqkv,
                      preferred_element_type=f32) + _brow(bln_ref, base + 0, 3 * HK)
        q, k, v = qkv[:, :HK], qkv[:, HK:2 * HK], qkv[:, 2 * HK:]
        a = _attend(q, k, v, wtd_ref[WTD_E_WO + l],
                    _brow(bln_ref, base + 1, D_MODEL), m_enc)
        x = _ln(a + x, _brow(bln_ref, base + 2, D_MODEL),
                _brow(bln_ref, base + 3, D_MODEL), 1e-6)
        w1 = wfd_ref[WFD_E_W1 + l][:, :D_INNER]
        h = jnp.maximum(jnp.dot(x.astype(bf16), w1, preferred_element_type=f32)
                        + _brow(bln_ref, base + 4, D_INNER), 0.0)
        w2 = wtd_ref[WTD_E_W2 + l][:D_INNER, :]
        h = jnp.dot(h.astype(bf16), w2,
                    preferred_element_type=f32) + _brow(bln_ref, base + 5, D_MODEL)
        x = _ln(h + x, _brow(bln_ref, base + 6, D_MODEL),
                _brow(bln_ref, base + 7, D_MODEL), 1e-6)
    enc_out = x                                          # [B*S_SRC, D]

    # ---------------- Decoder ----------------
    ids = ids_ref[...]                                   # [B*S_TRG, 1] int32
    iota = lax.broadcasted_iota(jnp.int32, (B * S_TRG, VOCAB_TRG), 1)
    onehot = (iota == ids).astype(bf16)                  # embedding lookup as matmul
    y = jnp.dot(onehot, wtd_ref[WTD_EMB], preferred_element_type=f32)
    # scale_emb=False in Transformer_translate; Decoder: dec = pos_enc(dec) = dec + pos
    y = y + data_ref[DATA_POS_TRG]
    y = _ln(y, _brow(bln_ref, R_DEC_LN0G, D_MODEL),
            _brow(bln_ref, R_DEC_LN0B, D_MODEL), 1e-6)

    # Cross-attention K/V of enc_out is layer-invariant: project once for all layers,
    # lane-dense [16,32] @ [32,128]; slice 64-wide per layer inside the loop.
    kv_all = jnp.dot(enc_out.astype(bf16), wfd_ref[WFD_DC_WKV],
                     preferred_element_type=f32) + bln_ref[R_DC_BKV][None, :]

    for l in range(N_LAYERS):
        base = R_DEC_BASE + 12 * l
        # masked self-attention
        wqkv = wfd_ref[WFD_DS_WQKV + l][:, :3 * HK]
        qkv = jnp.dot(y.astype(bf16), wqkv,
                      preferred_element_type=f32) + _brow(bln_ref, base + 0, 3 * HK)
        q, k, v = qkv[:, :HK], qkv[:, HK:2 * HK], qkv[:, 2 * HK:]
        a = _attend(q, k, v, wtd_ref[WTD_DS_WO + l],
                    _brow(bln_ref, base + 1, D_MODEL), m_dec)
        y = _ln(a + y, _brow(bln_ref, base + 2, D_MODEL),
                _brow(bln_ref, base + 3, D_MODEL), 1e-6)

        # encoder-decoder cross-attention (K/V already projected above)
        wq = wfd_ref[WFD_DC_WQ + l][:, :HK]
        q = jnp.dot(y.astype(bf16), wq,
                    preferred_element_type=f32) + _brow(bln_ref, base + 4, HK)
        kv = kv_all[:, l * 2 * HK:(l + 1) * 2 * HK]
        k, v = kv[:, :HK], kv[:, HK:]
        a = _attend(q, k, v, wtd_ref[WTD_DC_WO + l],
                    _brow(bln_ref, base + 5, D_MODEL), m_x)
        y = _ln(a + y, _brow(bln_ref, base + 6, D_MODEL),
                _brow(bln_ref, base + 7, D_MODEL), 1e-6)

        # position-wise FFN
        w1 = wfd_ref[WFD_D_W1 + l][:, :D_INNER]
        h = jnp.maximum(jnp.dot(y.astype(bf16), w1, preferred_element_type=f32)
                        + _brow(bln_ref, base + 8, D_INNER), 0.0)
        w2 = wtd_ref[WTD_D_W2 + l][:D_INNER, :]
        h = jnp.dot(h.astype(bf16), w2,
                    preferred_element_type=f32) + _brow(bln_ref, base + 9, D_MODEL)
        y = _ln(h + y, _brow(bln_ref, base + 10, D_MODEL),
                _brow(bln_ref, base + 11, D_MODEL), 1e-6)

    # ---------------- target word projection (lane-dense [B*T, 128]) ---------
    out_ref[...] = jnp.dot(y.astype(bf16), wfd_ref[WFD_WPRJ],
                           preferred_element_type=f32) + bln_ref[R_BPRJ][None, :]


# ------------------------- host-side packing ---------------------------------
def _pad_to(w, rows, cols):
    return jnp.pad(w, ((0, rows - w.shape[0]), (0, cols - w.shape[1])))


def pack_params(p):
    """Pack all weights/biases into 3 slabs (2 bf16 weight slabs + 1 f32 bias/LN slab)."""
    # "from-D" slab: [N_WFD, D_MODEL, 128]
    wfd = []
    for l in range(N_LAYERS):
        wfd.append(_pad_to(p["e_wqkv"][l], D_MODEL, 128))
    for l in range(N_LAYERS):
        wfd.append(_pad_to(p["e_w1"][l], D_MODEL, 128))
    for l in range(N_LAYERS):
        wfd.append(_pad_to(p["ds_wqkv"][l], D_MODEL, 128))
    for l in range(N_LAYERS):
        wfd.append(_pad_to(p["dc_wq"][l], D_MODEL, 128))
    wfd.append(jnp.concatenate([p["dc_wkv"][l] for l in range(N_LAYERS)], axis=1))  # [32,128]
    for l in range(N_LAYERS):
        wfd.append(_pad_to(p["d_w1"][l], D_MODEL, 128))
    wfd.append(p["wprj"])                                                            # [32,128]
    wfd = jnp.stack(wfd).astype(jnp.bfloat16)            # [12, 32, 128]

    # "to-D" slab: [N_WTD, 128, D_MODEL]
    wtd = []
    for name in ("e_wo", "e_w2", "ds_wo", "dc_wo", "d_w2"):
        for l in range(N_LAYERS):
            wtd.append(_pad_to(p[name][l], 128, D_MODEL))
    wtd.append(p["emb"])                                  # [128, 32]
    wtd = jnp.stack(wtd).astype(jnp.bfloat16)            # [11, 128, 32]

    # bias / LN slab: [NB_ROWS, 128] f32, one vector per row (zero padded)
    def brow(v):
        v = v.reshape(-1)
        return jnp.zeros((128,), jnp.float32).at[:v.shape[0]].set(v)

    rows = [brow(p["enc_ln0_g"]), brow(p["enc_ln0_b"]),
            brow(p["dec_ln0_g"]), brow(p["dec_ln0_b"])]
    for l in range(N_LAYERS):
        rows += [brow(p["e_bqkv"][l]), brow(p["e_bo"][l]),
                 brow(p["e_ln1g"][l]), brow(p["e_ln1b"][l]),
                 brow(p["e_b1"][l]), brow(p["e_b2"][l]),
                 brow(p["e_ln2g"][l]), brow(p["e_ln2b"][l])]
    rows += [brow(jnp.concatenate([p["dc_bkv"][l] for l in range(N_LAYERS)])),
             brow(p["bprj"])]
    for l in range(N_LAYERS):
        rows += [brow(p["ds_bqkv"][l]), brow(p["ds_bo"][l]),
                 brow(p["d_ln1g"][l]), brow(p["d_ln1b"][l]),
                 brow(p["dc_bq"][l]), brow(p["dc_bo"][l]),
                 brow(p["d_ln2g"][l]), brow(p["d_ln2b"][l]),
                 brow(p["d_b1"][l]), brow(p["d_b2"][l]),
                 brow(p["d_ln3g"][l]), brow(p["d_ln3b"][l])]
    bln = jnp.stack(rows)
    bln = jnp.pad(bln, ((0, NB_ROWS - bln.shape[0]), (0, 0)))
    return wfd, wtd, bln


def _block_diag_mask(mask_bqk, sq, skv):
    """Additive mask [B*sq, B*skv]: 0 where attend, -1e9 where masked or cross-batch."""
    full = jnp.full((B * sq, B * skv), NEG, jnp.float32)
    for b in range(B):
        mb = jnp.broadcast_to(mask_bqk[b].astype(jnp.float32), (sq, skv))
        full = full.at[b * sq:(b + 1) * sq, b * skv:(b + 1) * skv].set((1.0 - mb) * NEG)
    return full


# ------------------------- wrapper -------------------------------------------
def transformer_translate_forward(src_seq, trg_seq, src_mask, trg_mask,
                                  params, pos_src, pos_trg):
    """src_seq: [B, S_SRC, D] already-embedded (Encoder.embedded == True path).
    trg_seq: [B, S_TRG] int32 token ids. Masks are 1 = attend, 0 = masked."""
    src_flat = src_seq.reshape(B * S_SRC, D_MODEL)
    trg_ids = trg_seq.reshape(B * S_TRG, 1).astype(jnp.int32)

    m_enc = _block_diag_mask(src_mask, S_SRC, S_SRC)     # enc self-attn (key pad)
    m_dec = _block_diag_mask(trg_mask, S_TRG, S_TRG)     # dec self-attn (pad & causal)
    m_x = _block_diag_mask(src_mask, S_TRG, S_SRC)       # dec-enc cross-attn (src pad)

    data = jnp.stack([src_flat, pos_src, pos_trg,
                      _pad_to(m_enc, B * S_SRC, D_MODEL),
                      _pad_to(m_dec, B * S_TRG, D_MODEL),
                      _pad_to(m_x, B * S_TRG, D_MODEL)])         # [6, 16, 32] f32

    wfd, wtd, bln = pack_params(params)

    logits_flat = pl.pallas_call(
        transformer_kernel,
        out_shape=jax.ShapeDtypeStruct((B * S_TRG, VOCAB_TRG), jnp.float32),
        compiler_params=pltpu.CompilerParams(vmem_limit_bytes=32 * 1024 * 1024),
    )(data, trg_ids, wfd, wtd, bln)
    return logits_flat.reshape(B, S_TRG, VOCAB_TRG)


# ------------------------- parameter construction ----------------------------
def init_params(key):
    keys = jax.random.split(key, 24)

    def W(k, shape, scale=0.05):
        return jax.random.normal(k, shape, jnp.float32) * scale

    H = N_HEAD
    p = {}
    p["enc_ln0_g"] = jnp.ones((D_MODEL,), jnp.float32)
    p["enc_ln0_b"] = jnp.zeros((D_MODEL,), jnp.float32)
    p["dec_ln0_g"] = jnp.ones((D_MODEL,), jnp.float32)
    p["dec_ln0_b"] = jnp.zeros((D_MODEL,), jnp.float32)

    # encoder layer stacks (Wq|Wk|Wv merged)
    p["e_wqkv"] = W(keys[0], (N_LAYERS, D_MODEL, 3 * H * D_K))
    p["e_bqkv"] = W(keys[1], (N_LAYERS, 3 * H * D_K), 0.01)
    p["e_wo"] = W(keys[2], (N_LAYERS, H * D_V, D_MODEL))
    p["e_bo"] = W(keys[3], (N_LAYERS, D_MODEL), 0.01)
    p["e_w1"] = W(keys[4], (N_LAYERS, D_MODEL, D_INNER))
    p["e_b1"] = W(keys[5], (N_LAYERS, D_INNER), 0.01)
    p["e_w2"] = W(keys[6], (N_LAYERS, D_INNER, D_MODEL))
    p["e_b2"] = W(keys[7], (N_LAYERS, D_MODEL), 0.01)

    for name in ("e_ln1", "e_ln2", "d_ln1", "d_ln2", "d_ln3"):
        p[name + "g"] = jnp.ones((N_LAYERS, D_MODEL), jnp.float32)
        p[name + "b"] = jnp.zeros((N_LAYERS, D_MODEL), jnp.float32)

    # decoder (dense equivalents of TensorizedEmbedding / TensorizedLinear)
    p["emb"] = W(keys[8], (VOCAB_TRG, D_MODEL))
    p["ds_wqkv"] = W(keys[9], (N_LAYERS, D_MODEL, 3 * H * D_K))
    p["ds_bqkv"] = W(keys[10], (N_LAYERS, 3 * H * D_K), 0.01)
    p["ds_wo"] = W(keys[11], (N_LAYERS, H * D_V, D_MODEL))
    p["ds_bo"] = W(keys[12], (N_LAYERS, D_MODEL), 0.01)
    p["dc_wq"] = W(keys[13], (N_LAYERS, D_MODEL, H * D_K))
    p["dc_bq"] = W(keys[14], (N_LAYERS, H * D_K), 0.01)
    p["dc_wkv"] = W(keys[15], (N_LAYERS, D_MODEL, 2 * H * D_K))
    p["dc_bkv"] = W(keys[16], (N_LAYERS, 2 * H * D_K), 0.01)
    p["dc_wo"] = W(keys[17], (N_LAYERS, H * D_V, D_MODEL))
    p["dc_bo"] = W(keys[18], (N_LAYERS, D_MODEL), 0.01)
    p["d_w1"] = W(keys[19], (N_LAYERS, D_MODEL, D_INNER))
    p["d_b1"] = W(keys[20], (N_LAYERS, D_INNER), 0.01)
    p["d_w2"] = W(keys[21], (N_LAYERS, D_INNER, D_MODEL))
    p["d_b2"] = W(keys[22], (N_LAYERS, D_MODEL), 0.01)
    p["wprj"] = W(keys[23], (D_MODEL, VOCAB_TRG))
    p["bprj"] = jnp.zeros((VOCAB_TRG,), jnp.float32)
    return p


# ------------------------- main -----------------------------------------------
if __name__ == "__main__":
    key = jax.random.PRNGKey(0)
    k_src, k_trg, k_params = jax.random.split(key, 3)

    # already-embedded source tokens (Encoder.embedded == True path)
    src_seq = jax.random.normal(k_src, (B, S_SRC, D_MODEL), dtype=jnp.float32)
    # target token ids
    trg_seq = jax.random.randint(k_trg, (B, S_TRG), 0, VOCAB_TRG, dtype=jnp.int32)

    # source key-padding mask [B, 1, S_SRC]; 1 = attend. Mask last 2 tokens of item 1.
    src_mask = jnp.ones((B, 1, S_SRC), jnp.float32).at[1, 0, 6:].set(0.0)
    # target mask [B, S_TRG, S_TRG] = pad mask & causal (subsequent) mask.
    causal = np.tril(np.ones((S_TRG, S_TRG), np.float32))
    trg_pad = np.ones((B, 1, S_TRG), np.float32)
    trg_pad[1, 0, 7:] = 0.0
    trg_mask = jnp.asarray(trg_pad * causal[None])

    params = init_params(k_params)

    # positional encodings, pre-tiled to the batch-flattened layout (host-side, free)
    pos_np = sinusoid_table(N_POSITION, D_MODEL)
    pos_src = jnp.asarray(np.tile(pos_np[:S_SRC], (B, 1)))   # [B*S_SRC, D]
    pos_trg = jnp.asarray(np.tile(pos_np[:S_TRG], (B, 1)))   # [B*S_TRG, D]

    fwd = jax.jit(transformer_translate_forward)
    logits = fwd(src_seq, trg_seq, src_mask, trg_mask, params, pos_src, pos_trg)
    jax.block_until_ready(logits)

    assert logits.shape == (B, S_TRG, VOCAB_TRG)
    assert bool(jnp.all(jnp.isfinite(logits)))
    print("KERNEL_OK")
</pallas_src>

<mosaic_0001>
module attributes {stable_mosaic.version = 11 : i64} {
  func.func @transformer_kernel(%arg0: memref<6x16x32xf32, #tpu.memory_space<vmem>>, %arg1: memref<16x1xi32, #tpu.memory_space<vmem>>, %arg2: memref<12x32x128xbf16, #tpu.memory_space<vmem>>, %arg3: memref<11x128x32xbf16, #tpu.memory_space<vmem>>, %arg4: memref<48x128xf32, #tpu.memory_space<vmem>>, %arg5: memref<16x128xf32, #tpu.memory_space<vmem>>) attributes {dimension_semantics = [], scalar_prefetch = 0 : i64, scratch_operands = 0 : i64, tpu.core_type = #tpu.core_type<tc>} {
    %c3 = arith.constant 3 : index
    %c0 = arith.constant 0 : index
    %c0_0 = arith.constant 0 : index
    %0 = vector.load %arg0[%c3, %c0, %c0_0] : memref<6x16x32xf32, #tpu.memory_space<vmem>>, vector<1x16x32xf32>
    %1 = vector.shape_cast %0 : vector<1x16x32xf32> to vector<16x32xf32>
    %2 = vector.extract_strided_slice %1 {offsets = [0, 0], sizes = [16, 16], strides = [1, 1]} : vector<16x32xf32> to vector<16x16xf32>
    %c4 = arith.constant 4 : index
    %c0_1 = arith.constant 0 : index
    %c0_2 = arith.constant 0 : index
    %3 = vector.load %arg0[%c4, %c0_1, %c0_2] : memref<6x16x32xf32, #tpu.memory_space<vmem>>, vector<1x16x32xf32>
    %4 = vector.shape_cast %3 : vector<1x16x32xf32> to vector<16x32xf32>
    %5 = vector.extract_strided_slice %4 {offsets = [0, 0], sizes = [16, 16], strides = [1, 1]} : vector<16x32xf32> to vector<16x16xf32>
    %c5 = arith.constant 5 : index
    %c0_3 = arith.constant 0 : index
    %c0_4 = arith.constant 0 : index
    %6 = vector.load %arg0[%c5, %c0_3, %c0_4] : memref<6x16x32xf32, #tpu.memory_space<vmem>>, vector<1x16x32xf32>
    %7 = vector.shape_cast %6 : vector<1x16x32xf32> to vector<16x32xf32>
    %8 = vector.extract_strided_slice %7 {offsets = [0, 0], sizes = [16, 16], strides = [1, 1]} : vector<16x32xf32> to vector<16x16xf32>
    %c0_5 = arith.constant 0 : index
    %c0_6 = arith.constant 0 : index
    %c0_7 = arith.constant 0 : index
    %9 = vector.load %arg0[%c0_5, %c0_6, %c0_7] : memref<6x16x32xf32, #tpu.memory_space<vmem>>, vector<1x16x32xf32>
    %10 = vector.shape_cast %9 : vector<1x16x32xf32> to vector<16x32xf32>
    %11 = arith.addf %10, %10 : vector<16x32xf32>
    %c1 = arith.constant 1 : index
    %c0_8 = arith.constant 0 : index
    %c0_9 = arith.constant 0 : index
    %12 = vector.load %arg0[%c1, %c0_8, %c0_9] : memref<6x16x32xf32, #tpu.memory_space<vmem>>, vector<1x16x32xf32>
    %13 = vector.shape_cast %12 : vector<1x16x32xf32> to vector<16x32xf32>
    %14 = arith.addf %11, %13 : vector<16x32xf32>
    %c0_10 = arith.constant 0 : index
    %c0_11 = arith.constant 0 : index
    %15 = vector.load %arg4[%c0_10, %c0_11] : memref<48x128xf32, #tpu.memory_space<vmem>>, vector<1x128xf32>
    %16 = vector.shape_cast %15 : vector<1x128xf32> to vector<128xf32>
    %17 = vector.extract_strided_slice %16 {offsets = [0], sizes = [32], strides = [1]} : vector<128xf32> to vector<32xf32>
    %18 = vector.shape_cast %17 : vector<32xf32> to vector<1x32xf32>
    %c1_12 = arith.constant 1 : index
    %c0_13 = arith.constant 0 : index
    %19 = vector.load %arg4[%c1_12, %c0_13] : memref<48x128xf32, #tpu.memory_space<vmem>>, vector<1x128xf32>
    %20 = vector.shape_cast %19 : vector<1x128xf32> to vector<128xf32>
    %21 = vector.extract_strided_slice %20 {offsets = [0], sizes = [32], strides = [1]} : vector<128xf32> to vector<32xf32>
    %22 = vector.shape_cast %21 : vector<32xf32> to vector<1x32xf32>
    %cst = arith.constant dense<0.000000e+00> : vector<16xf32>
    %23 = vector.multi_reduction <add>, %14, %cst [1] : vector<16x32xf32> to vector<16xf32>
    %24 = vector.shape_cast %23 : vector<16xf32> to vector<16x1xf32>
    %cst_14 = arith.constant 3.200000e+01 : f32
    %25 = vector.broadcast %cst_14 : f32 to vector<16x1xf32>
    %26 = arith.divf %24, %25 : vector<16x1xf32>
    %27 = vector.broadcast %26 : vector<16x1xf32> to vector<16x32xf32>
    %28 = arith.subf %14, %27 : vector<16x32xf32>
    %29 = arith.mulf %28, %28 : vector<16x32xf32>
    %cst_15 = arith.constant dense<0.000000e+00> : vector<16xf32>
    %30 = vector.multi_reduction <add>, %29, %cst_15 [1] : vector<16x32xf32> to vector<16xf32>
    %31 = vector.shape_cast %30 : vector<16xf32> to vector<16x1xf32>
    %cst_16 = arith.constant 3.200000e+01 : f32
    %32 = vector.broadcast %cst_16 : f32 to vector<16x1xf32>
    %33 = arith.divf %31, %32 : vector<16x1xf32>
    %34 = vector.broadcast %26 : vector<16x1xf32> to vector<16x32xf32>
    %35 = arith.subf %14, %34 : vector<16x32xf32>
    %cst_17 = arith.constant 9.99999996E-13 : f32
    %36 = vector.broadcast %cst_17 : f32 to vector<16x1xf32>
    %37 = arith.addf %33, %36 : vector<16x1xf32>
    %38 = math.rsqrt %37 : vector<16x1xf32>
    %39 = vector.broadcast %38 : vector<16x1xf32> to vector<16x32xf32>
    %40 = arith.mulf %35, %39 : vector<16x32xf32>
    %41 = vector.broadcast %18 : vector<1x32xf32> to vector<16x32xf32>
    %42 = arith.mulf %40, %41 : vector<16x32xf32>
    %43 = vector.broadcast %22 : vector<1x32xf32> to vector<16x32xf32>
    %44 = arith.addf %42, %43 : vector<16x32xf32>
    %c0_18 = arith.constant 0 : index
    %c0_19 = arith.constant 0 : index
    %c0_20 = arith.constant 0 : index
    %45 = vector.load %arg2[%c0_18, %c0_19, %c0_20] : memref<12x32x128xbf16, #tpu.memory_space<vmem>>, vector<1x32x128xbf16>
    %46 = vector.shape_cast %45 : vector<1x32x128xbf16> to vector<32x128xbf16>
    %47 = vector.extract_strided_slice %46 {offsets = [0, 0], sizes = [32, 96], strides = [1, 1]} : vector<32x128xbf16> to vector<32x96xbf16>
    %48 = arith.truncf %44 : vector<16x32xf32> to vector<16x32xbf16>
    %cst_21 = arith.constant dense<0.000000e+00> : vector<16x96xf32>
    %49 = tpu.matmul %48, %47, %cst_21 {dimension_numbers = #tpu.dot_dimension_numbers<[1], [0], [0], [1], [0, 0, 1, 1], [], []>} : vector<16x32xbf16>, vector<32x96xbf16>, vector<16x96xf32> -> vector<16x96xf32>
    %c4_22 = arith.constant 4 : index
    %c0_23 = arith.constant 0 : index
    %50 = vector.load %arg4[%c4_22, %c0_23] : memref<48x128xf32, #tpu.memory_space<vmem>>, vector<1x128xf32>
    %51 = vector.shape_cast %50 : vector<1x128xf32> to vector<128xf32>
    %52 = vector.extract_strided_slice %51 {offsets = [0], sizes = [96], strides = [1]} : vector<128xf32> to vector<96xf32>
    %53 = vector.shape_cast %52 : vector<96xf32> to vector<1x96xf32>
    %54 = vector.broadcast %53 : vector<1x96xf32> to vector<16x96xf32>
    %55 = arith.addf %49, %54 : vector<16x96xf32>
    %56 = vector.extract_strided_slice %55 {offsets = [0, 0], sizes = [16, 32], strides = [1, 1]} : vector<16x96xf32> to vector<16x32xf32>
    %57 = vector.extract_strided_slice %55 {offsets = [0, 32], sizes = [16, 32], strides = [1, 1]} : vector<16x96xf32> to vector<16x32xf32>
    %58 = vector.extract_strided_slice %55 {offsets = [0, 64], sizes = [16, 32], strides = [1, 1]} : vector<16x96xf32> to vector<16x32xf32>
    %c0_24 = arith.constant 0 : index
    %c0_25 = arith.constant 0 : index
    %c0_26 = arith.constant 0 : index
    %59 = vector.load %arg3[%c0_24, %c0_25, %c0_26] : memref<11x128x32xbf16, #tpu.memory_space<vmem>>, vector<1x128x32xbf16>
    %60 = vector.shape_cast %59 : vector<1x128x32xbf16> to vector<128x32xbf16>
    %c5_27 = arith.constant 5 : index
    %c0_28 = arith.constant 0 : index
    %61 = vector.load %arg4[%c5_27, %c0_28] : memref<48x128xf32, #tpu.memory_space<vmem>>, vector<1x128xf32>
    %62 = vector.shape_cast %61 : vector<1x128xf32> to vector<128xf32>
    %63 = vector.extract_strided_slice %62 {offsets = [0], sizes = [32], strides = [1]} : vector<128xf32> to vector<32xf32>
    %64 = vector.shape_cast %63 : vector<32xf32> to vector<1x32xf32>
    %cst_29 = arith.constant 0.000000e+00 : f32
    %65 = vector.broadcast %cst_29 : f32 to vector<16x32xf32>
    %66 = vector.extract_strided_slice %56 {offsets = [0, 0], sizes = [16, 16], strides = [1, 1]} : vector<16x32xf32> to vector<16x16xf32>
    %67 = arith.truncf %66 : vector<16x16xf32> to vector<16x16xbf16>
    %68 = vector.extract_strided_slice %57 {offsets = [0, 0], sizes = [16, 16], strides = [1, 1]} : vector<16x32xf32> to vector<16x16xf32>
    %69 = arith.truncf %68 : vector<16x16xf32> to vector<16x16xbf16>
    %70 = vector.extract_strided_slice %58 {offsets = [0, 0], sizes = [16, 16], strides = [1, 1]} : vector<16x32xf32> to vector<16x16xf32>
    %71 = arith.truncf %70 : vector<16x16xf32> to vector<16x16xbf16>
    %cst_30 = arith.constant dense<0.000000e+00> : vector<16x16xf32>
    %72 = tpu.matmul %67, %69, %cst_30 {dimension_numbers = #tpu.dot_dimension_numbers<[1], [1], [0], [0], [0, 0, 1, 0], [], []>} : vector<16x16xbf16>, vector<16x16xbf16>, vector<16x16xf32> -> vector<16x16xf32>
    %cst_31 = arith.constant 2.500000e-01 : f32
    %73 = vector.broadcast %cst_31 : f32 to vector<16x16xf32>
    %74 = arith.mulf %72, %73 : vector<16x16xf32>
    %75 = arith.addf %74, %2 : vector<16x16xf32>
    %cst_32 = arith.constant dense<0xFF800000> : vector<16xf32>
    %76 = vector.multi_reduction <maximumf>, %75, %cst_32 [1] : vector<16x16xf32> to vector<16xf32>
    %77 = vector.shape_cast %76 : vector<16xf32> to vector<16x1xf32>
    %78 = vector.broadcast %77 : vector<16x1xf32> to vector<16x16xf32>
    %79 = arith.subf %75, %78 : vector<16x16xf32>
    %80 = math.exp %79 : vector<16x16xf32>
    %cst_33 = arith.constant dense<0.000000e+00> : vector<16xf32>
    %81 = vector.multi_reduction <add>, %80, %cst_33 [1] : vector<16x16xf32> to vector<16xf32>
    %82 = vector.shape_cast %81 : vector<16xf32> to vector<16x1xf32>
    %83 = tpu.reciprocal %82 {approx = true} : vector<16x1xf32> -> vector<16x1xf32>
    %84 = vector.broadcast %83 : vector<16x1xf32> to vector<16x16xf32>
    %85 = arith.mulf %80, %84 : vector<16x16xf32>
    %86 = arith.truncf %85 : vector<16x16xf32> to vector<16x16xbf16>
    %cst_34 = arith.constant dense<0.000000e+00> : vector<16x16xf32>
    %87 = tpu.matmul %86, %71, %cst_34 {dimension_numbers = #tpu.dot_dimension_numbers<[1], [0], [0], [1], [0, 0, 1, 1], [], []>} : vector<16x16xbf16>, vector<16x16xbf16>, vector<16x16xf32> -> vector<16x16xf32>
    %88 = arith.truncf %87 : vector<16x16xf32> to vector<16x16xbf16>
    %89 = vector.extract_strided_slice %60 {offsets = [0, 0], sizes = [16, 32], strides = [1, 1]} : vector<128x32xbf16> to vector<16x32xbf16>
    %cst_35 = arith.constant dense<0.000000e+00> : vector<16x32xf32>
    %90 = tpu.matmul %88, %89, %cst_35 {dimension_numbers = #tpu.dot_dimension_numbers<[1], [0], [0], [1], [0, 0, 1, 1], [], []>} : vector<16x16xbf16>, vector<16x32xbf16>, vector<16x32xf32> -> vector<16x32xf32>
    %91 = arith.addf %65, %90 : vector<16x32xf32>
    %92 = vector.extract_strided_slice %56 {offsets = [0, 16], sizes = [16, 16], strides = [1, 1]} : vector<16x32xf32> to vector<16x16xf32>
    %93 = arith.truncf %92 : vector<16x16xf32> to vector<16x16xbf16>
    %94 = vector.extract_strided_slice %57 {offsets = [0, 16], sizes = [16, 16], strides = [1, 1]} : vector<16x32xf32> to vector<16x16xf32>
    %95 = arith.truncf %94 : vector<16x16xf32> to vector<16x16xbf16>
    %96 = vector.extract_strided_slice %58 {offsets = [0, 16], sizes = [16, 16], strides = [1, 1]} : vector<16x32xf32> to vector<16x16xf32>
    %97 = arith.truncf %96 : vector<16x16xf32> to vector<16x16xbf16>
    %cst_36 = arith.constant dense<0.000000e+00> : vector<16x16xf32>
    %98 = tpu.matmul %93, %95, %cst_36 {dimension_numbers = #tpu.dot_dimension_numbers<[1], [1], [0], [0], [0, 0, 1, 0], [], []>} : vector<16x16xbf16>, vector<16x16xbf16>, vector<16x16xf32> -> vector<16x16xf32>
    %cst_37 = arith.constant 2.500000e-01 : f32
    %99 = vector.broadcast %cst_37 : f32 to vector<16x16xf32>
    %100 = arith.mulf %98, %99 : vector<16x16xf32>
    %101 = arith.addf %100, %2 : vector<16x16xf32>
    %cst_38 = arith.constant dense<0xFF800000> : vector<16xf32>
    %102 = vector.multi_reduction <maximumf>, %101, %cst_38 [1] : vector<16x16xf32> to vector<16xf32>
    %103 = vector.shape_cast %102 : vector<16xf32> to vector<16x1xf32>
    %104 = vector.broadcast %103 : vector<16x1xf32> to vector<16x16xf32>
    %105 = arith.subf %101, %104 : vector<16x16xf32>
    %106 = math.exp %105 : vector<16x16xf32>
    %cst_39 = arith.constant dense<0.000000e+00> : vector<16xf32>
    %107 = vector.multi_reduction <add>, %106, %cst_39 [1] : vector<16x16xf32> to vector<16xf32>
    %108 = vector.shape_cast %107 : vector<16xf32> to vector<16x1xf32>
    %109 = tpu.reciprocal %108 {approx = true} : vector<16x1xf32> -> vector<16x1xf32>
    %110 = vector.broadcast %109 : vector<16x1xf32> to vector<16x16xf32>
    %111 = arith.mulf %106, %110 : vector<16x16xf32>
    %112 = arith.truncf %111 : vector<16x16xf32> to vector<16x16xbf16>
    %cst_40 = arith.constant dense<0.000000e+00> : vector<16x16xf32>
    %113 = tpu.matmul %112, %97, %cst_40 {dimension_numbers = #tpu.dot_dimension_numbers<[1], [0], [0], [1], [0, 0, 1, 1], [], []>} : vector<16x16xbf16>, vector<16x16xbf16>, vector<16x16xf32> -> vector<16x16xf32>
    %114 = arith.truncf %113 : vector<16x16xf32> to vector<16x16xbf16>
    %115 = vector.extract_strided_slice %60 {offsets = [16, 0], sizes = [16, 32], strides = [1, 1]} : vector<128x32xbf16> to vector<16x32xbf16>
    %cst_41 = arith.constant dense<0.000000e+00> : vector<16x32xf32>
    %116 = tpu.matmul %114, %115, %cst_41 {dimension_numbers = #tpu.dot_dimension_numbers<[1], [0], [0], [1], [0, 0, 1, 1], [], []>} : vector<16x16xbf16>, vector<16x32xbf16>, vector<16x32xf32> -> vector<16x32xf32>
    %117 = arith.addf %91, %116 : vector<16x32xf32>
    %118 = vector.broadcast %64 : vector<1x32xf32> to vector<16x32xf32>
    %119 = arith.addf %117, %118 : vector<16x32xf32>
    %120 = arith.addf %119, %44 : vector<16x32xf32>
    %c6 = arith.constant 6 : index
    %c0_42 = arith.constant 0 : index
    %121 = vector.load %arg4[%c6, %c0_42] : memref<48x128xf32, #tpu.memory_space<vmem>>, vector<1x128xf32>
    %122 = vector.shape_cast %121 : vector<1x128xf32> to vector<128xf32>
    %123 = vector.extract_strided_slice %122 {offsets = [0], sizes = [32], strides = [1]} : vector<128xf32> to vector<32xf32>
    %124 = vector.shape_cast %123 : vector<32xf32> to vector<1x32xf32>
    %c7 = arith.constant 7 : index
    %c0_43 = arith.constant 0 : index
    %125 = vector.load %arg4[%c7, %c0_43] : memref<48x128xf32, #tpu.memory_space<vmem>>, vector<1x128xf32>
    %126 = vector.shape_cast %125 : vector<1x128xf32> to vector<128xf32>
    %127 = vector.extract_strided_slice %126 {offsets = [0], sizes = [32], strides = [1]} : vector<128xf32> to vector<32xf32>
    %128 = vector.shape_cast %127 : vector<32xf32> to vector<1x32xf32>
    %cst_44 = arith.constant dense<0.000000e+00> : vector<16xf32>
    %129 = vector.multi_reduction <add>, %120, %cst_44 [1] : vector<16x32xf32> to vector<16xf32>
    %130 = vector.shape_cast %129 : vector<16xf32> to vector<16x1xf32>
    %cst_45 = arith.constant 3.200000e+01 : f32
    %131 = vector.broadcast %cst_45 : f32 to vector<16x1xf32>
    %132 = arith.divf %130, %131 : vector<16x1xf32>
    %133 = vector.broadcast %132 : vector<16x1xf32> to vector<16x32xf32>
    %134 = arith.subf %120, %133 : vector<16x32xf32>
    %135 = arith.mulf %134, %134 : vector<16x32xf32>
    %cst_46 = arith.constant dense<0.000000e+00> : vector<16xf32>
    %136 = vector.multi_reduction <add>, %135, %cst_46 [1] : vector<16x32xf32> to vector<16xf32>
    %137 = vector.shape_cast %136 : vector<16xf32> to vector<16x1xf32>
    %cst_47 = arith.constant 3.200000e+01 : f32
    %138 = vector.broadcast %cst_47 : f32 to vector<16x1xf32>
    %139 = arith.divf %137, %138 : vector<16x1xf32>
    %140 = vector.broadcast %132 : vector<16x1xf32> to vector<16x32xf32>
    %141 = arith.subf %120, %140 : vector<16x32xf32>
    %cst_48 = arith.constant 9.99999997E-7 : f32
    %142 = vector.broadcast %cst_48 : f32 to vector<16x1xf32>
    %143 = arith.addf %139, %142 : vector<16x1xf32>
    %144 = math.rsqrt %143 : vector<16x1xf32>
    %145 = vector.broadcast %144 : vector<16x1xf32> to vector<16x32xf32>
    %146 = arith.mulf %141, %145 : vector<16x32xf32>
    %147 = vector.broadcast %124 : vector<1x32xf32> to vector<16x32xf32>
    %148 = arith.mulf %146, %147 : vector<16x32xf32>
    %149 = vector.broadcast %128 : vector<1x32xf32> to vector<16x32xf32>
    %150 = arith.addf %148, %149 : vector<16x32xf32>
    %c2 = arith.constant 2 : index
    %c0_49 = arith.constant 0 : index
    %c0_50 = arith.constant 0 : index
    %151 = vector.load %arg2[%c2, %c0_49, %c0_50] : memref<12x32x128xbf16, #tpu.memory_space<vmem>>, vector<1x32x128xbf16>
    %152 = vector.shape_cast %151 : vector<1x32x128xbf16> to vector<32x128xbf16>
    %153 = vector.extract_strided_slice %152 {offsets = [0, 0], sizes = [32, 64], strides = [1, 1]} : vector<32x128xbf16> to vector<32x64xbf16>
    %154 = arith.truncf %150 : vector<16x32xf32> to vector<16x32xbf16>
    %cst_51 = arith.constant dense<0.000000e+00> : vector<16x64xf32>
    %155 = tpu.matmul %154, %153, %cst_51 {dimension_numbers = #tpu.dot_dimension_numbers<[1], [0], [0], [1], [0, 0, 1, 1], [], []>} : vector<16x32xbf16>, vector<32x64xbf16>, vector<16x64xf32> -> vector<16x64xf32>
    %c8 = arith.constant 8 : index
    %c0_52 = arith.constant 0 : index
    %156 = vector.load %arg4[%c8, %c0_52] : memref<48x128xf32, #tpu.memory_space<vmem>>, vector<1x128xf32>
    %157 = vector.shape_cast %156 : vector<1x128xf32> to vector<128xf32>
    %158 = vector.extract_strided_slice %157 {offsets = [0], sizes = [64], strides = [1]} : vector<128xf32> to vector<64xf32>
    %159 = vector.shape_cast %158 : vector<64xf32> to vector<1x64xf32>
    %160 = vector.broadcast %159 : vector<1x64xf32> to vector<16x64xf32>
    %161 = arith.addf %155, %160 : vector<16x64xf32>
    %cst_53 = arith.constant 0.000000e+00 : f32
    %162 = vector.broadcast %cst_53 : f32 to vector<16x64xf32>
    %163 = arith.maximumf %161, %162 : vector<16x64xf32>
    %c2_54 = arith.constant 2 : index
    %c0_55 = arith.constant 0 : index
    %c0_56 = arith.constant 0 : index
    %164 = vector.load %arg3[%c2_54, %c0_55, %c0_56] : memref<11x128x32xbf16, #tpu.memory_space<vmem>>, vector<1x128x32xbf16>
    %165 = vector.shape_cast %164 : vector<1x128x32xbf16> to vector<128x32xbf16>
    %166 = vector.extract_strided_slice %165 {offsets = [0, 0], sizes = [64, 32], strides = [1, 1]} : vector<128x32xbf16> to vector<64x32xbf16>
    %167 = arith.truncf %163 : vector<16x64xf32> to vector<16x64xbf16>
    %cst_57 = arith.constant dense<0.000000e+00> : vector<16x32xf32>
    %168 = tpu.matmul %167, %166, %cst_57 {dimension_numbers = #tpu.dot_dimension_numbers<[1], [0], [0], [1], [0, 0, 1, 1], [], []>} : vector<16x64xbf16>, vector<64x32xbf16>, vector<16x32xf32> -> vector<16x32xf32>
    %c9 = arith.constant 9 : index
    %c0_58 = arith.constant 0 : index
    %169 = vector.load %arg4[%c9, %c0_58] : memref<48x128xf32, #tpu.memory_space<vmem>>, vector<1x128xf32>
    %170 = vector.shape_cast %169 : vector<1x128xf32> to vector<128xf32>
    %171 = vector.extract_strided_slice %170 {offsets = [0], sizes = [32], strides = [1]} : vector<128xf32> to vector<32xf32>
    %172 = vector.shape_cast %171 : vector<32xf32> to vector<1x32xf32>
    %173 = vector.broadcast %172 : vector<1x32xf32> to vector<16x32xf32>
    %174 = arith.addf %168, %173 : vector<16x32xf32>
    %175 = arith.addf %174, %150 : vector<16x32xf32>
    %c10 = arith.constant 10 : index
    %c0_59 = arith.constant 0 : index
    %176 = vector.load %arg4[%c10, %c0_59] : memref<48x128xf32, #tpu.memory_space<vmem>>, vector<1x128xf32>
    %177 = vector.shape_cast %176 : vector<1x128xf32> to vector<128xf32>
    %178 = vector.extract_strided_slice %177 {offsets = [0], sizes = [32], strides = [1]} : vector<128xf32> to vector<32xf32>
    %179 = vector.shape_cast %178 : vector<32xf32> to vector<1x32xf32>
    %c11 = arith.constant 11 : index
    %c0_60 = arith.constant 0 : index
    %180 = vector.load %arg4[%c11, %c0_60] : memref<48x128xf32, #tpu.memory_space<vmem>>, vector<1x128xf32>
    %181 = vector.shape_cast %180 : vector<1x128xf32> to vector<128xf32>
    %182 = vector.extract_strided_slice %181 {offsets = [0], sizes = [32], strides = [1]} : vector<128xf32> to vector<32xf32>
    %183 = vector.shape_cast %182 : vector<32xf32> to vector<1x32xf32>
    %cst_61 = arith.constant dense<0.000000e+00> : vector<16xf32>
    %184 = vector.multi_reduction <add>, %175, %cst_61 [1] : vector<16x32xf32> to vector<16xf32>
    %185 = vector.shape_cast %184 : vector<16xf32> to vector<16x1xf32>
    %cst_62 = arith.constant 3.200000e+01 : f32
    %186 = vector.broadcast %cst_62 : f32 to vector<16x1xf32>
    %187 = arith.divf %185, %186 : vector<16x1xf32>
    %188 = vector.broadcast %187 : vector<16x1xf32> to vector<16x32xf32>
    %189 = arith.subf %175, %188 : vector<16x32xf32>
    %190 = arith.mulf %189, %189 : vector<16x32xf32>
    %cst_63 = arith.constant dense<0.000000e+00> : vector<16xf32>
    %191 = vector.multi_reduction <add>, %190, %cst_63 [1] : vector<16x32xf32> to vector<16xf32>
    %192 = vector.shape_cast %191 : vector<16xf32> to vector<16x1xf32>
    %cst_64 = arith.constant 3.200000e+01 : f32
    %193 = vector.broadcast %cst_64 : f32 to vector<16x1xf32>
    %194 = arith.divf %192, %193 : vector<16x1xf32>
    %195 = vector.broadcast %187 : vector<16x1xf32> to vector<16x32xf32>
    %196 = arith.subf %175, %195 : vector<16x32xf32>
    %cst_65 = arith.constant 9.99999997E-7 : f32
    %197 = vector.broadcast %cst_65 : f32 to vector<16x1xf32>
    %198 = arith.addf %194, %197 : vector<16x1xf32>
    %199 = math.rsqrt %198 : vector<16x1xf32>
    %200 = vector.broadcast %199 : vector<16x1xf32> to vector<16x32xf32>
    %201 = arith.mulf %196, %200 : vector<16x32xf32>
    %202 = vector.broadcast %179 : vector<1x32xf32> to vector<16x32xf32>
    %203 = arith.mulf %201, %202 : vector<16x32xf32>
    %204 = vector.broadcast %183 : vector<1x32xf32> to vector<16x32xf32>
    %205 = arith.addf %203, %204 : vector<16x32xf32>
    %c1_66 = arith.constant 1 : index
    %c0_67 = arith.constant 0 : index
    %c0_68 = arith.constant 0 : index
    %206 = vector.load %arg2[%c1_66, %c0_67, %c0_68] : memref<12x32x128xbf16, #tpu.memory_space<vmem>>, vector<1x32x128xbf16>
    %207 = vector.shape_cast %206 : vector<1x32x128xbf16> to vector<32x128xbf16>
    %208 = vector.extract_strided_slice %207 {offsets = [0, 0], sizes = [32, 96], strides = [1, 1]} : vector<32x128xbf16> to vector<32x96xbf16>
    %209 = arith.truncf %205 : vector<16x32xf32> to vector<16x32xbf16>
    %cst_69 = arith.constant dense<0.000000e+00> : vector<16x96xf32>
    %210 = tpu.matmul %209, %208, %cst_69 {dimension_numbers = #tpu.dot_dimension_numbers<[1], [0], [0], [1], [0, 0, 1, 1], [], []>} : vector<16x32xbf16>, vector<32x96xbf16>, vector<16x96xf32> -> vector<16x96xf32>
    %c12 = arith.constant 12 : index
    %c0_70 = arith.constant 0 : index
    %211 = vector.load %arg4[%c12, %c0_70] : memref<48x128xf32, #tpu.memory_space<vmem>>, vector<1x128xf32>
    %212 = vector.shape_cast %211 : vector<1x128xf32> to vector<128xf32>
    %213 = vector.extract_strided_slice %212 {offsets = [0], sizes = [96], strides = [1]} : vector<128xf32> to vector<96xf32>
    %214 = vector.shape_cast %213 : vector<96xf32> to vector<1x96xf32>
    %215 = vector.broadcast %214 : vector<1x96xf32> to vector<16x96xf32>
    %216 = arith.addf %210, %215 : vector<16x96xf32>
    %217 = vector.extract_strided_slice %216 {offsets = [0, 0], sizes = [16, 32], strides = [1, 1]} : vector<16x96xf32> to vector<16x32xf32>
    %218 = vector.extract_strided_slice %216 {offsets = [0, 32], sizes = [16, 32], strides = [1, 1]} : vector<16x96xf32> to vector<16x32xf32>
    %219 = vector.extract_strided_slice %216 {offsets = [0, 64], sizes = [16, 32], strides = [1, 1]} : vector<16x96xf32> to vector<16x32xf32>
    %c1_71 = arith.constant 1 : index
    %c0_72 = arith.constant 0 : index
    %c0_73 = arith.constant 0 : index
    %220 = vector.load %arg3[%c1_71, %c0_72, %c0_73] : memref<11x128x32xbf16, #tpu.memory_space<vmem>>, vector<1x128x32xbf16>
    %221 = vector.shape_cast %220 : vector<1x128x32xbf16> to vector<128x32xbf16>
    %c13 = arith.constant 13 : index
    %c0_74 = arith.constant 0 : index
    %222 = vector.load %arg4[%c13, %c0_74] : memref<48x128xf32, #tpu.memory_space<vmem>>, vector<1x128xf32>
    %223 = vector.shape_cast %222 : vector<1x128xf32> to vector<128xf32>
    %224 = vector.extract_strided_slice %223 {offsets = [0], sizes = [32], strides = [1]} : vector<128xf32> to vector<32xf32>
    %225 = vector.shape_cast %224 : vector<32xf32> to vector<1x32xf32>
    %cst_75 = arith.constant 0.000000e+00 : f32
    %226 = vector.broadcast %cst_75 : f32 to vector<16x32xf32>
    %227 = vector.extract_strided_slice %217 {offsets = [0, 0], sizes = [16, 16], strides = [1, 1]} : vector<16x32xf32> to vector<16x16xf32>
    %228 = arith.truncf %227 : vector<16x16xf32> to vector<16x16xbf16>
    %229 = vector.extract_strided_slice %218 {offsets = [0, 0], sizes = [16, 16], strides = [1, 1]} : vector<16x32xf32> to vector<16x16xf32>
    %230 = arith.truncf %229 : vector<16x16xf32> to vector<16x16xbf16>
    %231 = vector.extract_strided_slice %219 {offsets = [0, 0], sizes = [16, 16], strides = [1, 1]} : vector<16x32xf32> to vector<16x16xf32>
    %232 = arith.truncf %231 : vector<16x16xf32> to vector<16x16xbf16>
    %cst_76 = arith.constant dense<0.000000e+00> : vector<16x16xf32>
    %233 = tpu.matmul %228, %230, %cst_76 {dimension_numbers = #tpu.dot_dimension_numbers<[1], [1], [0], [0], [0, 0, 1, 0], [], []>} : vector<16x16xbf16>, vector<16x16xbf16>, vector<16x16xf32> -> vector<16x16xf32>
    %cst_77 = arith.constant 2.500000e-01 : f32
    %234 = vector.broadcast %cst_77 : f32 to vector<16x16xf32>
    %235 = arith.mulf %233, %234 : vector<16x16xf32>
    %236 = arith.addf %235, %2 : vector<16x16xf32>
    %cst_78 = arith.constant dense<0xFF800000> : vector<16xf32>
    %237 = vector.multi_reduction <maximumf>, %236, %cst_78 [1] : vector<16x16xf32> to vector<16xf32>
    %238 = vector.shape_cast %237 : vector<16xf32> to vector<16x1xf32>
    %239 = vector.broadcast %238 : vector<16x1xf32> to vector<16x16xf32>
    %240 = arith.subf %236, %239 : vector<16x16xf32>
    %241 = math.exp %240 : vector<16x16xf32>
    %cst_79 = arith.constant dense<0.000000e+00> : vector<16xf32>
    %242 = vector.multi_reduction <add>, %241, %cst_79 [1] : vector<16x16xf32> to vector<16xf32>
    %243 = vector.shape_cast %242 : vector<16xf32> to vector<16x1xf32>
    %244 = tpu.reciprocal %243 {approx = true} : vector<16x1xf32> -> vector<16x1xf32>
    %245 = vector.broadcast %244 : vector<16x1xf32> to vector<16x16xf32>
    %246 = arith.mulf %241, %245 : vector<16x16xf32>
    %247 = arith.truncf %246 : vector<16x16xf32> to vector<16x16xbf16>
    %cst_80 = arith.constant dense<0.000000e+00> : vector<16x16xf32>
    %248 = tpu.matmul %247, %232, %cst_80 {dimension_numbers = #tpu.dot_dimension_numbers<[1], [0], [0], [1], [0, 0, 1, 1], [], []>} : vector<16x16xbf16>, vector<16x16xbf16>, vector<16x16xf32> -> vector<16x16xf32>
    %249 = arith.truncf %248 : vector<16x16xf32> to vector<16x16xbf16>
    %250 = vector.extract_strided_slice %221 {offsets = [0, 0], sizes = [16, 32], strides = [1, 1]} : vector<128x32xbf16> to vector<16x32xbf16>
    %cst_81 = arith.constant dense<0.000000e+00> : vector<16x32xf32>
    %251 = tpu.matmul %249, %250, %cst_81 {dimension_numbers = #tpu.dot_dimension_numbers<[1], [0], [0], [1], [0, 0, 1, 1], [], []>} : vector<16x16xbf16>, vector<16x32xbf16>, vector<16x32xf32> -> vector<16x32xf32>
    %252 = arith.addf %226, %251 : vector<16x32xf32>
    %253 = vector.extract_strided_slice %217 {offsets = [0, 16], sizes = [16, 16], strides = [1, 1]} : vector<16x32xf32> to vector<16x16xf32>
    %254 = arith.truncf %253 : vector<16x16xf32> to vector<16x16xbf16>
    %255 = vector.extract_strided_slice %218 {offsets = [0, 16], sizes = [16, 16], strides = [1, 1]} : vector<16x32xf32> to vector<16x16xf32>
    %256 = arith.truncf %255 : vector<16x16xf32> to vector<16x16xbf16>
    %257 = vector.extract_strided_slice %219 {offsets = [0, 16], sizes = [16, 16], strides = [1, 1]} : vector<16x32xf32> to vector<16x16xf32>
    %258 = arith.truncf %257 : vector<16x16xf32> to vector<16x16xbf16>
    %cst_82 = arith.constant dense<0.000000e+00> : vector<16x16xf32>
    %259 = tpu.matmul %254, %256, %cst_82 {dimension_numbers = #tpu.dot_dimension_numbers<[1], [1], [0], [0], [0, 0, 1, 0], [], []>} : vector<16x16xbf16>, vector<16x16xbf16>, vector<16x16xf32> -> vector<16x16xf32>
    %cst_83 = arith.constant 2.500000e-01 : f32
    %260 = vector.broadcast %cst_83 : f32 to vector<16x16xf32>
    %261 = arith.mulf %259, %260 : vector<16x16xf32>
    %262 = arith.addf %261, %2 : vector<16x16xf32>
    %cst_84 = arith.constant dense<0xFF800000> : vector<16xf32>
    %263 = vector.multi_reduction <maximumf>, %262, %cst_84 [1] : vector<16x16xf32> to vector<16xf32>
    %264 = vector.shape_cast %263 : vector<16xf32> to vector<16x1xf32>
    %265 = vector.broadcast %264 : vector<16x1xf32> to vector<16x16xf32>
    %266 = arith.subf %262, %265 : vector<16x16xf32>
    %267 = math.exp %266 : vector<16x16xf32>
    %cst_85 = arith.constant dense<0.000000e+00> : vector<16xf32>
    %268 = vector.multi_reduction <add>, %267, %cst_85 [1] : vector<16x16xf32> to vector<16xf32>
    %269 = vector.shape_cast %268 : vector<16xf32> to vector<16x1xf32>
    %270 = tpu.reciprocal %269 {approx = true} : vector<16x1xf32> -> vector<16x1xf32>
    %271 = vector.broadcast %270 : vector<16x1xf32> to vector<16x16xf32>
    %272 = arith.mulf %267, %271 : vector<16x16xf32>
    %273 = arith.truncf %272 : vector<16x16xf32> to vector<16x16xbf16>
    %cst_86 = arith.constant dense<0.000000e+00> : vector<16x16xf32>
    %274 = tpu.matmul %273, %258, %cst_86 {dimension_numbers = #tpu.dot_dimension_numbers<[1], [0], [0], [1], [0, 0, 1, 1], [], []>} : vector<16x16xbf16>, vector<16x16xbf16>, vector<16x16xf32> -> vector<16x16xf32>
    %275 = arith.truncf %274 : vector<16x16xf32> to vector<16x16xbf16>
    %276 = vector.extract_strided_slice %221 {offsets = [16, 0], sizes = [16, 32], strides = [1, 1]} : vector<128x32xbf16> to vector<16x32xbf16>
    %cst_87 = arith.constant dense<0.000000e+00> : vector<16x32xf32>
    %277 = tpu.matmul %275, %276, %cst_87 {dimension_numbers = #tpu.dot_dimension_numbers<[1], [0], [0], [1], [0, 0, 1, 1], [], []>} : vector<16x16xbf16>, vector<16x32xbf16>, vector<16x32xf32> -> vector<16x32xf32>
    %278 = arith.addf %252, %277 : vector<16x32xf32>
    %279 = vector.broadcast %225 : vector<1x32xf32> to vector<16x32xf32>
    %280 = arith.addf %278, %279 : vector<16x32xf32>
    %281 = arith.addf %280, %205 : vector<16x32xf32>
    %c14 = arith.constant 14 : index
    %c0_88 = arith.constant 0 : index
    %282 = vector.load %arg4[%c14, %c0_88] : memref<48x128xf32, #tpu.memory_space<vmem>>, vector<1x128xf32>
    %283 = vector.shape_cast %282 : vector<1x128xf32> to vector<128xf32>
    %284 = vector.extract_strided_slice %283 {offsets = [0], sizes = [32], strides = [1]} : vector<128xf32> to vector<32xf32>
    %285 = vector.shape_cast %284 : vector<32xf32> to vector<1x32xf32>
    %c15 = arith.constant 15 : index
    %c0_89 = arith.constant 0 : index
    %286 = vector.load %arg4[%c15, %c0_89] : memref<48x128xf32, #tpu.memory_space<vmem>>, vector<1x128xf32>
    %287 = vector.shape_cast %286 : vector<1x128xf32> to vector<128xf32>
    %288 = vector.extract_strided_slice %287 {offsets = [0], sizes = [32], strides = [1]} : vector<128xf32> to vector<32xf32>
    %289 = vector.shape_cast %288 : vector<32xf32> to vector<1x32xf32>
    %cst_90 = arith.constant dense<0.000000e+00> : vector<16xf32>
    %290 = vector.multi_reduction <add>, %281, %cst_90 [1] : vector<16x32xf32> to vector<16xf32>
    %291 = vector.shape_cast %290 : vector<16xf32> to vector<16x1xf32>
    %cst_91 = arith.constant 3.200000e+01 : f32
    %292 = vector.broadcast %cst_91 : f32 to vector<16x1xf32>
    %293 = arith.divf %291, %292 : vector<16x1xf32>
    %294 = vector.broadcast %293 : vector<16x1xf32> to vector<16x32xf32>
    %295 = arith.subf %281, %294 : vector<16x32xf32>
    %296 = arith.mulf %295, %295 : vector<16x32xf32>
    %cst_92 = arith.constant dense<0.000000e+00> : vector<16xf32>
    %297 = vector.multi_reduction <add>, %296, %cst_92 [1] : vector<16x32xf32> to vector<16xf32>
    %298 = vector.shape_cast %297 : vector<16xf32> to vector<16x1xf32>
    %cst_93 = arith.constant 3.200000e+01 : f32
    %299 = vector.broadcast %cst_93 : f32 to vector<16x1xf32>
    %300 = arith.divf %298, %299 : vector<16x1xf32>
    %301 = vector.broadcast %293 : vector<16x1xf32> to vector<16x32xf32>
    %302 = arith.subf %281, %301 : vector<16x32xf32>
    %cst_94 = arith.constant 9.99999997E-7 : f32
    %303 = vector.broadcast %cst_94 : f32 to vector<16x1xf32>
    %304 = arith.addf %300, %303 : vector<16x1xf32>
    %305 = math.rsqrt %304 : vector<16x1xf32>
    %306 = vector.broadcast %305 : vector<16x1xf32> to vector<16x32xf32>
    %307 = arith.mulf %302, %306 : vector<16x32xf32>
    %308 = vector.broadcast %285 : vector<1x32xf32> to vector<16x32xf32>
    %309 = arith.mulf %307, %308 : vector<16x32xf32>
    %310 = vector.broadcast %289 : vector<1x32xf32> to vector<16x32xf32>
    %311 = arith.addf %309, %310 : vector<16x32xf32>
    %c3_95 = arith.constant 3 : index
    %c0_96 = arith.constant 0 : index
    %c0_97 = arith.constant 0 : index
    %312 = vector.load %arg2[%c3_95, %c0_96, %c0_97] : memref<12x32x128xbf16, #tpu.memory_space<vmem>>, vector<1x32x128xbf16>
    %313 = vector.shape_cast %312 : vector<1x32x128xbf16> to vector<32x128xbf16>
    %314 = vector.extract_strided_slice %313 {offsets = [0, 0], sizes = [32, 64], strides = [1, 1]} : vector<32x128xbf16> to vector<32x64xbf16>
    %315 = arith.truncf %311 : vector<16x32xf32> to vector<16x32xbf16>
    %cst_98 = arith.constant dense<0.000000e+00> : vector<16x64xf32>
    %316 = tpu.matmul %315, %314, %cst_98 {dimension_numbers = #tpu.dot_dimension_numbers<[1], [0], [0], [1], [0, 0, 1, 1], [], []>} : vector<16x32xbf16>, vector<32x64xbf16>, vector<16x64xf32> -> vector<16x64xf32>
    %c16 = arith.constant 16 : index
    %c0_99 = arith.constant 0 : index
    %317 = vector.load %arg4[%c16, %c0_99] : memref<48x128xf32, #tpu.memory_space<vmem>>, vector<1x128xf32>
    %318 = vector.shape_cast %317 : vector<1x128xf32> to vector<128xf32>
    %319 = vector.extract_strided_slice %318 {offsets = [0], sizes = [64], strides = [1]} : vector<128xf32> to vector<64xf32>
    %320 = vector.shape_cast %319 : vector<64xf32> to vector<1x64xf32>
    %321 = vector.broadcast %320 : vector<1x64xf32> to vector<16x64xf32>
    %322 = arith.addf %316, %321 : vector<16x64xf32>
    %cst_100 = arith.constant 0.000000e+00 : f32
    %323 = vector.broadcast %cst_100 : f32 to vector<16x64xf32>
    %324 = arith.maximumf %322, %323 : vector<16x64xf32>
    %c3_101 = arith.constant 3 : index
    %c0_102 = arith.constant 0 : index
    %c0_103 = arith.constant 0 : index
    %325 = vector.load %arg3[%c3_101, %c0_102, %c0_103] : memref<11x128x32xbf16, #tpu.memory_space<vmem>>, vector<1x128x32xbf16>
    %326 = vector.shape_cast %325 : vector<1x128x32xbf16> to vector<128x32xbf16>
    %327 = vector.extract_strided_slice %326 {offsets = [0, 0], sizes = [64, 32], strides = [1, 1]} : vector<128x32xbf16> to vector<64x32xbf16>
    %328 = arith.truncf %324 : vector<16x64xf32> to vector<16x64xbf16>
    %cst_104 = arith.constant dense<0.000000e+00> : vector<16x32xf32>
    %329 = tpu.matmul %328, %327, %cst_104 {dimension_numbers = #tpu.dot_dimension_numbers<[1], [0], [0], [1], [0, 0, 1, 1], [], []>} : vector<16x64xbf16>, vector<64x32xbf16>, vector<16x32xf32> -> vector<16x32xf32>
    %c17 = arith.constant 17 : index
    %c0_105 = arith.constant 0 : index
    %330 = vector.load %arg4[%c17, %c0_105] : memref<48x128xf32, #tpu.memory_space<vmem>>, vector<1x128xf32>
    %331 = vector.shape_cast %330 : vector<1x128xf32> to vector<128xf32>
    %332 = vector.extract_strided_slice %331 {offsets = [0], sizes = [32], strides = [1]} : vector<128xf32> to vector<32xf32>
    %333 = vector.shape_cast %332 : vector<32xf32> to vector<1x32xf32>
    %334 = vector.broadcast %333 : vector<1x32xf32> to vector<16x32xf32>
    %335 = arith.addf %329, %334 : vector<16x32xf32>
    %336 = arith.addf %335, %311 : vector<16x32xf32>
    %c18 = arith.constant 18 : index
    %c0_106 = arith.constant 0 : index
    %337 = vector.load %arg4[%c18, %c0_106] : memref<48x128xf32, #tpu.memory_space<vmem>>, vector<1x128xf32>
    %338 = vector.shape_cast %337 : vector<1x128xf32> to vector<128xf32>
    %339 = vector.extract_strided_slice %338 {offsets = [0], sizes = [32], strides = [1]} : vector<128xf32> to vector<32xf32>
    %340 = vector.shape_cast %339 : vector<32xf32> to vector<1x32xf32>
    %c19 = arith.constant 19 : index
    %c0_107 = arith.constant 0 : index
    %341 = vector.load %arg4[%c19, %c0_107] : memref<48x128xf32, #tpu.memory_space<vmem>>, vector<1x128xf32>
    %342 = vector.shape_cast %341 : vector<1x128xf32> to vector<128xf32>
    %343 = vector.extract_strided_slice %342 {offsets = [0], sizes = [32], strides = [1]} : vector<128xf32> to vector<32xf32>
    %344 = vector.shape_cast %343 : vector<32xf32> to vector<1x32xf32>
    %cst_108 = arith.constant dense<0.000000e+00> : vector<16xf32>
    %345 = vector.multi_reduction <add>, %336, %cst_108 [1] : vector<16x32xf32> to vector<16xf32>
    %346 = vector.shape_cast %345 : vector<16xf32> to vector<16x1xf32>
    %cst_109 = arith.constant 3.200000e+01 : f32
    %347 = vector.broadcast %cst_109 : f32 to vector<16x1xf32>
    %348 = arith.divf %346, %347 : vector<16x1xf32>
    %349 = vector.broadcast %348 : vector<16x1xf32> to vector<16x32xf32>
    %350 = arith.subf %336, %349 : vector<16x32xf32>
    %351 = arith.mulf %350, %350 : vector<16x32xf32>
    %cst_110 = arith.constant dense<0.000000e+00> : vector<16xf32>
    %352 = vector.multi_reduction <add>, %351, %cst_110 [1] : vector<16x32xf32> to vector<16xf32>
    %353 = vector.shape_cast %352 : vector<16xf32> to vector<16x1xf32>
    %cst_111 = arith.constant 3.200000e+01 : f32
    %354 = vector.broadcast %cst_111 : f32 to vector<16x1xf32>
    %355 = arith.divf %353, %354 : vector<16x1xf32>
    %356 = vector.broadcast %348 : vector<16x1xf32> to vector<16x32xf32>
    %357 = arith.subf %336, %356 : vector<16x32xf32>
    %cst_112 = arith.constant 9.99999997E-7 : f32
    %358 = vector.broadcast %cst_112 : f32 to vector<16x1xf32>
    %359 = arith.addf %355, %358 : vector<16x1xf32>
    %360 = math.rsqrt %359 : vector<16x1xf32>
    %361 = vector.broadcast %360 : vector<16x1xf32> to vector<16x32xf32>
    %362 = arith.mulf %357, %361 : vector<16x32xf32>
    %363 = vector.broadcast %340 : vector<1x32xf32> to vector<16x32xf32>
    %364 = arith.mulf %362, %363 : vector<16x32xf32>
    %365 = vector.broadcast %344 : vector<1x32xf32> to vector<16x32xf32>
    %366 = arith.addf %364, %365 : vector<16x32xf32>
    %c0_113 = arith.constant 0 : index
    %c0_114 = arith.constant 0 : index
    %367 = vector.load %arg1[%c0_113, %c0_114] : memref<16x1xi32, #tpu.memory_space<vmem>>, vector<16x1xi32>
    %368 = tpu.iota {dimensions = array<i32: 1>} : vector<16x128xi32>
    %369 = vector.broadcast %367 : vector<16x1xi32> to vector<16x128xi32>
    %370 = arith.cmpi eq, %368, %369 : vector<16x128xi32>
    %371 = arith.extui %370 : vector<16x128xi1> to vector<16x128xi32>
    %372 = arith.sitofp %371 : vector<16x128xi32> to vector<16x128xf32>
    %373 = arith.truncf %372 : vector<16x128xf32> to vector<16x128xbf16>
    %c10_115 = arith.constant 10 : index
    %c0_116 = arith.constant 0 : index
    %c0_117 = arith.constant 0 : index
    %374 = vector.load %arg3[%c10_115, %c0_116, %c0_117] : memref<11x128x32xbf16, #tpu.memory_space<vmem>>, vector<1x128x32xbf16>
    %375 = vector.shape_cast %374 : vector<1x128x32xbf16> to vector<128x32xbf16>
    %cst_118 = arith.constant dense<0.000000e+00> : vector<16x32xf32>
    %376 = tpu.matmul %373, %375, %cst_118 {dimension_numbers = #tpu.dot_dimension_numbers<[1], [0], [0], [1], [0, 0, 1, 1], [], []>} : vector<16x128xbf16>, vector<128x32xbf16>, vector<16x32xf32> -> vector<16x32xf32>
    %c2_119 = arith.constant 2 : index
    %c0_120 = arith.constant 0 : index
    %c0_121 = arith.constant 0 : index
    %377 = vector.load %arg0[%c2_119, %c0_120, %c0_121] : memref<6x16x32xf32, #tpu.memory_space<vmem>>, vector<1x16x32xf32>
    %378 = vector.shape_cast %377 : vector<1x16x32xf32> to vector<16x32xf32>
    %379 = arith.addf %376, %378 : vector<16x32xf32>
    %c2_122 = arith.constant 2 : index
    %c0_123 = arith.constant 0 : index
    %380 = vector.load %arg4[%c2_122, %c0_123] : memref<48x128xf32, #tpu.memory_space<vmem>>, vector<1x128xf32>
    %381 = vector.shape_cast %380 : vector<1x128xf32> to vector<128xf32>
    %382 = vector.extract_strided_slice %381 {offsets = [0], sizes = [32], strides = [1]} : vector<128xf32> to vector<32xf32>
    %383 = vector.shape_cast %382 : vector<32xf32> to vector<1x32xf32>
    %c3_124 = arith.constant 3 : index
    %c0_125 = arith.constant 0 : index
    %384 = vector.load %arg4[%c3_124, %c0_125] : memref<48x128xf32, #tpu.memory_space<vmem>>, vector<1x128xf32>
    %385 = vector.shape_cast %384 : vector<1x128xf32> to vector<128xf32>
    %386 = vector.extract_strided_slice %385 {offsets = [0], sizes = [32], strides = [1]} : vector<128xf32> to vector<32xf32>
    %387 = vector.shape_cast %386 : vector<32xf32> to vector<1x32xf32>
    %cst_126 = arith.constant dense<0.000000e+00> : vector<16xf32>
    %388 = vector.multi_reduction <add>, %379, %cst_126 [1] : vector<16x32xf32> to vector<16xf32>
    %389 = vector.shape_cast %388 : vector<16xf32> to vector<16x1xf32>
    %cst_127 = arith.constant 3.200000e+01 : f32
    %390 = vector.broadcast %cst_127 : f32 to vector<16x1xf32>
    %391 = arith.divf %389, %390 : vector<16x1xf32>
    %392 = vector.broadcast %391 : vector<16x1xf32> to vector<16x32xf32>
    %393 = arith.subf %379, %392 : vector<16x32xf32>
    %394 = arith.mulf %393, %393 : vector<16x32xf32>
    %cst_128 = arith.constant dense<0.000000e+00> : vector<16xf32>
    %395 = vector.multi_reduction <add>, %394, %cst_128 [1] : vector<16x32xf32> to vector<16xf32>
    %396 = vector.shape_cast %395 : vector<16xf32> to vector<16x1xf32>
    %cst_129 = arith.constant 3.200000e+01 : f32
    %397 = vector.broadcast %cst_129 : f32 to vector<16x1xf32>
    %398 = arith.divf %396, %397 : vector<16x1xf32>
    %399 = vector.broadcast %391 : vector<16x1xf32> to vector<16x32xf32>
    %400 = arith.subf %379, %399 : vector<16x32xf32>
    %cst_130 = arith.constant 9.99999997E-7 : f32
    %401 = vector.broadcast %cst_130 : f32 to vector<16x1xf32>
    %402 = arith.addf %398, %401 : vector<16x1xf32>
    %403 = math.rsqrt %402 : vector<16x1xf32>
    %404 = vector.broadcast %403 : vector<16x1xf32> to vector<16x32xf32>
    %405 = arith.mulf %400, %404 : vector<16x32xf32>
    %406 = vector.broadcast %383 : vector<1x32xf32> to vector<16x32xf32>
    %407 = arith.mulf %405, %406 : vector<16x32xf32>
    %408 = vector.broadcast %387 : vector<1x32xf32> to vector<16x32xf32>
    %409 = arith.addf %407, %408 : vector<16x32xf32>
    %410 = arith.truncf %366 : vector<16x32xf32> to vector<16x32xbf16>
    %c8_131 = arith.constant 8 : index
    %c0_132 = arith.constant 0 : index
    %c0_133 = arith.constant 0 : index
    %411 = vector.load %arg2[%c8_131, %c0_132, %c0_133] : memref<12x32x128xbf16, #tpu.memory_space<vmem>>, vector<1x32x128xbf16>
    %412 = vector.shape_cast %411 : vector<1x32x128xbf16> to vector<32x128xbf16>
    %cst_134 = arith.constant dense<0.000000e+00> : vector<16x128xf32>
    %413 = tpu.matmul %410, %412, %cst_134 {dimension_numbers = #tpu.dot_dimension_numbers<[1], [0], [0], [1], [0, 0, 1, 1], [], []>} : vector<16x32xbf16>, vector<32x128xbf16>, vector<16x128xf32> -> vector<16x128xf32>
    %c20 = arith.constant 20 : index
    %c0_135 = arith.constant 0 : index
    %414 = vector.load %arg4[%c20, %c0_135] : memref<48x128xf32, #tpu.memory_space<vmem>>, vector<1x128xf32>
    %415 = vector.shape_cast %414 : vector<1x128xf32> to vector<128xf32>
    %416 = vector.shape_cast %415 : vector<128xf32> to vector<1x128xf32>
    %417 = vector.broadcast %416 : vector<1x128xf32> to vector<16x128xf32>
    %418 = arith.addf %413, %417 : vector<16x128xf32>
    %c4_136 = arith.constant 4 : index
    %c0_137 = arith.constant 0 : index
    %c0_138 = arith.constant 0 : index
    %419 = vector.load %arg2[%c4_136, %c0_137, %c0_138] : memref<12x32x128xbf16, #tpu.memory_space<vmem>>, vector<1x32x128xbf16>
    %420 = vector.shape_cast %419 : vector<1x32x128xbf16> to vector<32x128xbf16>
    %421 = vector.extract_strided_slice %420 {offsets = [0, 0], sizes = [32, 96], strides = [1, 1]} : vector<32x128xbf16> to vector<32x96xbf16>
    %422 = arith.truncf %409 : vector<16x32xf32> to vector<16x32xbf16>
    %cst_139 = arith.constant dense<0.000000e+00> : vector<16x96xf32>
    %423 = tpu.matmul %422, %421, %cst_139 {dimension_numbers = #tpu.dot_dimension_numbers<[1], [0], [0], [1], [0, 0, 1, 1], [], []>} : vector<16x32xbf16>, vector<32x96xbf16>, vector<16x96xf32> -> vector<16x96xf32>
    %c22 = arith.constant 22 : index
    %c0_140 = arith.constant 0 : index
    %424 = vector.load %arg4[%c22, %c0_140] : memref<48x128xf32, #tpu.memory_space<vmem>>, vector<1x128xf32>
    %425 = vector.shape_cast %424 : vector<1x128xf32> to vector<128xf32>
    %426 = vector.extract_strided_slice %425 {offsets = [0], sizes = [96], strides = [1]} : vector<128xf32> to vector<96xf32>
    %427 = vector.shape_cast %426 : vector<96xf32> to vector<1x96xf32>
    %428 = vector.broadcast %427 : vector<1x96xf32> to vector<16x96xf32>
    %429 = arith.addf %423, %428 : vector<16x96xf32>
    %430 = vector.extract_strided_slice %429 {offsets = [0, 0], sizes = [16, 32], strides = [1, 1]} : vector<16x96xf32> to vector<16x32xf32>
    %431 = vector.extract_strided_slice %429 {offsets = [0, 32], sizes = [16, 32], strides = [1, 1]} : vector<16x96xf32> to vector<16x32xf32>
    %432 = vector.extract_strided_slice %429 {offsets = [0, 64], sizes = [16, 32], strides = [1, 1]} : vector<16x96xf32> to vector<16x32xf32>
    %c4_141 = arith.constant 4 : index
    %c0_142 = arith.constant 0 : index
    %c0_143 = arith.constant 0 : index
    %433 = vector.load %arg3[%c4_141, %c0_142, %c0_143] : memref<11x128x32xbf16, #tpu.memory_space<vmem>>, vector<1x128x32xbf16>
    %434 = vector.shape_cast %433 : vector<1x128x32xbf16> to vector<128x32xbf16>
    %c23 = arith.constant 23 : index
    %c0_144 = arith.constant 0 : index
    %435 = vector.load %arg4[%c23, %c0_144] : memref<48x128xf32, #tpu.memory_space<vmem>>, vector<1x128xf32>
    %436 = vector.shape_cast %435 : vector<1x128xf32> to vector<128xf32>
    %437 = vector.extract_strided_slice %436 {offsets = [0], sizes = [32], strides = [1]} : vector<128xf32> to vector<32xf32>
    %438 = vector.shape_cast %437 : vector<32xf32> to vector<1x32xf32>
    %cst_145 = arith.constant 0.000000e+00 : f32
    %439 = vector.broadcast %cst_145 : f32 to vector<16x32xf32>
    %440 = vector.extract_strided_slice %430 {offsets = [0, 0], sizes = [16, 16], strides = [1, 1]} : vector<16x32xf32> to vector<16x16xf32>
    %441 = arith.truncf %440 : vector<16x16xf32> to vector<16x16xbf16>
    %442 = vector.extract_strided_slice %431 {offsets = [0, 0], sizes = [16, 16], strides = [1, 1]} : vector<16x32xf32> to vector<16x16xf32>
    %443 = arith.truncf %442 : vector<16x16xf32> to vector<16x16xbf16>
    %444 = vector.extract_strided_slice %432 {offsets = [0, 0], sizes = [16, 16], strides = [1, 1]} : vector<16x32xf32> to vector<16x16xf32>
    %445 = arith.truncf %444 : vector<16x16xf32> to vector<16x16xbf16>
    %cst_146 = arith.constant dense<0.000000e+00> : vector<16x16xf32>
    %446 = tpu.matmul %441, %443, %cst_146 {dimension_numbers = #tpu.dot_dimension_numbers<[1], [1], [0], [0], [0, 0, 1, 0], [], []>} : vector<16x16xbf16>, vector<16x16xbf16>, vector<16x16xf32> -> vector<16x16xf32>
    %cst_147 = arith.constant 2.500000e-01 : f32
    %447 = vector.broadcast %cst_147 : f32 to vector<16x16xf32>
    %448 = arith.mulf %446, %447 : vector<16x16xf32>
    %449 = arith.addf %448, %5 : vector<16x16xf32>
    %cst_148 = arith.constant dense<0xFF800000> : vector<16xf32>
    %450 = vector.multi_reduction <maximumf>, %449, %cst_148 [1] : vector<16x16xf32> to vector<16xf32>
    %451 = vector.shape_cast %450 : vector<16xf32> to vector<16x1xf32>
    %452 = vector.broadcast %451 : vector<16x1xf32> to vector<16x16xf32>
    %453 = arith.subf %449, %452 : vector<16x16xf32>
    %454 = math.exp %453 : vector<16x16xf32>
    %cst_149 = arith.constant dense<0.000000e+00> : vector<16xf32>
    %455 = vector.multi_reduction <add>, %454, %cst_149 [1] : vector<16x16xf32> to vector<16xf32>
    %456 = vector.shape_cast %455 : vector<16xf32> to vector<16x1xf32>
    %457 = tpu.reciprocal %456 {approx = true} : vector<16x1xf32> -> vector<16x1xf32>
    %458 = vector.broadcast %457 : vector<16x1xf32> to vector<16x16xf32>
    %459 = arith.mulf %454, %458 : vector<16x16xf32>
    %460 = arith.truncf %459 : vector<16x16xf32> to vector<16x16xbf16>
    %cst_150 = arith.constant dense<0.000000e+00> : vector<16x16xf32>
    %461 = tpu.matmul %460, %445, %cst_150 {dimension_numbers = #tpu.dot_dimension_numbers<[1], [0], [0], [1], [0, 0, 1, 1], [], []>} : vector<16x16xbf16>, vector<16x16xbf16>, vector<16x16xf32> -> vector<16x16xf32>
    %462 = arith.truncf %461 : vector<16x16xf32> to vector<16x16xbf16>
    %463 = vector.extract_strided_slice %434 {offsets = [0, 0], sizes = [16, 32], strides = [1, 1]} : vector<128x32xbf16> to vector<16x32xbf16>
    %cst_151 = arith.constant dense<0.000000e+00> : vector<16x32xf32>
    %464 = tpu.matmul %462, %463, %cst_151 {dimension_numbers = #tpu.dot_dimension_numbers<[1], [0], [0], [1], [0, 0, 1, 1], [], []>} : vector<16x16xbf16>, vector<16x32xbf16>, vector<16x32xf32> -> vector<16x32xf32>
    %465 = arith.addf %439, %464 : vector<16x32xf32>
    %466 = vector.extract_strided_slice %430 {offsets = [0, 16], sizes = [16, 16], strides = [1, 1]} : vector<16x32xf32> to vector<16x16xf32>
    %467 = arith.truncf %466 : vector<16x16xf32> to vector<16x16xbf16>
    %468 = vector.extract_strided_slice %431 {offsets = [0, 16], sizes = [16, 16], strides = [1, 1]} : vector<16x32xf32> to vector<16x16xf32>
    %469 = arith.truncf %468 : vector<16x16xf32> to vector<16x16xbf16>
    %470 = vector.extract_strided_slice %432 {offsets = [0, 16], sizes = [16, 16], strides = [1, 1]} : vector<16x32xf32> to vector<16x16xf32>
    %471 = arith.truncf %470 : vector<16x16xf32> to vector<16x16xbf16>
    %cst_152 = arith.constant dense<0.000000e+00> : vector<16x16xf32>
    %472 = tpu.matmul %467, %469, %cst_152 {dimension_numbers = #tpu.dot_dimension_numbers<[1], [1], [0], [0], [0, 0, 1, 0], [], []>} : vector<16x16xbf16>, vector<16x16xbf16>, vector<16x16xf32> -> vector<16x16xf32>
    %cst_153 = arith.constant 2.500000e-01 : f32
    %473 = vector.broadcast %cst_153 : f32 to vector<16x16xf32>
    %474 = arith.mulf %472, %473 : vector<16x16xf32>
    %475 = arith.addf %474, %5 : vector<16x16xf32>
    %cst_154 = arith.constant dense<0xFF800000> : vector<16xf32>
    %476 = vector.multi_reduction <maximumf>, %475, %cst_154 [1] : vector<16x16xf32> to vector<16xf32>
    %477 = vector.shape_cast %476 : vector<16xf32> to vector<16x1xf32>
    %478 = vector.broadcast %477 : vector<16x1xf32> to vector<16x16xf32>
    %479 = arith.subf %475, %478 : vector<16x16xf32>
    %480 = math.exp %479 : vector<16x16xf32>
    %cst_155 = arith.constant dense<0.000000e+00> : vector<16xf32>
    %481 = vector.multi_reduction <add>, %480, %cst_155 [1] : vector<16x16xf32> to vector<16xf32>
    %482 = vector.shape_cast %481 : vector<16xf32> to vector<16x1xf32>
    %483 = tpu.reciprocal %482 {approx = true} : vector<16x1xf32> -> vector<16x1xf32>
    %484 = vector.broadcast %483 : vector<16x1xf32> to vector<16x16xf32>
    %485 = arith.mulf %480, %484 : vector<16x16xf32>
    %486 = arith.truncf %485 : vector<16x16xf32> to vector<16x16xbf16>
    %cst_156 = arith.constant dense<0.000000e+00> : vector<16x16xf32>
    %487 = tpu.matmul %486, %471, %cst_156 {dimension_numbers = #tpu.dot_dimension_numbers<[1], [0], [0], [1], [0, 0, 1, 1], [], []>} : vector<16x16xbf16>, vector<16x16xbf16>, vector<16x16xf32> -> vector<16x16xf32>
    %488 = arith.truncf %487 : vector<16x16xf32> to vector<16x16xbf16>
    %489 = vector.extract_strided_slice %434 {offsets = [16, 0], sizes = [16, 32], strides = [1, 1]} : vector<128x32xbf16> to vector<16x32xbf16>
    %cst_157 = arith.constant dense<0.000000e+00> : vector<16x32xf32>
    %490 = tpu.matmul %488, %489, %cst_157 {dimension_numbers = #tpu.dot_dimension_numbers<[1], [0], [0], [1], [0, 0, 1, 1], [], []>} : vector<16x16xbf16>, vector<16x32xbf16>, vector<16x32xf32> -> vector<16x32xf32>
    %491 = arith.addf %465, %490 : vector<16x32xf32>
    %492 = vector.broadcast %438 : vector<1x32xf32> to vector<16x32xf32>
    %493 = arith.addf %491, %492 : vector<16x32xf32>
    %494 = arith.addf %493, %409 : vector<16x32xf32>
    %c24 = arith.constant 24 : index
    %c0_158 = arith.constant 0 : index
    %495 = vector.load %arg4[%c24, %c0_158] : memref<48x128xf32, #tpu.memory_space<vmem>>, vector<1x128xf32>
    %496 = vector.shape_cast %495 : vector<1x128xf32> to vector<128xf32>
    %497 = vector.extract_strided_slice %496 {offsets = [0], sizes = [32], strides = [1]} : vector<128xf32> to vector<32xf32>
    %498 = vector.shape_cast %497 : vector<32xf32> to vector<1x32xf32>
    %c25 = arith.constant 25 : index
    %c0_159 = arith.constant 0 : index
    %499 = vector.load %arg4[%c25, %c0_159] : memref<48x128xf32, #tpu.memory_space<vmem>>, vector<1x128xf32>
    %500 = vector.shape_cast %499 : vector<1x128xf32> to vector<128xf32>
    %501 = vector.extract_strided_slice %500 {offsets = [0], sizes = [32], strides = [1]} : vector<128xf32> to vector<32xf32>
    %502 = vector.shape_cast %501 : vector<32xf32> to vector<1x32xf32>
    %cst_160 = arith.constant dense<0.000000e+00> : vector<16xf32>
    %503 = vector.multi_reduction <add>, %494, %cst_160 [1] : vector<16x32xf32> to vector<16xf32>
    %504 = vector.shape_cast %503 : vector<16xf32> to vector<16x1xf32>
    %cst_161 = arith.constant 3.200000e+01 : f32
    %505 = vector.broadcast %cst_161 : f32 to vector<16x1xf32>
    %506 = arith.divf %504, %505 : vector<16x1xf32>
    %507 = vector.broadcast %506 : vector<16x1xf32> to vector<16x32xf32>
    %508 = arith.subf %494, %507 : vector<16x32xf32>
    %509 = arith.mulf %508, %508 : vector<16x32xf32>
    %cst_162 = arith.constant dense<0.000000e+00> : vector<16xf32>
    %510 = vector.multi_reduction <add>, %509, %cst_162 [1] : vector<16x32xf32> to vector<16xf32>
    %511 = vector.shape_cast %510 : vector<16xf32> to vector<16x1xf32>
    %cst_163 = arith.constant 3.200000e+01 : f32
    %512 = vector.broadcast %cst_163 : f32 to vector<16x1xf32>
    %513 = arith.divf %511, %512 : vector<16x1xf32>
    %514 = vector.broadcast %506 : vector<16x1xf32> to vector<16x32xf32>
    %515 = arith.subf %494, %514 : vector<16x32xf32>
    %cst_164 = arith.constant 9.99999997E-7 : f32
    %516 = vector.broadcast %cst_164 : f32 to vector<16x1xf32>
    %517 = arith.addf %513, %516 : vector<16x1xf32>
    %518 = math.rsqrt %517 : vector<16x1xf32>
    %519 = vector.broadcast %518 : vector<16x1xf32> to vector<16x32xf32>
    %520 = arith.mulf %515, %519 : vector<16x32xf32>
    %521 = vector.broadcast %498 : vector<1x32xf32> to vector<16x32xf32>
    %522 = arith.mulf %520, %521 : vector<16x32xf32>
    %523 = vector.broadcast %502 : vector<1x32xf32> to vector<16x32xf32>
    %524 = arith.addf %522, %523 : vector<16x32xf32>
    %c6_165 = arith.constant 6 : index
    %c0_166 = arith.constant 0 : index
    %c0_167 = arith.constant 0 : index
    %525 = vector.load %arg2[%c6_165, %c0_166, %c0_167] : memref<12x32x128xbf16, #tpu.memory_space<vmem>>, vector<1x32x128xbf16>
    %526 = vector.shape_cast %525 : vector<1x32x128xbf16> to vector<32x128xbf16>
    %527 = vector.extract_strided_slice %526 {offsets = [0, 0], sizes = [32, 32], strides = [1, 1]} : vector<32x128xbf16> to vector<32x32xbf16>
    %528 = arith.truncf %524 : vector<16x32xf32> to vector<16x32xbf16>
    %cst_168 = arith.constant dense<0.000000e+00> : vector<16x32xf32>
    %529 = tpu.matmul %528, %527, %cst_168 {dimension_numbers = #tpu.dot_dimension_numbers<[1], [0], [0], [1], [0, 0, 1, 1], [], []>} : vector<16x32xbf16>, vector<32x32xbf16>, vector<16x32xf32> -> vector<16x32xf32>
    %c26 = arith.constant 26 : index
    %c0_169 = arith.constant 0 : index
    %530 = vector.load %arg4[%c26, %c0_169] : memref<48x128xf32, #tpu.memory_space<vmem>>, vector<1x128xf32>
    %531 = vector.shape_cast %530 : vector<1x128xf32> to vector<128xf32>
    %532 = vector.extract_strided_slice %531 {offsets = [0], sizes = [32], strides = [1]} : vector<128xf32> to vector<32xf32>
    %533 = vector.shape_cast %532 : vector<32xf32> to vector<1x32xf32>
    %534 = vector.broadcast %533 : vector<1x32xf32> to vector<16x32xf32>
    %535 = arith.addf %529, %534 : vector<16x32xf32>
    %536 = vector.extract_strided_slice %418 {offsets = [0, 0], sizes = [16, 64], strides = [1, 1]} : vector<16x128xf32> to vector<16x64xf32>
    %537 = vector.extract_strided_slice %536 {offsets = [0, 0], sizes = [16, 32], strides = [1, 1]} : vector<16x64xf32> to vector<16x32xf32>
    %538 = vector.extract_strided_slice %536 {offsets = [0, 32], sizes = [16, 32], strides = [1, 1]} : vector<16x64xf32> to vector<16x32xf32>
    %c6_170 = arith.constant 6 : index
    %c0_171 = arith.constant 0 : index
    %c0_172 = arith.constant 0 : index
    %539 = vector.load %arg3[%c6_170, %c0_171, %c0_172] : memref<11x128x32xbf16, #tpu.memory_space<vmem>>, vector<1x128x32xbf16>
    %540 = vector.shape_cast %539 : vector<1x128x32xbf16> to vector<128x32xbf16>
    %c27 = arith.constant 27 : index
    %c0_173 = arith.constant 0 : index
    %541 = vector.load %arg4[%c27, %c0_173] : memref<48x128xf32, #tpu.memory_space<vmem>>, vector<1x128xf32>
    %542 = vector.shape_cast %541 : vector<1x128xf32> to vector<128xf32>
    %543 = vector.extract_strided_slice %542 {offsets = [0], sizes = [32], strides = [1]} : vector<128xf32> to vector<32xf32>
    %544 = vector.shape_cast %543 : vector<32xf32> to vector<1x32xf32>
    %cst_174 = arith.constant 0.000000e+00 : f32
    %545 = vector.broadcast %cst_174 : f32 to vector<16x32xf32>
    %546 = vector.extract_strided_slice %535 {offsets = [0, 0], sizes = [16, 16], strides = [1, 1]} : vector<16x32xf32> to vector<16x16xf32>
    %547 = arith.truncf %546 : vector<16x16xf32> to vector<16x16xbf16>
    %548 = vector.extract_strided_slice %537 {offsets = [0, 0], sizes = [16, 16], strides = [1, 1]} : vector<16x32xf32> to vector<16x16xf32>
    %549 = arith.truncf %548 : vector<16x16xf32> to vector<16x16xbf16>
    %550 = vector.extract_strided_slice %538 {offsets = [0, 0], sizes = [16, 16], strides = [1, 1]} : vector<16x32xf32> to vector<16x16xf32>
    %551 = arith.truncf %550 : vector<16x16xf32> to vector<16x16xbf16>
    %cst_175 = arith.constant dense<0.000000e+00> : vector<16x16xf32>
    %552 = tpu.matmul %547, %549, %cst_175 {dimension_numbers = #tpu.dot_dimension_numbers<[1], [1], [0], [0], [0, 0, 1, 0], [], []>} : vector<16x16xbf16>, vector<16x16xbf16>, vector<16x16xf32> -> vector<16x16xf32>
    %cst_176 = arith.constant 2.500000e-01 : f32
    %553 = vector.broadcast %cst_176 : f32 to vector<16x16xf32>
    %554 = arith.mulf %552, %553 : vector<16x16xf32>
    %555 = arith.addf %554, %8 : vector<16x16xf32>
    %cst_177 = arith.constant dense<0xFF800000> : vector<16xf32>
    %556 = vector.multi_reduction <maximumf>, %555, %cst_177 [1] : vector<16x16xf32> to vector<16xf32>
    %557 = vector.shape_cast %556 : vector<16xf32> to vector<16x1xf32>
    %558 = vector.broadcast %557 : vector<16x1xf32> to vector<16x16xf32>
    %559 = arith.subf %555, %558 : vector<16x16xf32>
    %560 = math.exp %559 : vector<16x16xf32>
    %cst_178 = arith.constant dense<0.000000e+00> : vector<16xf32>
    %561 = vector.multi_reduction <add>, %560, %cst_178 [1] : vector<16x16xf32> to vector<16xf32>
    %562 = vector.shape_cast %561 : vector<16xf32> to vector<16x1xf32>
    %563 = tpu.reciprocal %562 {approx = true} : vector<16x1xf32> -> vector<16x1xf32>
    %564 = vector.broadcast %563 : vector<16x1xf32> to vector<16x16xf32>
    %565 = arith.mulf %560, %564 : vector<16x16xf32>
    %566 = arith.truncf %565 : vector<16x16xf32> to vector<16x16xbf16>
    %cst_179 = arith.constant dense<0.000000e+00> : vector<16x16xf32>
    %567 = tpu.matmul %566, %551, %cst_179 {dimension_numbers = #tpu.dot_dimension_numbers<[1], [0], [0], [1], [0, 0, 1, 1], [], []>} : vector<16x16xbf16>, vector<16x16xbf16>, vector<16x16xf32> -> vector<16x16xf32>
    %568 = arith.truncf %567 : vector<16x16xf32> to vector<16x16xbf16>
    %569 = vector.extract_strided_slice %540 {offsets = [0, 0], sizes = [16, 32], strides = [1, 1]} : vector<128x32xbf16> to vector<16x32xbf16>
    %cst_180 = arith.constant dense<0.000000e+00> : vector<16x32xf32>
    %570 = tpu.matmul %568, %569, %cst_180 {dimension_numbers = #tpu.dot_dimension_numbers<[1], [0], [0], [1], [0, 0, 1, 1], [], []>} : vector<16x16xbf16>, vector<16x32xbf16>, vector<16x32xf32> -> vector<16x32xf32>
    %571 = arith.addf %545, %570 : vector<16x32xf32>
    %572 = vector.extract_strided_slice %535 {offsets = [0, 16], sizes = [16, 16], strides = [1, 1]} : vector<16x32xf32> to vector<16x16xf32>
    %573 = arith.truncf %572 : vector<16x16xf32> to vector<16x16xbf16>
    %574 = vector.extract_strided_slice %537 {offsets = [0, 16], sizes = [16, 16], strides = [1, 1]} : vector<16x32xf32> to vector<16x16xf32>
    %575 = arith.truncf %574 : vector<16x16xf32> to vector<16x16xbf16>
    %576 = vector.extract_strided_slice %538 {offsets = [0, 16], sizes = [16, 16], strides = [1, 1]} : vector<16x32xf32> to vector<16x16xf32>
    %577 = arith.truncf %576 : vector<16x16xf32> to vector<16x16xbf16>
    %cst_181 = arith.constant dense<0.000000e+00> : vector<16x16xf32>
    %578 = tpu.matmul %573, %575, %cst_181 {dimension_numbers = #tpu.dot_dimension_numbers<[1], [1], [0], [0], [0, 0, 1, 0], [], []>} : vector<16x16xbf16>, vector<16x16xbf16>, vector<16x16xf32> -> vector<16x16xf32>
    %cst_182 = arith.constant 2.500000e-01 : f32
    %579 = vector.broadcast %cst_182 : f32 to vector<16x16xf32>
    %580 = arith.mulf %578, %579 : vector<16x16xf32>
    %581 = arith.addf %580, %8 : vector<16x16xf32>
    %cst_183 = arith.constant dense<0xFF800000> : vector<16xf32>
    %582 = vector.multi_reduction <maximumf>, %581, %cst_183 [1] : vector<16x16xf32> to vector<16xf32>
    %583 = vector.shape_cast %582 : vector<16xf32> to vector<16x1xf32>
    %584 = vector.broadcast %583 : vector<16x1xf32> to vector<16x16xf32>
    %585 = arith.subf %581, %584 : vector<16x16xf32>
    %586 = math.exp %585 : vector<16x16xf32>
    %cst_184 = arith.constant dense<0.000000e+00> : vector<16xf32>
    %587 = vector.multi_reduction <add>, %586, %cst_184 [1] : vector<16x16xf32> to vector<16xf32>
    %588 = vector.shape_cast %587 : vector<16xf32> to vector<16x1xf32>
    %589 = tpu.reciprocal %588 {approx = true} : vector<16x1xf32> -> vector<16x1xf32>
    %590 = vector.broadcast %589 : vector<16x1xf32> to vector<16x16xf32>
    %591 = arith.mulf %586, %590 : vector<16x16xf32>
    %592 = arith.truncf %591 : vector<16x16xf32> to vector<16x16xbf16>
    %cst_185 = arith.constant dense<0.000000e+00> : vector<16x16xf32>
    %593 = tpu.matmul %592, %577, %cst_185 {dimension_numbers = #tpu.dot_dimension_numbers<[1], [0], [0], [1], [0, 0, 1, 1], [], []>} : vector<16x16xbf16>, vector<16x16xbf16>, vector<16x16xf32> -> vector<16x16xf32>
    %594 = arith.truncf %593 : vector<16x16xf32> to vector<16x16xbf16>
    %595 = vector.extract_strided_slice %540 {offsets = [16, 0], sizes = [16, 32], strides = [1, 1]} : vector<128x32xbf16> to vector<16x32xbf16>
    %cst_186 = arith.constant dense<0.000000e+00> : vector<16x32xf32>
    %596 = tpu.matmul %594, %595, %cst_186 {dimension_numbers = #tpu.dot_dimension_numbers<[1], [0], [0], [1], [0, 0, 1, 1], [], []>} : vector<16x16xbf16>, vector<16x32xbf16>, vector<16x32xf32> -> vector<16x32xf32>
    %597 = arith.addf %571, %596 : vector<16x32xf32>
    %598 = vector.broadcast %544 : vector<1x32xf32> to vector<16x32xf32>
    %599 = arith.addf %597, %598 : vector<16x32xf32>
    %600 = arith.addf %599, %524 : vector<16x32xf32>
    %c28 = arith.constant 28 : index
    %c0_187 = arith.constant 0 : index
    %601 = vector.load %arg4[%c28, %c0_187] : memref<48x128xf32, #tpu.memory_space<vmem>>, vector<1x128xf32>
    %602 = vector.shape_cast %601 : vector<1x128xf32> to vector<128xf32>
    %603 = vector.extract_strided_slice %602 {offsets = [0], sizes = [32], strides = [1]} : vector<128xf32> to vector<32xf32>
    %604 = vector.shape_cast %603 : vector<32xf32> to vector<1x32xf32>
    %c29 = arith.constant 29 : index
    %c0_188 = arith.constant 0 : index
    %605 = vector.load %arg4[%c29, %c0_188] : memref<48x128xf32, #tpu.memory_space<vmem>>, vector<1x128xf32>
    %606 = vector.shape_cast %605 : vector<1x128xf32> to vector<128xf32>
    %607 = vector.extract_strided_slice %606 {offsets = [0], sizes = [32], strides = [1]} : vector<128xf32> to vector<32xf32>
    %608 = vector.shape_cast %607 : vector<32xf32> to vector<1x32xf32>
    %cst_189 = arith.constant dense<0.000000e+00> : vector<16xf32>
    %609 = vector.multi_reduction <add>, %600, %cst_189 [1] : vector<16x32xf32> to vector<16xf32>
    %610 = vector.shape_cast %609 : vector<16xf32> to vector<16x1xf32>
    %cst_190 = arith.constant 3.200000e+01 : f32
    %611 = vector.broadcast %cst_190 : f32 to vector<16x1xf32>
    %612 = arith.divf %610, %611 : vector<16x1xf32>
    %613 = vector.broadcast %612 : vector<16x1xf32> to vector<16x32xf32>
    %614 = arith.subf %600, %613 : vector<16x32xf32>
    %615 = arith.mulf %614, %614 : vector<16x32xf32>
    %cst_191 = arith.constant dense<0.000000e+00> : vector<16xf32>
    %616 = vector.multi_reduction <add>, %615, %cst_191 [1] : vector<16x32xf32> to vector<16xf32>
    %617 = vector.shape_cast %616 : vector<16xf32> to vector<16x1xf32>
    %cst_192 = arith.constant 3.200000e+01 : f32
    %618 = vector.broadcast %cst_192 : f32 to vector<16x1xf32>
    %619 = arith.divf %617, %618 : vector<16x1xf32>
    %620 = vector.broadcast %612 : vector<16x1xf32> to vector<16x32xf32>
    %621 = arith.subf %600, %620 : vector<16x32xf32>
    %cst_193 = arith.constant 9.99999997E-7 : f32
    %622 = vector.broadcast %cst_193 : f32 to vector<16x1xf32>
    %623 = arith.addf %619, %622 : vector<16x1xf32>
    %624 = math.rsqrt %623 : vector<16x1xf32>
    %625 = vector.broadcast %624 : vector<16x1xf32> to vector<16x32xf32>
    %626 = arith.mulf %621, %625 : vector<16x32xf32>
    %627 = vector.broadcast %604 : vector<1x32xf32> to vector<16x32xf32>
    %628 = arith.mulf %626, %627 : vector<16x32xf32>
    %629 = vector.broadcast %608 : vector<1x32xf32> to vector<16x32xf32>
    %630 = arith.addf %628, %629 : vector<16x32xf32>
    %c9_194 = arith.constant 9 : index
    %c0_195 = arith.constant 0 : index
    %c0_196 = arith.constant 0 : index
    %631 = vector.load %arg2[%c9_194, %c0_195, %c0_196] : memref<12x32x128xbf16, #tpu.memory_space<vmem>>, vector<1x32x128xbf16>
    %632 = vector.shape_cast %631 : vector<1x32x128xbf16> to vector<32x128xbf16>
    %633 = vector.extract_strided_slice %632 {offsets = [0, 0], sizes = [32, 64], strides = [1, 1]} : vector<32x128xbf16> to vector<32x64xbf16>
    %634 = arith.truncf %630 : vector<16x32xf32> to vector<16x32xbf16>
    %cst_197 = arith.constant dense<0.000000e+00> : vector<16x64xf32>
    %635 = tpu.matmul %634, %633, %cst_197 {dimension_numbers = #tpu.dot_dimension_numbers<[1], [0], [0], [1], [0, 0, 1, 1], [], []>} : vector<16x32xbf16>, vector<32x64xbf16>, vector<16x64xf32> -> vector<16x64xf32>
    %c30 = arith.constant 30 : index
    %c0_198 = arith.constant 0 : index
    %636 = vector.load %arg4[%c30, %c0_198] : memref<48x128xf32, #tpu.memory_space<vmem>>, vector<1x128xf32>
    %637 = vector.shape_cast %636 : vector<1x128xf32> to vector<128xf32>
    %638 = vector.extract_strided_slice %637 {offsets = [0], sizes = [64], strides = [1]} : vector<128xf32> to vector<64xf32>
    %639 = vector.shape_cast %638 : vector<64xf32> to vector<1x64xf32>
    %640 = vector.broadcast %639 : vector<1x64xf32> to vector<16x64xf32>
    %641 = arith.addf %635, %640 : vector<16x64xf32>
    %cst_199 = arith.constant 0.000000e+00 : f32
    %642 = vector.broadcast %cst_199 : f32 to vector<16x64xf32>
    %643 = arith.maximumf %641, %642 : vector<16x64xf32>
    %c8_200 = arith.constant 8 : index
    %c0_201 = arith.constant 0 : index
    %c0_202 = arith.constant 0 : index
    %644 = vector.load %arg3[%c8_200, %c0_201, %c0_202] : memref<11x128x32xbf16, #tpu.memory_space<vmem>>, vector<1x128x32xbf16>
    %645 = vector.shape_cast %644 : vector<1x128x32xbf16> to vector<128x32xbf16>
    %646 = vector.extract_strided_slice %645 {offsets = [0, 0], sizes = [64, 32], strides = [1, 1]} : vector<128x32xbf16> to vector<64x32xbf16>
    %647 = arith.truncf %643 : vector<16x64xf32> to vector<16x64xbf16>
    %cst_203 = arith.constant dense<0.000000e+00> : vector<16x32xf32>
    %648 = tpu.matmul %647, %646, %cst_203 {dimension_numbers = #tpu.dot_dimension_numbers<[1], [0], [0], [1], [0, 0, 1, 1], [], []>} : vector<16x64xbf16>, vector<64x32xbf16>, vector<16x32xf32> -> vector<16x32xf32>
    %c31 = arith.constant 31 : index
    %c0_204 = arith.constant 0 : index
    %649 = vector.load %arg4[%c31, %c0_204] : memref<48x128xf32, #tpu.memory_space<vmem>>, vector<1x128xf32>
    %650 = vector.shape_cast %649 : vector<1x128xf32> to vector<128xf32>
    %651 = vector.extract_strided_slice %650 {offsets = [0], sizes = [32], strides = [1]} : vector<128xf32> to vector<32xf32>
    %652 = vector.shape_cast %651 : vector<32xf32> to vector<1x32xf32>
    %653 = vector.broadcast %652 : vector<1x32xf32> to vector<16x32xf32>
    %654 = arith.addf %648, %653 : vector<16x32xf32>
    %655 = arith.addf %654, %630 : vector<16x32xf32>
    %c32 = arith.constant 32 : index
    %c0_205 = arith.constant 0 : index
    %656 = vector.load %arg4[%c32, %c0_205] : memref<48x128xf32, #tpu.memory_space<vmem>>, vector<1x128xf32>
    %657 = vector.shape_cast %656 : vector<1x128xf32> to vector<128xf32>
    %658 = vector.extract_strided_slice %657 {offsets = [0], sizes = [32], strides = [1]} : vector<128xf32> to vector<32xf32>
    %659 = vector.shape_cast %658 : vector<32xf32> to vector<1x32xf32>
    %c33 = arith.constant 33 : index
    %c0_206 = arith.constant 0 : index
    %660 = vector.load %arg4[%c33, %c0_206] : memref<48x128xf32, #tpu.memory_space<vmem>>, vector<1x128xf32>
    %661 = vector.shape_cast %660 : vector<1x128xf32> to vector<128xf32>
    %662 = vector.extract_strided_slice %661 {offsets = [0], sizes = [32], strides = [1]} : vector<128xf32> to vector<32xf32>
    %663 = vector.shape_cast %662 : vector<32xf32> to vector<1x32xf32>
    %cst_207 = arith.constant dense<0.000000e+00> : vector<16xf32>
    %664 = vector.multi_reduction <add>, %655, %cst_207 [1] : vector<16x32xf32> to vector<16xf32>
    %665 = vector.shape_cast %664 : vector<16xf32> to vector<16x1xf32>
    %cst_208 = arith.constant 3.200000e+01 : f32
    %666 = vector.broadcast %cst_208 : f32 to vector<16x1xf32>
    %667 = arith.divf %665, %666 : vector<16x1xf32>
    %668 = vector.broadcast %667 : vector<16x1xf32> to vector<16x32xf32>
    %669 = arith.subf %655, %668 : vector<16x32xf32>
    %670 = arith.mulf %669, %669 : vector<16x32xf32>
    %cst_209 = arith.constant dense<0.000000e+00> : vector<16xf32>
    %671 = vector.multi_reduction <add>, %670, %cst_209 [1] : vector<16x32xf32> to vector<16xf32>
    %672 = vector.shape_cast %671 : vector<16xf32> to vector<16x1xf32>
    %cst_210 = arith.constant 3.200000e+01 : f32
    %673 = vector.broadcast %cst_210 : f32 to vector<16x1xf32>
    %674 = arith.divf %672, %673 : vector<16x1xf32>
    %675 = vector.broadcast %667 : vector<16x1xf32> to vector<16x32xf32>
    %676 = arith.subf %655, %675 : vector<16x32xf32>
    %cst_211 = arith.constant 9.99999997E-7 : f32
    %677 = vector.broadcast %cst_211 : f32 to vector<16x1xf32>
    %678 = arith.addf %674, %677 : vector<16x1xf32>
    %679 = math.rsqrt %678 : vector<16x1xf32>
    %680 = vector.broadcast %679 : vector<16x1xf32> to vector<16x32xf32>
    %681 = arith.mulf %676, %680 : vector<16x32xf32>
    %682 = vector.broadcast %659 : vector<1x32xf32> to vector<16x32xf32>
    %683 = arith.mulf %681, %682 : vector<16x32xf32>
    %684 = vector.broadcast %663 : vector<1x32xf32> to vector<16x32xf32>
    %685 = arith.addf %683, %684 : vector<16x32xf32>
    %c5_212 = arith.constant 5 : index
    %c0_213 = arith.constant 0 : index
    %c0_214 = arith.constant 0 : index
    %686 = vector.load %arg2[%c5_212, %c0_213, %c0_214] : memref<12x32x128xbf16, #tpu.memory_space<vmem>>, vector<1x32x128xbf16>
    %687 = vector.shape_cast %686 : vector<1x32x128xbf16> to vector<32x128xbf16>
    %688 = vector.extract_strided_slice %687 {offsets = [0, 0], sizes = [32, 96], strides = [1, 1]} : vector<32x128xbf16> to vector<32x96xbf16>
    %689 = arith.truncf %685 : vector<16x32xf32> to vector<16x32xbf16>
    %cst_215 = arith.constant dense<0.000000e+00> : vector<16x96xf32>
    %690 = tpu.matmul %689, %688, %cst_215 {dimension_numbers = #tpu.dot_dimension_numbers<[1], [0], [0], [1], [0, 0, 1, 1], [], []>} : vector<16x32xbf16>, vector<32x96xbf16>, vector<16x96xf32> -> vector<16x96xf32>
    %c34 = arith.constant 34 : index
    %c0_216 = arith.constant 0 : index
    %691 = vector.load %arg4[%c34, %c0_216] : memref<48x128xf32, #tpu.memory_space<vmem>>, vector<1x128xf32>
    %692 = vector.shape_cast %691 : vector<1x128xf32> to vector<128xf32>
    %693 = vector.extract_strided_slice %692 {offsets = [0], sizes = [96], strides = [1]} : vector<128xf32> to vector<96xf32>
    %694 = vector.shape_cast %693 : vector<96xf32> to vector<1x96xf32>
    %695 = vector.broadcast %694 : vector<1x96xf32> to vector<16x96xf32>
    %696 = arith.addf %690, %695 : vector<16x96xf32>
    %697 = vector.extract_strided_slice %696 {offsets = [0, 0], sizes = [16, 32], strides = [1, 1]} : vector<16x96xf32> to vector<16x32xf32>
    %698 = vector.extract_strided_slice %696 {offsets = [0, 32], sizes = [16, 32], strides = [1, 1]} : vector<16x96xf32> to vector<16x32xf32>
    %699 = vector.extract_strided_slice %696 {offsets = [0, 64], sizes = [16, 32], strides = [1, 1]} : vector<16x96xf32> to vector<16x32xf32>
    %c5_217 = arith.constant 5 : index
    %c0_218 = arith.constant 0 : index
    %c0_219 = arith.constant 0 : index
    %700 = vector.load %arg3[%c5_217, %c0_218, %c0_219] : memref<11x128x32xbf16, #tpu.memory_space<vmem>>, vector<1x128x32xbf16>
    %701 = vector.shape_cast %700 : vector<1x128x32xbf16> to vector<128x32xbf16>
    %c35 = arith.constant 35 : index
    %c0_220 = arith.constant 0 : index
    %702 = vector.load %arg4[%c35, %c0_220] : memref<48x128xf32, #tpu.memory_space<vmem>>, vector<1x128xf32>
    %703 = vector.shape_cast %702 : vector<1x128xf32> to vector<128xf32>
    %704 = vector.extract_strided_slice %703 {offsets = [0], sizes = [32], strides = [1]} : vector<128xf32> to vector<32xf32>
    %705 = vector.shape_cast %704 : vector<32xf32> to vector<1x32xf32>
    %cst_221 = arith.constant 0.000000e+00 : f32
    %706 = vector.broadcast %cst_221 : f32 to vector<16x32xf32>
    %707 = vector.extract_strided_slice %697 {offsets = [0, 0], sizes = [16, 16], strides = [1, 1]} : vector<16x32xf32> to vector<16x16xf32>
    %708 = arith.truncf %707 : vector<16x16xf32> to vector<16x16xbf16>
    %709 = vector.extract_strided_slice %698 {offsets = [0, 0], sizes = [16, 16], strides = [1, 1]} : vector<16x32xf32> to vector<16x16xf32>
    %710 = arith.truncf %709 : vector<16x16xf32> to vector<16x16xbf16>
    %711 = vector.extract_strided_slice %699 {offsets = [0, 0], sizes = [16, 16], strides = [1, 1]} : vector<16x32xf32> to vector<16x16xf32>
    %712 = arith.truncf %711 : vector<16x16xf32> to vector<16x16xbf16>
    %cst_222 = arith.constant dense<0.000000e+00> : vector<16x16xf32>
    %713 = tpu.matmul %708, %710, %cst_222 {dimension_numbers = #tpu.dot_dimension_numbers<[1], [1], [0], [0], [0, 0, 1, 0], [], []>} : vector<16x16xbf16>, vector<16x16xbf16>, vector<16x16xf32> -> vector<16x16xf32>
    %cst_223 = arith.constant 2.500000e-01 : f32
    %714 = vector.broadcast %cst_223 : f32 to vector<16x16xf32>
    %715 = arith.mulf %713, %714 : vector<16x16xf32>
    %716 = arith.addf %715, %5 : vector<16x16xf32>
    %cst_224 = arith.constant dense<0xFF800000> : vector<16xf32>
    %717 = vector.multi_reduction <maximumf>, %716, %cst_224 [1] : vector<16x16xf32> to vector<16xf32>
    %718 = vector.shape_cast %717 : vector<16xf32> to vector<16x1xf32>
    %719 = vector.broadcast %718 : vector<16x1xf32> to vector<16x16xf32>
    %720 = arith.subf %716, %719 : vector<16x16xf32>
    %721 = math.exp %720 : vector<16x16xf32>
    %cst_225 = arith.constant dense<0.000000e+00> : vector<16xf32>
    %722 = vector.multi_reduction <add>, %721, %cst_225 [1] : vector<16x16xf32> to vector<16xf32>
    %723 = vector.shape_cast %722 : vector<16xf32> to vector<16x1xf32>
    %724 = tpu.reciprocal %723 {approx = true} : vector<16x1xf32> -> vector<16x1xf32>
    %725 = vector.broadcast %724 : vector<16x1xf32> to vector<16x16xf32>
    %726 = arith.mulf %721, %725 : vector<16x16xf32>
    %727 = arith.truncf %726 : vector<16x16xf32> to vector<16x16xbf16>
    %cst_226 = arith.constant dense<0.000000e+00> : vector<16x16xf32>
    %728 = tpu.matmul %727, %712, %cst_226 {dimension_numbers = #tpu.dot_dimension_numbers<[1], [0], [0], [1], [0, 0, 1, 1], [], []>} : vector<16x16xbf16>, vector<16x16xbf16>, vector<16x16xf32> -> vector<16x16xf32>
    %729 = arith.truncf %728 : vector<16x16xf32> to vector<16x16xbf16>
    %730 = vector.extract_strided_slice %701 {offsets = [0, 0], sizes = [16, 32], strides = [1, 1]} : vector<128x32xbf16> to vector<16x32xbf16>
    %cst_227 = arith.constant dense<0.000000e+00> : vector<16x32xf32>
    %731 = tpu.matmul %729, %730, %cst_227 {dimension_numbers = #tpu.dot_dimension_numbers<[1], [0], [0], [1], [0, 0, 1, 1], [], []>} : vector<16x16xbf16>, vector<16x32xbf16>, vector<16x32xf32> -> vector<16x32xf32>
    %732 = arith.addf %706, %731 : vector<16x32xf32>
    %733 = vector.extract_strided_slice %697 {offsets = [0, 16], sizes = [16, 16], strides = [1, 1]} : vector<16x32xf32> to vector<16x16xf32>
    %734 = arith.truncf %733 : vector<16x16xf32> to vector<16x16xbf16>
    %735 = vector.extract_strided_slice %698 {offsets = [0, 16], sizes = [16, 16], strides = [1, 1]} : vector<16x32xf32> to vector<16x16xf32>
    %736 = arith.truncf %735 : vector<16x16xf32> to vector<16x16xbf16>
    %737 = vector.extract_strided_slice %699 {offsets = [0, 16], sizes = [16, 16], strides = [1, 1]} : vector<16x32xf32> to vector<16x16xf32>
    %738 = arith.truncf %737 : vector<16x16xf32> to vector<16x16xbf16>
    %cst_228 = arith.constant dense<0.000000e+00> : vector<16x16xf32>
    %739 = tpu.matmul %734, %736, %cst_228 {dimension_numbers = #tpu.dot_dimension_numbers<[1], [1], [0], [0], [0, 0, 1, 0], [], []>} : vector<16x16xbf16>, vector<16x16xbf16>, vector<16x16xf32> -> vector<16x16xf32>
    %cst_229 = arith.constant 2.500000e-01 : f32
    %740 = vector.broadcast %cst_229 : f32 to vector<16x16xf32>
    %741 = arith.mulf %739, %740 : vector<16x16xf32>
    %742 = arith.addf %741, %5 : vector<16x16xf32>
    %cst_230 = arith.constant dense<0xFF800000> : vector<16xf32>
    %743 = vector.multi_reduction <maximumf>, %742, %cst_230 [1] : vector<16x16xf32> to vector<16xf32>
    %744 = vector.shape_cast %743 : vector<16xf32> to vector<16x1xf32>
    %745 = vector.broadcast %744 : vector<16x1xf32> to vector<16x16xf32>
    %746 = arith.subf %742, %745 : vector<16x16xf32>
    %747 = math.exp %746 : vector<16x16xf32>
    %cst_231 = arith.constant dense<0.000000e+00> : vector<16xf32>
    %748 = vector.multi_reduction <add>, %747, %cst_231 [1] : vector<16x16xf32> to vector<16xf32>
    %749 = vector.shape_cast %748 : vector<16xf32> to vector<16x1xf32>
    %750 = tpu.reciprocal %749 {approx = true} : vector<16x1xf32> -> vector<16x1xf32>
    %751 = vector.broadcast %750 : vector<16x1xf32> to vector<16x16xf32>
    %752 = arith.mulf %747, %751 : vector<16x16xf32>
    %753 = arith.truncf %752 : vector<16x16xf32> to vector<16x16xbf16>
    %cst_232 = arith.constant dense<0.000000e+00> : vector<16x16xf32>
    %754 = tpu.matmul %753, %738, %cst_232 {dimension_numbers = #tpu.dot_dimension_numbers<[1], [0], [0], [1], [0, 0, 1, 1], [], []>} : vector<16x16xbf16>, vector<16x16xbf16>, vector<16x16xf32> -> vector<16x16xf32>
    %755 = arith.truncf %754 : vector<16x16xf32> to vector<16x16xbf16>
    %756 = vector.extract_strided_slice %701 {offsets = [16, 0], sizes = [16, 32], strides = [1, 1]} : vector<128x32xbf16> to vector<16x32xbf16>
    %cst_233 = arith.constant dense<0.000000e+00> : vector<16x32xf32>
    %757 = tpu.matmul %755, %756, %cst_233 {dimension_numbers = #tpu.dot_dimension_numbers<[1], [0], [0], [1], [0, 0, 1, 1], [], []>} : vector<16x16xbf16>, vector<16x32xbf16>, vector<16x32xf32> -> vector<16x32xf32>
    %758 = arith.addf %732, %757 : vector<16x32xf32>
    %759 = vector.broadcast %705 : vector<1x32xf32> to vector<16x32xf32>
    %760 = arith.addf %758, %759 : vector<16x32xf32>
    %761 = arith.addf %760, %685 : vector<16x32xf32>
    %c36 = arith.constant 36 : index
    %c0_234 = arith.constant 0 : index
    %762 = vector.load %arg4[%c36, %c0_234] : memref<48x128xf32, #tpu.memory_space<vmem>>, vector<1x128xf32>
    %763 = vector.shape_cast %762 : vector<1x128xf32> to vector<128xf32>
    %764 = vector.extract_strided_slice %763 {offsets = [0], sizes = [32], strides = [1]} : vector<128xf32> to vector<32xf32>
    %765 = vector.shape_cast %764 : vector<32xf32> to vector<1x32xf32>
    %c37 = arith.constant 37 : index
    %c0_235 = arith.constant 0 : index
    %766 = vector.load %arg4[%c37, %c0_235] : memref<48x128xf32, #tpu.memory_space<vmem>>, vector<1x128xf32>
    %767 = vector.shape_cast %766 : vector<1x128xf32> to vector<128xf32>
    %768 = vector.extract_strided_slice %767 {offsets = [0], sizes = [32], strides = [1]} : vector<128xf32> to vector<32xf32>
    %769 = vector.shape_cast %768 : vector<32xf32> to vector<1x32xf32>
    %cst_236 = arith.constant dense<0.000000e+00> : vector<16xf32>
    %770 = vector.multi_reduction <add>, %761, %cst_236 [1] : vector<16x32xf32> to vector<16xf32>
    %771 = vector.shape_cast %770 : vector<16xf32> to vector<16x1xf32>
    %cst_237 = arith.constant 3.200000e+01 : f32
    %772 = vector.broadcast %cst_237 : f32 to vector<16x1xf32>
    %773 = arith.divf %771, %772 : vector<16x1xf32>
    %774 = vector.broadcast %773 : vector<16x1xf32> to vector<16x32xf32>
    %775 = arith.subf %761, %774 : vector<16x32xf32>
    %776 = arith.mulf %775, %775 : vector<16x32xf32>
    %cst_238 = arith.constant dense<0.000000e+00> : vector<16xf32>
    %777 = vector.multi_reduction <add>, %776, %cst_238 [1] : vector<16x32xf32> to vector<16xf32>
    %778 = vector.shape_cast %777 : vector<16xf32> to vector<16x1xf32>
    %cst_239 = arith.constant 3.200000e+01 : f32
    %779 = vector.broadcast %cst_239 : f32 to vector<16x1xf32>
    %780 = arith.divf %778, %779 : vector<16x1xf32>
    %781 = vector.broadcast %773 : vector<16x1xf32> to vector<16x32xf32>
    %782 = arith.subf %761, %781 : vector<16x32xf32>
    %cst_240 = arith.constant 9.99999997E-7 : f32
    %783 = vector.broadcast %cst_240 : f32 to vector<16x1xf32>
    %784 = arith.addf %780, %783 : vector<16x1xf32>
    %785 = math.rsqrt %784 : vector<16x1xf32>
    %786 = vector.broadcast %785 : vector<16x1xf32> to vector<16x32xf32>
    %787 = arith.mulf %782, %786 : vector<16x32xf32>
    %788 = vector.broadcast %765 : vector<1x32xf32> to vector<16x32xf32>
    %789 = arith.mulf %787, %788 : vector<16x32xf32>
    %790 = vector.broadcast %769 : vector<1x32xf32> to vector<16x32xf32>
    %791 = arith.addf %789, %790 : vector<16x32xf32>
    %c7_241 = arith.constant 7 : index
    %c0_242 = arith.constant 0 : index
    %c0_243 = arith.constant 0 : index
    %792 = vector.load %arg2[%c7_241, %c0_242, %c0_243] : memref<12x32x128xbf16, #tpu.memory_space<vmem>>, vector<1x32x128xbf16>
    %793 = vector.shape_cast %792 : vector<1x32x128xbf16> to vector<32x128xbf16>
    %794 = vector.extract_strided_slice %793 {offsets = [0, 0], sizes = [32, 32], strides = [1, 1]} : vector<32x128xbf16> to vector<32x32xbf16>
    %795 = arith.truncf %791 : vector<16x32xf32> to vector<16x32xbf16>
    %cst_244 = arith.constant dense<0.000000e+00> : vector<16x32xf32>
    %796 = tpu.matmul %795, %794, %cst_244 {dimension_numbers = #tpu.dot_dimension_numbers<[1], [0], [0], [1], [0, 0, 1, 1], [], []>} : vector<16x32xbf16>, vector<32x32xbf16>, vector<16x32xf32> -> vector<16x32xf32>
    %c38 = arith.constant 38 : index
    %c0_245 = arith.constant 0 : index
    %797 = vector.load %arg4[%c38, %c0_245] : memref<48x128xf32, #tpu.memory_space<vmem>>, vector<1x128xf32>
    %798 = vector.shape_cast %797 : vector<1x128xf32> to vector<128xf32>
    %799 = vector.extract_strided_slice %798 {offsets = [0], sizes = [32], strides = [1]} : vector<128xf32> to vector<32xf32>
    %800 = vector.shape_cast %799 : vector<32xf32> to vector<1x32xf32>
    %801 = vector.broadcast %800 : vector<1x32xf32> to vector<16x32xf32>
    %802 = arith.addf %796, %801 : vector<16x32xf32>
    %803 = vector.extract_strided_slice %418 {offsets = [0, 64], sizes = [16, 64], strides = [1, 1]} : vector<16x128xf32> to vector<16x64xf32>
    %804 = vector.extract_strided_slice %803 {offsets = [0, 0], sizes = [16, 32], strides = [1, 1]} : vector<16x64xf32> to vector<16x32xf32>
    %805 = vector.extract_strided_slice %803 {offsets = [0, 32], sizes = [16, 32], strides = [1, 1]} : vector<16x64xf32> to vector<16x32xf32>
    %c7_246 = arith.constant 7 : index
    %c0_247 = arith.constant 0 : index
    %c0_248 = arith.constant 0 : index
    %806 = vector.load %arg3[%c7_246, %c0_247, %c0_248] : memref<11x128x32xbf16, #tpu.memory_space<vmem>>, vector<1x128x32xbf16>
    %807 = vector.shape_cast %806 : vector<1x128x32xbf16> to vector<128x32xbf16>
    %c39 = arith.constant 39 : index
    %c0_249 = arith.constant 0 : index
    %808 = vector.load %arg4[%c39, %c0_249] : memref<48x128xf32, #tpu.memory_space<vmem>>, vector<1x128xf32>
    %809 = vector.shape_cast %808 : vector<1x128xf32> to vector<128xf32>
    %810 = vector.extract_strided_slice %809 {offsets = [0], sizes = [32], strides = [1]} : vector<128xf32> to vector<32xf32>
    %811 = vector.shape_cast %810 : vector<32xf32> to vector<1x32xf32>
    %cst_250 = arith.constant 0.000000e+00 : f32
    %812 = vector.broadcast %cst_250 : f32 to vector<16x32xf32>
    %813 = vector.extract_strided_slice %802 {offsets = [0, 0], sizes = [16, 16], strides = [1, 1]} : vector<16x32xf32> to vector<16x16xf32>
    %814 = arith.truncf %813 : vector<16x16xf32> to vector<16x16xbf16>
    %815 = vector.extract_strided_slice %804 {offsets = [0, 0], sizes = [16, 16], strides = [1, 1]} : vector<16x32xf32> to vector<16x16xf32>
    %816 = arith.truncf %815 : vector<16x16xf32> to vector<16x16xbf16>
    %817 = vector.extract_strided_slice %805 {offsets = [0, 0], sizes = [16, 16], strides = [1, 1]} : vector<16x32xf32> to vector<16x16xf32>
    %818 = arith.truncf %817 : vector<16x16xf32> to vector<16x16xbf16>
    %cst_251 = arith.constant dense<0.000000e+00> : vector<16x16xf32>
    %819 = tpu.matmul %814, %816, %cst_251 {dimension_numbers = #tpu.dot_dimension_numbers<[1], [1], [0], [0], [0, 0, 1, 0], [], []>} : vector<16x16xbf16>, vector<16x16xbf16>, vector<16x16xf32> -> vector<16x16xf32>
    %cst_252 = arith.constant 2.500000e-01 : f32
    %820 = vector.broadcast %cst_252 : f32 to vector<16x16xf32>
    %821 = arith.mulf %819, %820 : vector<16x16xf32>
    %822 = arith.addf %821, %8 : vector<16x16xf32>
    %cst_253 = arith.constant dense<0xFF800000> : vector<16xf32>
    %823 = vector.multi_reduction <maximumf>, %822, %cst_253 [1] : vector<16x16xf32> to vector<16xf32>
    %824 = vector.shape_cast %823 : vector<16xf32> to vector<16x1xf32>
    %825 = vector.broadcast %824 : vector<16x1xf32> to vector<16x16xf32>
    %826 = arith.subf %822, %825 : vector<16x16xf32>
    %827 = math.exp %826 : vector<16x16xf32>
    %cst_254 = arith.constant dense<0.000000e+00> : vector<16xf32>
    %828 = vector.multi_reduction <add>, %827, %cst_254 [1] : vector<16x16xf32> to vector<16xf32>
    %829 = vector.shape_cast %828 : vector<16xf32> to vector<16x1xf32>
    %830 = tpu.reciprocal %829 {approx = true} : vector<16x1xf32> -> vector<16x1xf32>
    %831 = vector.broadcast %830 : vector<16x1xf32> to vector<16x16xf32>
    %832 = arith.mulf %827, %831 : vector<16x16xf32>
    %833 = arith.truncf %832 : vector<16x16xf32> to vector<16x16xbf16>
    %cst_255 = arith.constant dense<0.000000e+00> : vector<16x16xf32>
    %834 = tpu.matmul %833, %818, %cst_255 {dimension_numbers = #tpu.dot_dimension_numbers<[1], [0], [0], [1], [0, 0, 1, 1], [], []>} : vector<16x16xbf16>, vector<16x16xbf16>, vector<16x16xf32> -> vector<16x16xf32>
    %835 = arith.truncf %834 : vector<16x16xf32> to vector<16x16xbf16>
    %836 = vector.extract_strided_slice %807 {offsets = [0, 0], sizes = [16, 32], strides = [1, 1]} : vector<128x32xbf16> to vector<16x32xbf16>
    %cst_256 = arith.constant dense<0.000000e+00> : vector<16x32xf32>
    %837 = tpu.matmul %835, %836, %cst_256 {dimension_numbers = #tpu.dot_dimension_numbers<[1], [0], [0], [1], [0, 0, 1, 1], [], []>} : vector<16x16xbf16>, vector<16x32xbf16>, vector<16x32xf32> -> vector<16x32xf32>
    %838 = arith.addf %812, %837 : vector<16x32xf32>
    %839 = vector.extract_strided_slice %802 {offsets = [0, 16], sizes = [16, 16], strides = [1, 1]} : vector<16x32xf32> to vector<16x16xf32>
    %840 = arith.truncf %839 : vector<16x16xf32> to vector<16x16xbf16>
    %841 = vector.extract_strided_slice %804 {offsets = [0, 16], sizes = [16, 16], strides = [1, 1]} : vector<16x32xf32> to vector<16x16xf32>
    %842 = arith.truncf %841 : vector<16x16xf32> to vector<16x16xbf16>
    %843 = vector.extract_strided_slice %805 {offsets = [0, 16], sizes = [16, 16], strides = [1, 1]} : vector<16x32xf32> to vector<16x16xf32>
    %844 = arith.truncf %843 : vector<16x16xf32> to vector<16x16xbf16>
    %cst_257 = arith.constant dense<0.000000e+00> : vector<16x16xf32>
    %845 = tpu.matmul %840, %842, %cst_257 {dimension_numbers = #tpu.dot_dimension_numbers<[1], [1], [0], [0], [0, 0, 1, 0], [], []>} : vector<16x16xbf16>, vector<16x16xbf16>, vector<16x16xf32> -> vector<16x16xf32>
    %cst_258 = arith.constant 2.500000e-01 : f32
    %846 = vector.broadcast %cst_258 : f32 to vector<16x16xf32>
    %847 = arith.mulf %845, %846 : vector<16x16xf32>
    %848 = arith.addf %847, %8 : vector<16x16xf32>
    %cst_259 = arith.constant dense<0xFF800000> : vector<16xf32>
    %849 = vector.multi_reduction <maximumf>, %848, %cst_259 [1] : vector<16x16xf32> to vector<16xf32>
    %850 = vector.shape_cast %849 : vector<16xf32> to vector<16x1xf32>
    %851 = vector.broadcast %850 : vector<16x1xf32> to vector<16x16xf32>
    %852 = arith.subf %848, %851 : vector<16x16xf32>
    %853 = math.exp %852 : vector<16x16xf32>
    %cst_260 = arith.constant dense<0.000000e+00> : vector<16xf32>
    %854 = vector.multi_reduction <add>, %853, %cst_260 [1] : vector<16x16xf32> to vector<16xf32>
    %855 = vector.shape_cast %854 : vector<16xf32> to vector<16x1xf32>
    %856 = tpu.reciprocal %855 {approx = true} : vector<16x1xf32> -> vector<16x1xf32>
    %857 = vector.broadcast %856 : vector<16x1xf32> to vector<16x16xf32>
    %858 = arith.mulf %853, %857 : vector<16x16xf32>
    %859 = arith.truncf %858 : vector<16x16xf32> to vector<16x16xbf16>
    %cst_261 = arith.constant dense<0.000000e+00> : vector<16x16xf32>
    %860 = tpu.matmul %859, %844, %cst_261 {dimension_numbers = #tpu.dot_dimension_numbers<[1], [0], [0], [1], [0, 0, 1, 1], [], []>} : vector<16x16xbf16>, vector<16x16xbf16>, vector<16x16xf32> -> vector<16x16xf32>
    %861 = arith.truncf %860 : vector<16x16xf32> to vector<16x16xbf16>
    %862 = vector.extract_strided_slice %807 {offsets = [16, 0], sizes = [16, 32], strides = [1, 1]} : vector<128x32xbf16> to vector<16x32xbf16>
    %cst_262 = arith.constant dense<0.000000e+00> : vector<16x32xf32>
    %863 = tpu.matmul %861, %862, %cst_262 {dimension_numbers = #tpu.dot_dimension_numbers<[1], [0], [0], [1], [0, 0, 1, 1], [], []>} : vector<16x16xbf16>, vector<16x32xbf16>, vector<16x32xf32> -> vector<16x32xf32>
    %864 = arith.addf %838, %863 : vector<16x32xf32>
    %865 = vector.broadcast %811 : vector<1x32xf32> to vector<16x32xf32>
    %866 = arith.addf %864, %865 : vector<16x32xf32>
    %867 = arith.addf %866, %791 : vector<16x32xf32>
    %c40 = arith.constant 40 : index
    %c0_263 = arith.constant 0 : index
    %868 = vector.load %arg4[%c40, %c0_263] : memref<48x128xf32, #tpu.memory_space<vmem>>, vector<1x128xf32>
    %869 = vector.shape_cast %868 : vector<1x128xf32> to vector<128xf32>
    %870 = vector.extract_strided_slice %869 {offsets = [0], sizes = [32], strides = [1]} : vector<128xf32> to vector<32xf32>
    %871 = vector.shape_cast %870 : vector<32xf32> to vector<1x32xf32>
    %c41 = arith.constant 41 : index
    %c0_264 = arith.constant 0 : index
    %872 = vector.load %arg4[%c41, %c0_264] : memref<48x128xf32, #tpu.memory_space<vmem>>, vector<1x128xf32>
    %873 = vector.shape_cast %872 : vector<1x128xf32> to vector<128xf32>
    %874 = vector.extract_strided_slice %873 {offsets = [0], sizes = [32], strides = [1]} : vector<128xf32> to vector<32xf32>
    %875 = vector.shape_cast %874 : vector<32xf32> to vector<1x32xf32>
    %cst_265 = arith.constant dense<0.000000e+00> : vector<16xf32>
    %876 = vector.multi_reduction <add>, %867, %cst_265 [1] : vector<16x32xf32> to vector<16xf32>
    %877 = vector.shape_cast %876 : vector<16xf32> to vector<16x1xf32>
    %cst_266 = arith.constant 3.200000e+01 : f32
    %878 = vector.broadcast %cst_266 : f32 to vector<16x1xf32>
    %879 = arith.divf %877, %878 : vector<16x1xf32>
    %880 = vector.broadcast %879 : vector<16x1xf32> to vector<16x32xf32>
    %881 = arith.subf %867, %880 : vector<16x32xf32>
    %882 = arith.mulf %881, %881 : vector<16x32xf32>
    %cst_267 = arith.constant dense<0.000000e+00> : vector<16xf32>
    %883 = vector.multi_reduction <add>, %882, %cst_267 [1] : vector<16x32xf32> to vector<16xf32>
    %884 = vector.shape_cast %883 : vector<16xf32> to vector<16x1xf32>
    %cst_268 = arith.constant 3.200000e+01 : f32
    %885 = vector.broadcast %cst_268 : f32 to vector<16x1xf32>
    %886 = arith.divf %884, %885 : vector<16x1xf32>
    %887 = vector.broadcast %879 : vector<16x1xf32> to vector<16x32xf32>
    %888 = arith.subf %867, %887 : vector<16x32xf32>
    %cst_269 = arith.constant 9.99999997E-7 : f32
    %889 = vector.broadcast %cst_269 : f32 to vector<16x1xf32>
    %890 = arith.addf %886, %889 : vector<16x1xf32>
    %891 = math.rsqrt %890 : vector<16x1xf32>
    %892 = vector.broadcast %891 : vector<16x1xf32> to vector<16x32xf32>
    %893 = arith.mulf %888, %892 : vector<16x32xf32>
    %894 = vector.broadcast %871 : vector<1x32xf32> to vector<16x32xf32>
    %895 = arith.mulf %893, %894 : vector<16x32xf32>
    %896 = vector.broadcast %875 : vector<1x32xf32> to vector<16x32xf32>
    %897 = arith.addf %895, %896 : vector<16x32xf32>
    %c10_270 = arith.constant 10 : index
    %c0_271 = arith.constant 0 : index
    %c0_272 = arith.constant 0 : index
    %898 = vector.load %arg2[%c10_270, %c0_271, %c0_272] : memref<12x32x128xbf16, #tpu.memory_space<vmem>>, vector<1x32x128xbf16>
    %899 = vector.shape_cast %898 : vector<1x32x128xbf16> to vector<32x128xbf16>
    %900 = vector.extract_strided_slice %899 {offsets = [0, 0], sizes = [32, 64], strides = [1, 1]} : vector<32x128xbf16> to vector<32x64xbf16>
    %901 = arith.truncf %897 : vector<16x32xf32> to vector<16x32xbf16>
    %cst_273 = arith.constant dense<0.000000e+00> : vector<16x64xf32>
    %902 = tpu.matmul %901, %900, %cst_273 {dimension_numbers = #tpu.dot_dimension_numbers<[1], [0], [0], [1], [0, 0, 1, 1], [], []>} : vector<16x32xbf16>, vector<32x64xbf16>, vector<16x64xf32> -> vector<16x64xf32>
    %c42 = arith.constant 42 : index
    %c0_274 = arith.constant 0 : index
    %903 = vector.load %arg4[%c42, %c0_274] : memref<48x128xf32, #tpu.memory_space<vmem>>, vector<1x128xf32>
    %904 = vector.shape_cast %903 : vector<1x128xf32> to vector<128xf32>
    %905 = vector.extract_strided_slice %904 {offsets = [0], sizes = [64], strides = [1]} : vector<128xf32> to vector<64xf32>
    %906 = vector.shape_cast %905 : vector<64xf32> to vector<1x64xf32>
    %907 = vector.broadcast %906 : vector<1x64xf32> to vector<16x64xf32>
    %908 = arith.addf %902, %907 : vector<16x64xf32>
    %cst_275 = arith.constant 0.000000e+00 : f32
    %909 = vector.broadcast %cst_275 : f32 to vector<16x64xf32>
    %910 = arith.maximumf %908, %909 : vector<16x64xf32>
    %c9_276 = arith.constant 9 : index
    %c0_277 = arith.constant 0 : index
    %c0_278 = arith.constant 0 : index
    %911 = vector.load %arg3[%c9_276, %c0_277, %c0_278] : memref<11x128x32xbf16, #tpu.memory_space<vmem>>, vector<1x128x32xbf16>
    %912 = vector.shape_cast %911 : vector<1x128x32xbf16> to vector<128x32xbf16>
    %913 = vector.extract_strided_slice %912 {offsets = [0, 0], sizes = [64, 32], strides = [1, 1]} : vector<128x32xbf16> to vector<64x32xbf16>
    %914 = arith.truncf %910 : vector<16x64xf32> to vector<16x64xbf16>
    %cst_279 = arith.constant dense<0.000000e+00> : vector<16x32xf32>
    %915 = tpu.matmul %914, %913, %cst_279 {dimension_numbers = #tpu.dot_dimension_numbers<[1], [0], [0], [1], [0, 0, 1, 1], [], []>} : vector<16x64xbf16>, vector<64x32xbf16>, vector<16x32xf32> -> vector<16x32xf32>
    %c43 = arith.constant 43 : index
    %c0_280 = arith.constant 0 : index
    %916 = vector.load %arg4[%c43, %c0_280] : memref<48x128xf32, #tpu.memory_space<vmem>>, vector<1x128xf32>
    %917 = vector.shape_cast %916 : vector<1x128xf32> to vector<128xf32>
    %918 = vector.extract_strided_slice %917 {offsets = [0], sizes = [32], strides = [1]} : vector<128xf32> to vector<32xf32>
    %919 = vector.shape_cast %918 : vector<32xf32> to vector<1x32xf32>
    %920 = vector.broadcast %919 : vector<1x32xf32> to vector<16x32xf32>
    %921 = arith.addf %915, %920 : vector<16x32xf32>
    %922 = arith.addf %921, %897 : vector<16x32xf32>
    %c44 = arith.constant 44 : index
    %c0_281 = arith.constant 0 : index
    %923 = vector.load %arg4[%c44, %c0_281] : memref<48x128xf32, #tpu.memory_space<vmem>>, vector<1x128xf32>
    %924 = vector.shape_cast %923 : vector<1x128xf32> to vector<128xf32>
    %925 = vector.extract_strided_slice %924 {offsets = [0], sizes = [32], strides = [1]} : vector<128xf32> to vector<32xf32>
    %926 = vector.shape_cast %925 : vector<32xf32> to vector<1x32xf32>
    %c45 = arith.constant 45 : index
    %c0_282 = arith.constant 0 : index
    %927 = vector.load %arg4[%c45, %c0_282] : memref<48x128xf32, #tpu.memory_space<vmem>>, vector<1x128xf32>
    %928 = vector.shape_cast %927 : vector<1x128xf32> to vector<128xf32>
    %929 = vector.extract_strided_slice %928 {offsets = [0], sizes = [32], strides = [1]} : vector<128xf32> to vector<32xf32>
    %930 = vector.shape_cast %929 : vector<32xf32> to vector<1x32xf32>
    %cst_283 = arith.constant dense<0.000000e+00> : vector<16xf32>
    %931 = vector.multi_reduction <add>, %922, %cst_283 [1] : vector<16x32xf32> to vector<16xf32>
    %932 = vector.shape_cast %931 : vector<16xf32> to vector<16x1xf32>
    %cst_284 = arith.constant 3.200000e+01 : f32
    %933 = vector.broadcast %cst_284 : f32 to vector<16x1xf32>
    %934 = arith.divf %932, %933 : vector<16x1xf32>
    %935 = vector.broadcast %934 : vector<16x1xf32> to vector<16x32xf32>
    %936 = arith.subf %922, %935 : vector<16x32xf32>
    %937 = arith.mulf %936, %936 : vector<16x32xf32>
    %cst_285 = arith.constant dense<0.000000e+00> : vector<16xf32>
    %938 = vector.multi_reduction <add>, %937, %cst_285 [1] : vector<16x32xf32> to vector<16xf32>
    %939 = vector.shape_cast %938 : vector<16xf32> to vector<16x1xf32>
    %cst_286 = arith.constant 3.200000e+01 : f32
    %940 = vector.broadcast %cst_286 : f32 to vector<16x1xf32>
    %941 = arith.divf %939, %940 : vector<16x1xf32>
    %942 = vector.broadcast %934 : vector<16x1xf32> to vector<16x32xf32>
    %943 = arith.subf %922, %942 : vector<16x32xf32>
    %cst_287 = arith.constant 9.99999997E-7 : f32
    %944 = vector.broadcast %cst_287 : f32 to vector<16x1xf32>
    %945 = arith.addf %941, %944 : vector<16x1xf32>
    %946 = math.rsqrt %945 : vector<16x1xf32>
    %947 = vector.broadcast %946 : vector<16x1xf32> to vector<16x32xf32>
    %948 = arith.mulf %943, %947 : vector<16x32xf32>
    %949 = vector.broadcast %926 : vector<1x32xf32> to vector<16x32xf32>
    %950 = arith.mulf %948, %949 : vector<16x32xf32>
    %951 = vector.broadcast %930 : vector<1x32xf32> to vector<16x32xf32>
    %952 = arith.addf %950, %951 : vector<16x32xf32>
    %953 = arith.truncf %952 : vector<16x32xf32> to vector<16x32xbf16>
    %c11_288 = arith.constant 11 : index
    %c0_289 = arith.constant 0 : index
    %c0_290 = arith.constant 0 : index
    %954 = vector.load %arg2[%c11_288, %c0_289, %c0_290] : memref<12x32x128xbf16, #tpu.memory_space<vmem>>, vector<1x32x128xbf16>
    %955 = vector.shape_cast %954 : vector<1x32x128xbf16> to vector<32x128xbf16>
    %cst_291 = arith.constant dense<0.000000e+00> : vector<16x128xf32>
    %956 = tpu.matmul %953, %955, %cst_291 {dimension_numbers = #tpu.dot_dimension_numbers<[1], [0], [0], [1], [0, 0, 1, 1], [], []>} : vector<16x32xbf16>, vector<32x128xbf16>, vector<16x128xf32> -> vector<16x128xf32>
    %c21 = arith.constant 21 : index
    %c0_292 = arith.constant 0 : index
    %957 = vector.load %arg4[%c21, %c0_292] : memref<48x128xf32, #tpu.memory_space<vmem>>, vector<1x128xf32>
    %958 = vector.shape_cast %957 : vector<1x128xf32> to vector<128xf32>
    %959 = vector.shape_cast %958 : vector<128xf32> to vector<1x128xf32>
    %960 = vector.broadcast %959 : vector<1x128xf32> to vector<16x128xf32>
    %961 = arith.addf %956, %960 : vector<16x128xf32>
    %c0_293 = arith.constant 0 : index
    %c0_294 = arith.constant 0 : index
    %962 = vector.load %arg5[%c0_293, %c0_294] : memref<16x128xf32, #tpu.memory_space<vmem>>, vector<16x128xf32>
    tpu.vector_store %arg5[%c0_293, %c0_294], %961 {strides = array<i32>} : memref<16x128xf32, #tpu.memory_space<vmem>>, vector<16x128xf32>,
    return
  }
}

</mosaic_0001>

<llo_original>
// kernel: transformer_translate_forward.1
$region0: #{transformer_translate_forward.1}
  #allocation0 [shape = 'u32[]', space=smem, size = 0x4, offset = 0x4, fixed_abs, tag = 'smem constant byte address 0x4 - core index']
  #allocation1 [shape = 'u32[144,128]{1,0:T(1,128)}', space=vmem, size = 0x12000, scoped, tag = 'internal scratch']
  %s0 = inlined_call_operand.vmem [shape: f32[6,16,32], index: 0, kind: input, shape index: {}]
  %s1 = inlined_call_operand.vmem [shape: s32[16,1], index: 1, kind: input, shape index: {}]
  %s2 = inlined_call_operand.vmem [shape: bf16[12,32,128], index: 2, kind: input, shape index: {}]
  %s3 = inlined_call_operand.vmem [shape: bf16[11,128,32], index: 3, kind: input, shape index: {}]
  %s4 = inlined_call_operand.vmem [shape: f32[48,128], index: 4, kind: input, shape index: {}]
  %s5 = inlined_call_operand.hbm [shape: f32[16,128], index: 5, kind: output, shape index: {}]
  %s6 = sld [smem:[#allocation0]]
  $region30: #{transformer_translate_forward.1} parent=0
    _
  %s8 = ssub.s32 1, %s6
  %s9 = scalar_select 0, %s8, %s6
  $region1: #{transformer_translate_forward.1} parent=0
    #allocation2 [shape = 'u8[8192]{0}', space=vmem, size = 0x2000, scoped, tag = 'output window, operand 0, single buffered']
    #allocation3 [shape = 's32[1]{0}', space=sflag, size = 0x4, scoped, tag = 'scoped memory for transformer_translate_forward.1']
    %10 = vsyncpa [#allocation3], 0
    // Predicated region
    $region2: #{transformer_translate_forward.1} parent=1 // pred_check
      _
    $region3: #{transformer_translate_forward.1} parent=1 // pred_check_branch
      %12 = sbr.rel (0) target = $region5
    $region4: #{transformer_translate_forward.1} parent=1 // pred_region
      _
    $region5: #{transformer_translate_forward.1} parent=1 // pred_fallthru
      _
    // Predicated region
    $region6: #{transformer_translate_forward.1} parent=1 // pred_check
      _
    $region7: #{transformer_translate_forward.1} parent=1 // pred_check_branch
      %14 = sbr.rel (0) target = $region9
    $region8: #{transformer_translate_forward.1} parent=1 // pred_region
      _
    $region9: #{transformer_translate_forward.1} parent=1 // pred_fallthru
      _
    // Predicated region
    $region10: #{transformer_translate_forward.1} parent=1 // pred_check
      _
    $region11: #{transformer_translate_forward.1} parent=1 // pred_check_branch
      %16 = sbr.rel (0) target = $region13
    $region12: #{transformer_translate_forward.1} parent=1 // pred_region
      _
    $region13: #{transformer_translate_forward.1} parent=1 // pred_fallthru
      _
    // Predicated region
    $region14: #{transformer_translate_forward.1} parent=1 // pred_check
      _
    $region15: #{transformer_translate_forward.1} parent=1 // pred_check_branch
      %18 = sbr.rel (0) target = $region17
    $region16: #{transformer_translate_forward.1} parent=1 // pred_region
      _
    $region17: #{transformer_translate_forward.1} parent=1 // pred_fallthru
      _
    // Predicated region
    $region18: #{transformer_translate_forward.1} parent=1 // pred_check
      _
    $region19: #{transformer_translate_forward.1} parent=1 // pred_check_branch
      %20 = sbr.rel (0) target = $region21
    $region20: #{transformer_translate_forward.1} parent=1 // pred_region
      _
    $region21: #{transformer_translate_forward.1} parent=1 // pred_fallthru
      _
    %s22 = scalar_lea.vmem %s0, 48
    %v23 = vld [vmem:[%s22] sm:$0xff]
    %v24 = vld [vmem:[%s22 + $0x8] sm:$0xff]
    %s25 = scalar_lea.vmem %s0, 64
    %v26 = vld [vmem:[%s25] sm:$0xff]
    %v27 = vld [vmem:[%s25 + $0x8] sm:$0xff]
    %s28 = scalar_lea.vmem %s0, 80
    %v29 = vld [vmem:[%s28] sm:$0xff]
    %v30 = vld [vmem:[%s28 + $0x8] sm:$0xff]
    %v31 = vld [vmem:[%s0] sm:$0xff]
    %v32 = vld [vmem:[%s0 + $0x8] sm:$0xff]
    %v33 = vadd.f32 %v31, %v31
    %v34 = vadd.f32 %v32, %v32
    %s35 = scalar_lea.vmem %s0, 16
    %v36 = vld [vmem:[%s35] sm:$0xff]
    %v37 = vld [vmem:[%s35 + $0x8] sm:$0xff]
    %v38 = vadd.f32 %v33, %v36
    %v39 = vadd.f32 %v34, %v37
    %v40 = vld [vmem:[%s4] sm:$0x1]
    %v41 = vld [vmem:[%s4 + $0x1] sm:$0x1]
    %vm42 = vcmask 261120
    %v43 = vsel %vm42, %v38, 0.0
    %44 = vadd.xlane.f32.xlu0 %v43
    %v45 = vpop.xlane.xlu0 %44
    %v46 = vsel %vm42, %v39, 0.0
    %47 = vadd.xlane.f32.xlu0 %v46
    %v48 = vpop.xlane.xlu0 %47
    %v49 = vrcp.pop 32.0
    %v50 = vmul.f32 %v45, %v49
    %v51 = vmul.f32 %v48, %v49
    %v52 = vsub.f32 %v38, %v50
    %v53 = vsub.f32 %v39, %v51
    %v54 = vmul.f32 %v52, %v52
    %v55 = vmul.f32 %v53, %v53
    %v56 = vsel %vm42, %v54, 0.0
    %57 = vadd.xlane.f32.xlu0 %v56
    %v58 = vpop.xlane.xlu0 %57
    %v59 = vsel %vm42, %v55, 0.0
    %60 = vadd.xlane.f32.xlu0 %v59
    %v61 = vpop.xlane.xlu0 %60
    %v62 = vmul.f32 %v58, %v49
    %v63 = vmul.f32 %v61, %v49
    %v64 = vadd.f32 %v62, 1e-12
    %v65 = vadd.f32 %v63, 1e-12
    %v66 = vrsqrt.pop %v64
    %v67 = vrsqrt.pop %v65
    %v68 = vmul.f32 %v52, %v66
    %v69 = vmul.f32 %v53, %v67
    %v70 = vlaneseq
    %v71 = vshrl.u32 %v70, 7
    %v72 = vsub.s32 0, %v71
    %v73 = vrot.slane %v40, %v72
    %v74 = vmul.f32 %v68, %v73
    %v75 = vmul.f32 %v69, %v73
    %v76 = vlaneseq
    %v77 = vshrl.u32 %v76, 7
    %v78 = vsub.s32 0, %v77
    %v79 = vrot.slane %v41, %v78
    %v80 = vadd.f32 %v74, %v79
    %v81 = vadd.f32 %v75, %v79
    %v82 = vld [vmem:[%s2] sm:$0xf]
    %v83 = vld [vmem:[%s2 + $0x4] sm:$0xf]
    %v84 = vld [vmem:[%s2 + $0x8] sm:$0xf]
    %v85 = vld [vmem:[%s2 + $0xc] sm:$0xf]
    %v86 = vpack.c.bf16 %v81, %v80
    %v87 = vld [vmem:[%s4 + $0x4] sm:$0x1]
    %v88 = vlaneseq
    %v89 = vshrl.u32 %v88, 7
    %v90 = vsub.s32 0, %v89
    %v91 = vrot.slane %v87, %v90
    %v96 = vunpack.c.l.b16 %v82
    %v97 = vunpack.c.l.b16 %v83
    %v98 = vunpack.c.l.b16 %v84
    %v99 = vunpack.c.l.b16 %v85
    %v100 = vpack.c.b16 %v97, %v96
    %v101 = vpack.c.b16 %v99, %v98
    %v105 = vsel %vm42, %v86, 0
    %107 = vmatprep.subr.bf16.mxu0 0
    %108 = vmatpush1.bf16.msra.mxu0 %v100
    %109 = vmatprep.subr.bf16.mxu0 0
    %110 = vmatpush1.bf16.msra.mxu0 %v101
    %111 = vmatprep.subr.bf16.mxu0 0
    %112 = vmatpush1.bf16.msra.mxu0 0
    %113 = vmatprep.subr.bf16.mxu0 0
    %114 = vmatpush1.bf16.msra.mxu0 0
    %115 = vmatprep.subr.bf16.mxu0 0
    %116 = vmatpush1.bf16.msra.mxu0 0
    %117 = vmatprep.subr.bf16.mxu0 0
    %118 = vmatpush1.bf16.msra.mxu0 0
    %119 = vmatprep.subr.bf16.mxu0 0
    %120 = vmatpush1.bf16.msra.mxu0 0
    %121 = vmatprep.subr.bf16.mxu0 0
    %122 = vmatpush1.bf16.msra.mxu0 0
    %123 = vmatprep.subr.bf16.mxu0 0
    %124 = vmatpush1.bf16.msra.mxu0 0
    %125 = vmatprep.subr.bf16.mxu0 0
    %126 = vmatpush1.bf16.msra.mxu0 0
    %127 = vmatprep.subr.bf16.mxu0 0
    %128 = vmatpush1.bf16.msra.mxu0 0
    %129 = vmatprep.subr.bf16.mxu0 0
    %130 = vmatpush1.bf16.msra.mxu0 0
    %131 = vmatprep.subr.bf16.mxu0 0
    %132 = vmatpush1.bf16.msra.mxu0 0
    %133 = vmatprep.subr.bf16.mxu0 0
    %134 = vmatpush1.bf16.msra.mxu0 0
    %135 = vmatprep.subr.bf16.mxu0 0
    %136 = vmatpush1.bf16.msra.mxu0 0
    %137 = vmatprep.subr.bf16.mxu0 0
    %138 = vmatpush1.bf16.msra.mxu0 0
    %139 = vmatprep.mubr.bf16.mxu0 0
    %140 = vmatmul.mubr.bf16.gmra.mrb[0].mxu0 %v105
    %v141 = vpop.f32.mrb[0].mxu0
    %v142 = vadd.f32 %v91, %v141
    %v143 = vpop.f32.mrb[0].mxu0
    %v144 = vpop.f32.mrb[0].mxu0
    %v145 = vadd.f32 %v91, %v144
    %v146 = vpop.f32.mrb[0].mxu0
    %147 = vdwg.mxu0
    %v148 = vld [vmem:[%s3] sm:$0xf]
    %v149 = vld [vmem:[%s3 + $0x4] sm:$0xf]
    %v150 = vld [vmem:[%s3 + $0x8] sm:$0xf]
    %v151 = vld [vmem:[%s3 + $0xc] sm:$0xf]
    %v152 = vld [vmem:[%s4 + $0x5] sm:$0x1]
    %v153 = vpack.c.bf16 %v145, %v142
    %155 = vrot.lane.b32.xlu0 %v153, 96
    %v156 = vpop.permute.xlu0 %155
    %vm157 = vcmask 130048
    %v159 = vsel %vm157, %v153, 0
    %v162 = vsel %vm157, %v156, 0
    %164 = vmatprep.subr.bf16.mxu0 0
    %165 = vmatpush1.bf16.xpose.msra.mxu0 %v162
    %166 = vmatprep.subr.bf16.mxu0 0
    %167 = vmatpush1.bf16.xpose.msra.mxu0 0
    %168 = vmatprep.subr.bf16.mxu0 0
    %169 = vmatpush1.bf16.xpose.msra.mxu0 0
    %170 = vmatprep.subr.bf16.mxu0 0
    %171 = vmatpush1.bf16.xpose.msra.mxu0 0
    %172 = vmatprep.subr.bf16.mxu0 0
    %173 = vmatpush1.bf16.xpose.msra.mxu0 0
    %174 = vmatprep.subr.bf16.mxu0 0
    %175 = vmatpush1.bf16.xpose.msra.mxu0 0
    %176 = vmatprep.subr.bf16.mxu0 0
    %177 = vmatpush1.bf16.xpose.msra.mxu0 0
    %178 = vmatprep.subr.bf16.mxu0 0
    %179 = vmatpush1.bf16.xpose.msra.mxu0 0
    %180 = vmatprep.subr.bf16.mxu0 0
    %181 = vmatpush1.bf16.xpose.msra.mxu0 0
    %182 = vmatprep.subr.bf16.mxu0 0
    %183 = vmatpush1.bf16.xpose.msra.mxu0 0
    %184 = vmatprep.subr.bf16.mxu0 0
    %185 = vmatpush1.bf16.xpose.msra.mxu0 0
    %186 = vmatprep.subr.bf16.mxu0 0
    %187 = vmatpush1.bf16.xpose.msra.mxu0 0
    %188 = vmatprep.subr.bf16.mxu0 0
    %189 = vmatpush1.bf16.xpose.msra.mxu0 0
    %190 = vmatprep.subr.bf16.mxu0 0
    %191 = vmatpush1.bf16.xpose.msra.mxu0 0
    %192 = vmatprep.subr.bf16.mxu0 0
    %193 = vmatpush1.bf16.xpose.msra.mxu0 0
    %194 = vmatprep.subr.bf16.mxu0 0
    %195 = vmatpush1.bf16.xpose.msra.mxu0 0
    %196 = vmatprep.mubr.bf16.mxu0 0
    %197 = vmatmul.mubr.bf16.gmra.mrb[0].mxu0 %v159
    %v198 = vpop.f32.mrb[0].mxu0
    %v199 = vadd.f32 0.0, %v198
    %v200 = vpop.f32.mrb[0].mxu0
    %v201 = vpop.f32.mrb[0].mxu0
    %v202 = vadd.f32 0.0, %v201
    %v203 = vpop.f32.mrb[0].mxu0
    %204 = vdwg.mxu0
    %v205 = vmul.f32 %v199, 0.25
    %v206 = vmul.f32 %v202, 0.25
    %v207 = vadd.f32 %v205, %v23
    %v208 = vadd.f32 %v206, %v24
    %v209 = vsel %vm157, %v207, -inf
    %210 = vmax.xlane.f32.xlu0 %v209
    %v211 = vpop.xlane.xlu0 %210
    %v212 = vsel %vm157, %v208, -inf
    %213 = vmax.xlane.f32.xlu0 %v212
    %v214 = vpop.xlane.xlu0 %213
    %v215 = vsub.f32 %v207, %v211
    %v216 = vsub.f32 %v208, %v214
    %v217 = vmul.f32 %v215, 1.442695
    %v218 = vpow.pop %v217
    %v219 = vmul.f32 %v216, 1.442695
    %v220 = vpow.pop %v219
    %v221 = vsel %vm157, %v218, 0.0
    %222 = vadd.xlane.f32.xlu0 %v221
    %v223 = vpop.xlane.xlu0 %222
    %v224 = vsel %vm157, %v220, 0.0
    %225 = vadd.xlane.f32.xlu0 %v224
    %v226 = vpop.xlane.xlu0 %225
    %v227 = vrcp.pop %v223
    %v228 = vrcp.pop %v226
    %v229 = vmul.f32 %v218, %v227
    %v230 = vmul.f32 %v220, %v228
    %v231 = vpack.c.bf16 %v230, %v229
    %232 = vrot.lane.b32.xlu0 %v153, 64
    %v233 = vpop.permute.xlu0 %232
    %v236 = vsel %vm157, %v231, 0
    %238 = vmatprep.subr.bf16.mxu0 0
    %239 = vmatpush1.bf16.msra.mxu0 %v233
    %240 = vmatprep.subr.bf16.mxu0 0
    %241 = vmatpush1.bf16.msra.mxu0 0
    %242 = vmatprep.subr.bf16.mxu0 0
    %243 = vmatpush1.bf16.msra.mxu0 0
    %244 = vmatprep.subr.bf16.mxu0 0
    %245 = vmatpush1.bf16.msra.mxu0 0
    %246 = vmatprep.subr.bf16.mxu0 0
    %247 = vmatpush1.bf16.msra.mxu0 0
    %248 = vmatprep.subr.bf16.mxu0 0
    %249 = vmatpush1.bf16.msra.mxu0 0
    %250 = vmatprep.subr.bf16.mxu0 0
    %251 = vmatpush1.bf16.msra.mxu0 0
    %252 = vmatprep.subr.bf16.mxu0 0
    %253 = vmatpush1.bf16.msra.mxu0 0
    %254 = vmatprep.subr.bf16.mxu0 0
    %255 = vmatpush1.bf16.msra.mxu0 0
    %256 = vmatprep.subr.bf16.mxu0 0
    %257 = vmatpush1.bf16.msra.mxu0 0
    %258 = vmatprep.subr.bf16.mxu0 0
    %259 = vmatpush1.bf16.msra.mxu0 0
    %260 = vmatprep.subr.bf16.mxu0 0
    %261 = vmatpush1.bf16.msra.mxu0 0
    %262 = vmatprep.subr.bf16.mxu0 0
    %263 = vmatpush1.bf16.msra.mxu0 0
    %264 = vmatprep.subr.bf16.mxu0 0
    %265 = vmatpush1.bf16.msra.mxu0 0
    %266 = vmatprep.subr.bf16.mxu0 0
    %267 = vmatpush1.bf16.msra.mxu0 0
    %268 = vmatprep.subr.bf16.mxu0 0
    %269 = vmatpush1.bf16.msra.mxu0 0
    %270 = vmatprep.mubr.bf16.mxu0 0
    %271 = vmatmul.mubr.bf16.gmra.mrb[0].mxu0 %v236
    %v272 = vpop.f32.mrb[0].mxu0
    %v273 = vadd.f32 0.0, %v272
    %v274 = vpop.f32.mrb[0].mxu0
    %v275 = vpop.f32.mrb[0].mxu0
    %v276 = vadd.f32 0.0, %v275
    %v277 = vpop.f32.mrb[0].mxu0
    %278 = vdwg.mxu0
    %v279 = vpack.c.bf16 %v276, %v273
    %280 = vrot.lane.b32.xlu0 %v153, 112
    %v281 = vpop.permute.xlu0 %280
    %282 = vrot.lane.b32.xlu0 %v153, 80
    %v283 = vpop.permute.xlu0 %282
    %v285 = vsel %vm157, %v281, 0
    %v288 = vsel %vm157, %v283, 0
    %290 = vmatprep.subr.bf16.mxu0 0
    %291 = vmatpush1.bf16.xpose.msra.mxu0 %v288
    %292 = vmatprep.subr.bf16.mxu0 0
    %293 = vmatpush1.bf16.xpose.msra.mxu0 0
    %294 = vmatprep.subr.bf16.mxu0 0
    %295 = vmatpush1.bf16.xpose.msra.mxu0 0
    %296 = vmatprep.subr.bf16.mxu0 0
    %297 = vmatpush1.bf16.xpose.msra.mxu0 0
    %298 = vmatprep.subr.bf16.mxu0 0
    %299 = vmatpush1.bf16.xpose.msra.mxu0 0
    %300 = vmatprep.subr.bf16.mxu0 0
    %301 = vmatpush1.bf16.xpose.msra.mxu0 0
    %302 = vmatprep.subr.bf16.mxu0 0
    %303 = vmatpush1.bf16.xpose.msra.mxu0 0
    %304 = vmatprep.subr.bf16.mxu0 0
    %305 = vmatpush1.bf16.xpose.msra.mxu0 0
    %306 = vmatprep.subr.bf16.mxu0 0
    %307 = vmatpush1.bf16.xpose.msra.mxu0 0
    %308 = vmatprep.subr.bf16.mxu0 0
    %309 = vmatpush1.bf16.xpose.msra.mxu0 0
    %310 = vmatprep.subr.bf16.mxu0 0
    %311 = vmatpush1.bf16.xpose.msra.mxu0 0
    %312 = vmatprep.subr.bf16.mxu0 0
    %313 = vmatpush1.bf16.xpose.msra.mxu0 0
    %314 = vmatprep.subr.bf16.mxu0 0
    %315 = vmatpush1.bf16.xpose.msra.mxu0 0
    %316 = vmatprep.subr.bf16.mxu0 0
    %317 = vmatpush1.bf16.xpose.msra.mxu0 0
    %318 = vmatprep.subr.bf16.mxu0 0
    %319 = vmatpush1.bf16.xpose.msra.mxu0 0
    %320 = vmatprep.subr.bf16.mxu0 0
    %321 = vmatpush1.bf16.xpose.msra.mxu0 0
    %322 = vmatprep.mubr.bf16.mxu0 0
    %323 = vmatmul.mubr.bf16.gmra.mrb[0].mxu0 %v285
    %v324 = vpop.f32.mrb[0].mxu0
    %v325 = vadd.f32 0.0, %v324
    %v326 = vpop.f32.mrb[0].mxu0
    %v327 = vpop.f32.mrb[0].mxu0
    %v328 = vadd.f32 0.0, %v327
    %v329 = vpop.f32.mrb[0].mxu0
    %330 = vdwg.mxu0
    %v331 = vmul.f32 %v325, 0.25
    %v332 = vmul.f32 %v328, 0.25
    %v333 = vadd.f32 %v331, %v23
    %v334 = vadd.f32 %v332, %v24
    %v335 = vsel %vm157, %v333, -inf
    %336 = vmax.xlane.f32.xlu0 %v335
    %v337 = vpop.xlane.xlu0 %336
    %v338 = vsel %vm157, %v334, -inf
    %339 = vmax.xlane.f32.xlu0 %v338
    %v340 = vpop.xlane.xlu0 %339
    %v341 = vsub.f32 %v333, %v337
    %v342 = vsub.f32 %v334, %v340
    %v343 = vmul.f32 %v341, 1.442695
    %v344 = vpow.pop %v343
    %v345 = vmul.f32 %v342, 1.442695
    %v346 = vpow.pop %v345
    %v347 = vsel %vm157, %v344, 0.0
    %348 = vadd.xlane.f32.xlu0 %v347
    %v349 = vpop.xlane.xlu0 %348
    %v350 = vsel %vm157, %v346, 0.0
    %351 = vadd.xlane.f32.xlu0 %v350
    %v352 = vpop.xlane.xlu0 %351
    %v353 = vrcp.pop %v349
    %v354 = vrcp.pop %v352
    %v355 = vmul.f32 %v344, %v353
    %v356 = vmul.f32 %v346, %v354
    %v357 = vpack.c.bf16 %v356, %v355
    %358 = vrot.lane.b32.xlu0 %v153, 48
    %v359 = vpop.permute.xlu0 %358
    %v362 = vsel %vm157, %v357, 0
    %364 = vmatprep.subr.bf16.mxu0 0
    %365 = vmatpush1.bf16.msra.mxu0 %v359
    %366 = vmatprep.subr.bf16.mxu0 0
    %367 = vmatpush1.bf16.msra.mxu0 0
    %368 = vmatprep.subr.bf16.mxu0 0
    %369 = vmatpush1.bf16.msra.mxu0 0
    %370 = vmatprep.subr.bf16.mxu0 0
    %371 = vmatpush1.bf16.msra.mxu0 0
    %372 = vmatprep.subr.bf16.mxu0 0
    %373 = vmatpush1.bf16.msra.mxu0 0
    %374 = vmatprep.subr.bf16.mxu0 0
    %375 = vmatpush1.bf16.msra.mxu0 0
    %376 = vmatprep.subr.bf16.mxu0 0
    %377 = vmatpush1.bf16.msra.mxu0 0
    %378 = vmatprep.subr.bf16.mxu0 0
    %379 = vmatpush1.bf16.msra.mxu0 0
    %380 = vmatprep.subr.bf16.mxu0 0
    %381 = vmatpush1.bf16.msra.mxu0 0
    %382 = vmatprep.subr.bf16.mxu0 0
    %383 = vmatpush1.bf16.msra.mxu0 0
    %384 = vmatprep.subr.bf16.mxu0 0
    %385 = vmatpush1.bf16.msra.mxu0 0
    %386 = vmatprep.subr.bf16.mxu0 0
    %387 = vmatpush1.bf16.msra.mxu0 0
    %388 = vmatprep.subr.bf16.mxu0 0
    %389 = vmatpush1.bf16.msra.mxu0 0
    %390 = vmatprep.subr.bf16.mxu0 0
    %391 = vmatpush1.bf16.msra.mxu0 0
    %392 = vmatprep.subr.bf16.mxu0 0
    %393 = vmatpush1.bf16.msra.mxu0 0
    %394 = vmatprep.subr.bf16.mxu0 0
    %395 = vmatpush1.bf16.msra.mxu0 0
    %396 = vmatprep.mubr.bf16.mxu0 0
    %397 = vmatmul.mubr.bf16.gmra.mrb[0].mxu0 %v362
    %v398 = vpop.f32.mrb[0].mxu0
    %v399 = vadd.f32 0.0, %v398
    %v400 = vpop.f32.mrb[0].mxu0
    %v401 = vpop.f32.mrb[0].mxu0
    %v402 = vadd.f32 0.0, %v401
    %v403 = vpop.f32.mrb[0].mxu0
    %404 = vdwg.mxu0
    %v405 = vpack.c.bf16 %v402, %v399
    %v408 = vunpack.c.l.b16 %v150
    %v409 = vunpack.c.l.b16 %v151
    %v410 = vpack.c.b16 %v409, %v408
    %v413 = vsel %vm157, %v405, 0
    %415 = vmatprep.subr.bf16.mxu0 0
    %416 = vmatpush1.bf16.msra.mxu0 %v410
    %417 = vmatprep.subr.bf16.mxu0 0
    %418 = vmatpush1.bf16.msra.mxu0 0
    %419 = vmatprep.subr.bf16.mxu0 0
    %420 = vmatpush1.bf16.msra.mxu0 0
    %421 = vmatprep.subr.bf16.mxu0 0
    %422 = vmatpush1.bf16.msra.mxu0 0
    %423 = vmatprep.subr.bf16.mxu0 0
    %424 = vmatpush1.bf16.msra.mxu0 0
    %425 = vmatprep.subr.bf16.mxu0 0
    %426 = vmatpush1.bf16.msra.mxu0 0
    %427 = vmatprep.subr.bf16.mxu0 0
    %428 = vmatpush1.bf16.msra.mxu0 0
    %429 = vmatprep.subr.bf16.mxu0 0
    %430 = vmatpush1.bf16.msra.mxu0 0
    %431 = vmatprep.subr.bf16.mxu0 0
    %432 = vmatpush1.bf16.msra.mxu0 0
    %433 = vmatprep.subr.bf16.mxu0 0
    %434 = vmatpush1.bf16.msra.mxu0 0
    %435 = vmatprep.subr.bf16.mxu0 0
    %436 = vmatpush1.bf16.msra.mxu0 0
    %437 = vmatprep.subr.bf16.mxu0 0
    %438 = vmatpush1.bf16.msra.mxu0 0
    %439 = vmatprep.subr.bf16.mxu0 0
    %440 = vmatpush1.bf16.msra.mxu0 0
    %441 = vmatprep.subr.bf16.mxu0 0
    %442 = vmatpush1.bf16.msra.mxu0 0
    %443 = vmatprep.subr.bf16.mxu0 0
    %444 = vmatpush1.bf16.msra.mxu0 0
    %445 = vmatprep.subr.bf16.mxu0 0
    %446 = vmatpush1.bf16.msra.mxu0 0
    %447 = vmatprep.mubr.bf16.mxu0 0
    %448 = vmatmul.mubr.bf16.gmra.mrb[0].mxu0 %v413
    %v449 = vpop.f32.mrb[0].mxu0
    %v450 = vadd.f32 0.0, %v449
    %v451 = vpop.f32.mrb[0].mxu0
    %v452 = vpop.f32.mrb[0].mxu0
    %v453 = vadd.f32 0.0, %v452
    %v454 = vpop.f32.mrb[0].mxu0
    %455 = vdwg.mxu0
    %v458 = vunpack.c.l.b16 %v148
    %v459 = vunpack.c.l.b16 %v149
    %v460 = vpack.c.b16 %v459, %v458
    %v463 = vsel %vm157, %v279, 0
    %465 = vmatprep.subr.bf16.mxu0 0
    %466 = vmatpush1.bf16.msra.mxu0 %v460
    %467 = vmatprep.subr.bf16.mxu0 0
    %468 = vmatpush1.bf16.msra.mxu0 0
    %469 = vmatprep.subr.bf16.mxu0 0
    %470 = vmatpush1.bf16.msra.mxu0 0
    %471 = vmatprep.subr.bf16.mxu0 0
    %472 = vmatpush1.bf16.msra.mxu0 0
    %473 = vmatprep.subr.bf16.mxu0 0
    %474 = vmatpush1.bf16.msra.mxu0 0
    %475 = vmatprep.subr.bf16.mxu0 0
    %476 = vmatpush1.bf16.msra.mxu0 0
    %477 = vmatprep.subr.bf16.mxu0 0
    %478 = vmatpush1.bf16.msra.mxu0 0
    %479 = vmatprep.subr.bf16.mxu0 0
    %480 = vmatpush1.bf16.msra.mxu0 0
    %481 = vmatprep.subr.bf16.mxu0 0
    %482 = vmatpush1.bf16.msra.mxu0 0
    %483 = vmatprep.subr.bf16.mxu0 0
    %484 = vmatpush1.bf16.msra.mxu0 0
    %485 = vmatprep.subr.bf16.mxu0 0
    %486 = vmatpush1.bf16.msra.mxu0 0
    %487 = vmatprep.subr.bf16.mxu0 0
    %488 = vmatpush1.bf16.msra.mxu0 0
    %489 = vmatprep.subr.bf16.mxu0 0
    %490 = vmatpush1.bf16.msra.mxu0 0
    %491 = vmatprep.subr.bf16.mxu0 0
    %492 = vmatpush1.bf16.msra.mxu0 0
    %493 = vmatprep.subr.bf16.mxu0 0
    %494 = vmatpush1.bf16.msra.mxu0 0
    %495 = vmatprep.subr.bf16.mxu0 0
    %496 = vmatpush1.bf16.msra.mxu0 0
    %497 = vmatprep.mubr.bf16.mxu0 0
    %498 = vmatmul.mubr.bf16.gmra.mrb[0].mxu0 %v463
    %v499 = vpop.f32.mrb[0].mxu0
    %v500 = vadd.f32 %v450, %v499
    %v501 = vpop.f32.mrb[0].mxu0
    %v502 = vpop.f32.mrb[0].mxu0
    %v503 = vadd.f32 %v453, %v502
    %v504 = vpop.f32.mrb[0].mxu0
    %505 = vdwg.mxu0
    %v506 = vlaneseq
    %v507 = vshrl.u32 %v506, 7
    %v508 = vsub.s32 0, %v507
    %v509 = vrot.slane %v152, %v508
    %v510 = vadd.f32 %v500, %v509
    %v511 = vadd.f32 %v503, %v509
    %v512 = vadd.f32 %v510, %v80
    %v513 = vadd.f32 %v511, %v81
    %v514 = vld [vmem:[%s4 + $0x6] sm:$0x1]
    %v515 = vld [vmem:[%s4 + $0x7] sm:$0x1]
    %v516 = vsel %vm42, %v512, 0.0
    %517 = vadd.xlane.f32.xlu0 %v516
    %v518 = vpop.xlane.xlu0 %517
    %v519 = vsel %vm42, %v513, 0.0
    %520 = vadd.xlane.f32.xlu0 %v519
    %v521 = vpop.xlane.xlu0 %520
    %v522 = vmul.f32 %v518, %v49
    %v523 = vmul.f32 %v521, %v49
    %v524 = vsub.f32 %v512, %v522
    %v525 = vsub.f32 %v513, %v523
    %v526 = vmul.f32 %v524, %v524
    %v527 = vmul.f32 %v525, %v525
    %v528 = vsel %vm42, %v526, 0.0
    %529 = vadd.xlane.f32.xlu0 %v528
    %v530 = vpop.xlane.xlu0 %529
    %v531 = vsel %vm42, %v527, 0.0
    %532 = vadd.xlane.f32.xlu0 %v531
    %v533 = vpop.xlane.xlu0 %532
    %v534 = vmul.f32 %v530, %v49
    %v535 = vmul.f32 %v533, %v49
    %v536 = vadd.f32 %v534, 1e-06
    %v537 = vadd.f32 %v535, 1e-06
    %v538 = vrsqrt.pop %v536
    %v539 = vrsqrt.pop %v537
    %v540 = vmul.f32 %v524, %v538
    %v541 = vmul.f32 %v525, %v539
    %v542 = vlaneseq
    %v543 = vshrl.u32 %v542, 7
    %v544 = vsub.s32 0, %v543
    %v545 = vrot.slane %v514, %v544
    %v546 = vmul.f32 %v540, %v545
    %v547 = vmul.f32 %v541, %v545
    %v548 = vlaneseq
    %v549 = vshrl.u32 %v548, 7
    %v550 = vsub.s32 0, %v549
    %v551 = vrot.slane %v515, %v550
    %v552 = vadd.f32 %v546, %v551
    %v553 = vadd.f32 %v547, %v551
    %s554 = scalar_lea.vmem %s2, 32
    %v555 = vld [vmem:[%s554] sm:$0xf]
    %v556 = vld [vmem:[%s554 + $0x4] sm:$0xf]
    %v557 = vld [vmem:[%s554 + $0x8] sm:$0xf]
    %v558 = vld [vmem:[%s554 + $0xc] sm:$0xf]
    %v559 = vpack.c.bf16 %v553, %v552
    %v560 = vld [vmem:[%s4 + $0x8] sm:$0x1]
    %v561 = vlaneseq
    %v562 = vshrl.u32 %v561, 7
    %v563 = vsub.s32 0, %v562
    %v564 = vrot.slane %v560, %v563
    %v569 = vunpack.c.l.b16 %v555
    %v570 = vunpack.c.l.b16 %v556
    %v571 = vunpack.c.l.b16 %v557
    %v572 = vunpack.c.l.b16 %v558
    %v573 = vpack.c.b16 %v570, %v569
    %v574 = vpack.c.b16 %v572, %v571
    %v578 = vsel %vm42, %v559, 0
    %580 = vmatprep.subr.bf16.mxu0 0
    %581 = vmatpush1.bf16.msra.mxu0 %v573
    %582 = vmatprep.subr.bf16.mxu0 0
    %583 = vmatpush1.bf16.msra.mxu0 %v574
    %584 = vmatprep.subr.bf16.mxu0 0
    %585 = vmatpush1.bf16.msra.mxu0 0
    %586 = vmatprep.subr.bf16.mxu0 0
    %587 = vmatpush1.bf16.msra.mxu0 0
    %588 = vmatprep.subr.bf16.mxu0 0
    %589 = vmatpush1.bf16.msra.mxu0 0
    %590 = vmatprep.subr.bf16.mxu0 0
    %591 = vmatpush1.bf16.msra.mxu0 0
    %592 = vmatprep.subr.bf16.mxu0 0
    %593 = vmatpush1.bf16.msra.mxu0 0
    %594 = vmatprep.subr.bf16.mxu0 0
    %595 = vmatpush1.bf16.msra.mxu0 0
    %596 = vmatprep.subr.bf16.mxu0 0
    %597 = vmatpush1.bf16.msra.mxu0 0
    %598 = vmatprep.subr.bf16.mxu0 0
    %599 = vmatpush1.bf16.msra.mxu0 0
    %600 = vmatprep.subr.bf16.mxu0 0
    %601 = vmatpush1.bf16.msra.mxu0 0
    %602 = vmatprep.subr.bf16.mxu0 0
    %603 = vmatpush1.bf16.msra.mxu0 0
    %604 = vmatprep.subr.bf16.mxu0 0
    %605 = vmatpush1.bf16.msra.mxu0 0
    %606 = vmatprep.subr.bf16.mxu0 0
    %607 = vmatpush1.bf16.msra.mxu0 0
    %608 = vmatprep.subr.bf16.mxu0 0
    %609 = vmatpush1.bf16.msra.mxu0 0
    %610 = vmatprep.subr.bf16.mxu0 0
    %611 = vmatpush1.bf16.msra.mxu0 0
    %612 = vmatprep.mubr.bf16.mxu0 0
    %613 = vmatmul.mubr.bf16.gmra.mrb[0].mxu0 %v578
    %v614 = vpop.f32.mrb[0].mxu0
    %v615 = vadd.f32 %v564, %v614
    %v616 = vpop.f32.mrb[0].mxu0
    %v617 = vpop.f32.mrb[0].mxu0
    %v618 = vadd.f32 %v564, %v617
    %v619 = vpop.f32.mrb[0].mxu0
    %620 = vdwg.mxu0
    %v621 = vmax.f32 %v615, 0.0
    %v622 = vmax.f32 %v618, 0.0
    %s623 = scalar_lea.vmem %s3, 128
    %v624 = vld [vmem:[%s623] sm:$0xf]
    %v625 = vld [vmem:[%s623 + $0x4] sm:$0xf]
    %v626 = vld [vmem:[%s623 + $0x8] sm:$0xf]
    %v627 = vld [vmem:[%s623 + $0xc] sm:$0xf]
    %v628 = vld [vmem:[%s623 + $0x10] sm:$0xf]
    %v629 = vld [vmem:[%s623 + $0x14] sm:$0xf]
    %v630 = vld [vmem:[%s623 + $0x18] sm:$0xf]
    %v631 = vld [vmem:[%s623 + $0x1c] sm:$0xf]
    %v632 = vpack.c.bf16 %v622, %v621
    %v633 = vld [vmem:[%s4 + $0x9] sm:$0x1]
    %v634 = vlaneseq
    %v635 = vshrl.u32 %v634, 7
    %v636 = vsub.s32 0, %v635
    %v637 = vrot.slane %v633, %v636
    %v646 = vunpack.c.l.b16 %v624
    %v647 = vunpack.c.l.b16 %v625
    %v648 = vunpack.c.l.b16 %v626
    %v649 = vunpack.c.l.b16 %v627
    %v650 = vunpack.c.l.b16 %v628
    %v651 = vunpack.c.l.b16 %v629
    %v652 = vunpack.c.l.b16 %v630
    %v653 = vunpack.c.l.b16 %v631
    %v654 = vpack.c.b16 %v647, %v646
    %v655 = vpack.c.b16 %v649, %v648
    %v656 = vpack.c.b16 %v651, %v650
    %v657 = vpack.c.b16 %v653, %v652
    %vm662 = vcmask 523264
    %v664 = vsel %vm662, %v632, 0
    %666 = vmatprep.subr.bf16.mxu0 0
    %667 = vmatpush1.bf16.msra.mxu0 %v654
    %668 = vmatprep.subr.bf16.mxu0 0
    %669 = vmatpush1.bf16.msra.mxu0 %v655
    %670 = vmatprep.subr.bf16.mxu0 0
    %671 = vmatpush1.bf16.msra.mxu0 %v656
    %672 = vmatprep.subr.bf16.mxu0 0
    %673 = vmatpush1.bf16.msra.mxu0 %v657
    %674 = vmatprep.subr.bf16.mxu0 0
    %675 = vmatpush1.bf16.msra.mxu0 0
    %676 = vmatprep.subr.bf16.mxu0 0
    %677 = vmatpush1.bf16.msra.mxu0 0
    %678 = vmatprep.subr.bf16.mxu0 0
    %679 = vmatpush1.bf16.msra.mxu0 0
    %680 = vmatprep.subr.bf16.mxu0 0
    %681 = vmatpush1.bf16.msra.mxu0 0
    %682 = vmatprep.subr.bf16.mxu0 0
    %683 = vmatpush1.bf16.msra.mxu0 0
    %684 = vmatprep.subr.bf16.mxu0 0
    %685 = vmatpush1.bf16.msra.mxu0 0
    %686 = vmatprep.subr.bf16.mxu0 0
    %687 = vmatpush1.bf16.msra.mxu0 0
    %688 = vmatprep.subr.bf16.mxu0 0
    %689 = vmatpush1.bf16.msra.mxu0 0
    %690 = vmatprep.subr.bf16.mxu0 0
    %691 = vmatpush1.bf16.msra.mxu0 0
    %692 = vmatprep.subr.bf16.mxu0 0
    %693 = vmatpush1.bf16.msra.mxu0 0
    %694 = vmatprep.subr.bf16.mxu0 0
    %695 = vmatpush1.bf16.msra.mxu0 0
    %696 = vmatprep.subr.bf16.mxu0 0
    %697 = vmatpush1.bf16.msra.mxu0 0
    %698 = vmatprep.mubr.bf16.mxu0 0
    %699 = vmatmul.mubr.bf16.gmra.mrb[0].mxu0 %v664
    %v700 = vpop.f32.mrb[0].mxu0
    %v701 = vadd.f32 %v637, %v700
    %v702 = vpop.f32.mrb[0].mxu0
    %v703 = vpop.f32.mrb[0].mxu0
    %v704 = vadd.f32 %v637, %v703
    %v705 = vpop.f32.mrb[0].mxu0
    %706 = vdwg.mxu0
    %v707 = vadd.f32 %v701, %v552
    %v708 = vadd.f32 %v704, %v553
    %v709 = vld [vmem:[%s4 + $0xa] sm:$0x1]
    %v710 = vld [vmem:[%s4 + $0xb] sm:$0x1]
    %v711 = vsel %vm42, %v707, 0.0
    %712 = vadd.xlane.f32.xlu0 %v711
    %v713 = vpop.xlane.xlu0 %712
    %v714 = vsel %vm42, %v708, 0.0
    %715 = vadd.xlane.f32.xlu0 %v714
    %v716 = vpop.xlane.xlu0 %715
    %v717 = vmul.f32 %v713, %v49
    %v718 = vmul.f32 %v716, %v49
    %v719 = vsub.f32 %v707, %v717
    %v720 = vsub.f32 %v708, %v718
    %v721 = vmul.f32 %v719, %v719
    %v722 = vmul.f32 %v720, %v720
    %v723 = vsel %vm42, %v721, 0.0
    %724 = vadd.xlane.f32.xlu0 %v723
    %v725 = vpop.xlane.xlu0 %724
    %v726 = vsel %vm42, %v722, 0.0
    %727 = vadd.xlane.f32.xlu0 %v726
    %v728 = vpop.xlane.xlu0 %727
    %v729 = vmul.f32 %v725, %v49
    %v730 = vmul.f32 %v728, %v49
    %v731 = vadd.f32 %v729, 1e-06
    %v732 = vadd.f32 %v730, 1e-06
    %v733 = vrsqrt.pop %v731
    %v734 = vrsqrt.pop %v732
    %v735 = vmul.f32 %v719, %v733
    %v736 = vmul.f32 %v720, %v734
    %v737 = vlaneseq
    %v738 = vshrl.u32 %v737, 7
    %v739 = vsub.s32 0, %v738
    %v740 = vrot.slane %v709, %v739
    %v741 = vmul.f32 %v735, %v740
    %v742 = vmul.f32 %v736, %v740
    %v743 = vlaneseq
    %v744 = vshrl.u32 %v743, 7
    %v745 = vsub.s32 0, %v744
    %v746 = vrot.slane %v710, %v745
    %v747 = vadd.f32 %v741, %v746
    %v748 = vadd.f32 %v742, %v746
    %s749 = scalar_lea.vmem %s2, 16
    %v750 = vld [vmem:[%s749] sm:$0xf]
    %v751 = vld [vmem:[%s749 + $0x4] sm:$0xf]
    %v752 = vld [vmem:[%s749 + $0x8] sm:$0xf]
    %v753 = vld [vmem:[%s749 + $0xc] sm:$0xf]
    %v754 = vpack.c.bf16 %v748, %v747
    %v755 = vld [vmem:[%s4 + $0xc] sm:$0x1]
    %v756 = vlaneseq
    %v757 = vshrl.u32 %v756, 7
    %v758 = vsub.s32 0, %v757
    %v759 = vrot.slane %v755, %v758
    %v764 = vunpack.c.l.b16 %v750
    %v765 = vunpack.c.l.b16 %v751
    %v766 = vunpack.c.l.b16 %v752
    %v767 = vunpack.c.l.b16 %v753
    %v768 = vpack.c.b16 %v765, %v764
    %v769 = vpack.c.b16 %v767, %v766
    %v773 = vsel %vm42, %v754, 0
    %775 = vmatprep.subr.bf16.mxu0 0
    %776 = vmatpush1.bf16.msra.mxu0 %v768
    %777 = vmatprep.subr.bf16.mxu0 0
    %778 = vmatpush1.bf16.msra.mxu0 %v769
    %779 = vmatprep.subr.bf16.mxu0 0
    %780 = vmatpush1.bf16.msra.mxu0 0
    %781 = vmatprep.subr.bf16.mxu0 0
    %782 = vmatpush1.bf16.msra.mxu0 0
    %783 = vmatprep.subr.bf16.mxu0 0
    %784 = vmatpush1.bf16.msra.mxu0 0
    %785 = vmatprep.subr.bf16.mxu0 0
    %786 = vmatpush1.bf16.msra.mxu0 0
    %787 = vmatprep.subr.bf16.mxu0 0
    %788 = vmatpush1.bf16.msra.mxu0 0
    %789 = vmatprep.subr.bf16.mxu0 0
    %790 = vmatpush1.bf16.msra.mxu0 0
    %791 = vmatprep.subr.bf16.mxu0 0
    %792 = vmatpush1.bf16.msra.mxu0 0
    %793 = vmatprep.subr.bf16.mxu0 0
    %794 = vmatpush1.bf16.msra.mxu0 0
    %795 = vmatprep.subr.bf16.mxu0 0
    %796 = vmatpush1.bf16.msra.mxu0 0
    %797 = vmatprep.subr.bf16.mxu0 0
    %798 = vmatpush1.bf16.msra.mxu0 0
    %799 = vmatprep.subr.bf16.mxu0 0
    %800 = vmatpush1.bf16.msra.mxu0 0
    %801 = vmatprep.subr.bf16.mxu0 0
    %802 = vmatpush1.bf16.msra.mxu0 0
    %803 = vmatprep.subr.bf16.mxu0 0
    %804 = vmatpush1.bf16.msra.mxu0 0
    %805 = vmatprep.subr.bf16.mxu0 0
    %806 = vmatpush1.bf16.msra.mxu0 0
    %807 = vmatprep.mubr.bf16.mxu0 0
    %808 = vmatmul.mubr.bf16.gmra.mrb[0].mxu0 %v773
    %v809 = vpop.f32.mrb[0].mxu0
    %v810 = vadd.f32 %v759, %v809
    %v811 = vpop.f32.mrb[0].mxu0
    %v812 = vpop.f32.mrb[0].mxu0
    %v813 = vadd.f32 %v759, %v812
    %v814 = vpop.f32.mrb[0].mxu0
    %815 = vdwg.mxu0
    %s816 = scalar_lea.vmem %s3, 64
    %v817 = vld [vmem:[%s816] sm:$0xf]
    %v818 = vld [vmem:[%s816 + $0x4] sm:$0xf]
    %v819 = vld [vmem:[%s816 + $0x8] sm:$0xf]
    %v820 = vld [vmem:[%s816 + $0xc] sm:$0xf]
    %v821 = vld [vmem:[%s4 + $0xd] sm:$0x1]
    %v822 = vpack.c.bf16 %v813, %v810
    %824 = vrot.lane.b32.xlu0 %v822, 96
    %v825 = vpop.permute.xlu0 %824
    %v827 = vsel %vm157, %v822, 0
    %v830 = vsel %vm157, %v825, 0
    %832 = vmatprep.subr.bf16.mxu0 0
    %833 = vmatpush1.bf16.xpose.msra.mxu0 %v830
    %834 = vmatprep.subr.bf16.mxu0 0
    %835 = vmatpush1.bf16.xpose.msra.mxu0 0
    %836 = vmatprep.subr.bf16.mxu0 0
    %837 = vmatpush1.bf16.xpose.msra.mxu0 0
    %838 = vmatprep.subr.bf16.mxu0 0
    %839 = vmatpush1.bf16.xpose.msra.mxu0 0
    %840 = vmatprep.subr.bf16.mxu0 0
    %841 = vmatpush1.bf16.xpose.msra.mxu0 0
    %842 = vmatprep.subr.bf16.mxu0 0
    %843 = vmatpush1.bf16.xpose.msra.mxu0 0
    %844 = vmatprep.subr.bf16.mxu0 0
    %845 = vmatpush1.bf16.xpose.msra.mxu0 0
    %846 = vmatprep.subr.bf16.mxu0 0
    %847 = vmatpush1.bf16.xpose.msra.mxu0 0
    %848 = vmatprep.subr.bf16.mxu0 0
    %849 = vmatpush1.bf16.xpose.msra.mxu0 0
    %850 = vmatprep.subr.bf16.mxu0 0
    %851 = vmatpush1.bf16.xpose.msra.mxu0 0
    %852 = vmatprep.subr.bf16.mxu0 0
    %853 = vmatpush1.bf16.xpose.msra.mxu0 0
    %854 = vmatprep.subr.bf16.mxu0 0
    %855 = vmatpush1.bf16.xpose.msra.mxu0 0
    %856 = vmatprep.subr.bf16.mxu0 0
    %857 = vmatpush1.bf16.xpose.msra.mxu0 0
    %858 = vmatprep.subr.bf16.mxu0 0
    %859 = vmatpush1.bf16.xpose.msra.mxu0 0
    %860 = vmatprep.subr.bf16.mxu0 0
    %861 = vmatpush1.bf16.xpose.msra.mxu0 0
    %862 = vmatprep.subr.bf16.mxu0 0
    %863 = vmatpush1.bf16.xpose.msra.mxu0 0
    %864 = vmatprep.mubr.bf16.mxu0 0
    %865 = vmatmul.mubr.bf16.gmra.mrb[0].mxu0 %v827
    %v866 = vpop.f32.mrb[0].mxu0
    %v867 = vadd.f32 0.0, %v866
    %v868 = vpop.f32.mrb[0].mxu0
    %v869 = vpop.f32.mrb[0].mxu0
    %v870 = vadd.f32 0.0, %v869
    %v871 = vpop.f32.mrb[0].mxu0
    %872 = vdwg.mxu0
    %v873 = vmul.f32 %v867, 0.25
    %v874 = vmul.f32 %v870, 0.25
    %v875 = vadd.f32 %v873, %v23
    %v876 = vadd.f32 %v874, %v24
    %v877 = vsel %vm157, %v875, -inf
    %878 = vmax.xlane.f32.xlu0 %v877
    %v879 = vpop.xlane.xlu0 %878
    %v880 = vsel %vm157, %v876, -inf
    %881 = vmax.xlane.f32.xlu0 %v880
    %v882 = vpop.xlane.xlu0 %881
    %v883 = vsub.f32 %v875, %v879
    %v884 = vsub.f32 %v876, %v882
    %v885 = vmul.f32 %v883, 1.442695
    %v886 = vpow.pop %v885
    %v887 = vmul.f32 %v884, 1.442695
    %v888 = vpow.pop %v887
    %v889 = vsel %vm157, %v886, 0.0
    %890 = vadd.xlane.f32.xlu0 %v889
    %v891 = vpop.xlane.xlu0 %890
    %v892 = vsel %vm157, %v888, 0.0
    %893 = vadd.xlane.f32.xlu0 %v892
    %v894 = vpop.xlane.xlu0 %893
    %v895 = vrcp.pop %v891
    %v896 = vrcp.pop %v894
    %v897 = vmul.f32 %v886, %v895
    %v898 = vmul.f32 %v888, %v896
    %v899 = vpack.c.bf16 %v898, %v897
    %900 = vrot.lane.b32.xlu0 %v822, 64
    %v901 = vpop.permute.xlu0 %900
    %v904 = vsel %vm157, %v899, 0
    %906 = vmatprep.subr.bf16.mxu0 0
    %907 = vmatpush1.bf16.msra.mxu0 %v901
    %908 = vmatprep.subr.bf16.mxu0 0
    %909 = vmatpush1.bf16.msra.mxu0 0
    %910 = vmatprep.subr.bf16.mxu0 0
    %911 = vmatpush1.bf16.msra.mxu0 0
    %912 = vmatprep.subr.bf16.mxu0 0
    %913 = vmatpush1.bf16.msra.mxu0 0
    %914 = vmatprep.subr.bf16.mxu0 0
    %915 = vmatpush1.bf16.msra.mxu0 0
    %916 = vmatprep.subr.bf16.mxu0 0
    %917 = vmatpush1.bf16.msra.mxu0 0
    %918 = vmatprep.subr.bf16.mxu0 0
    %919 = vmatpush1.bf16.msra.mxu0 0
    %920 = vmatprep.subr.bf16.mxu0 0
    %921 = vmatpush1.bf16.msra.mxu0 0
    %922 = vmatprep.subr.bf16.mxu0 0
    %923 = vmatpush1.bf16.msra.mxu0 0
    %924 = vmatprep.subr.bf16.mxu0 0
    %925 = vmatpush1.bf16.msra.mxu0 0
    %926 = vmatprep.subr.bf16.mxu0 0
    %927 = vmatpush1.bf16.msra.mxu0 0
    %928 = vmatprep.subr.bf16.mxu0 0
    %929 = vmatpush1.bf16.msra.mxu0 0
    %930 = vmatprep.subr.bf16.mxu0 0
    %931 = vmatpush1.bf16.msra.mxu0 0
    %932 = vmatprep.subr.bf16.mxu0 0
    %933 = vmatpush1.bf16.msra.mxu0 0
    %934 = vmatprep.subr.bf16.mxu0 0
    %935 = vmatpush1.bf16.msra.mxu0 0
    %936 = vmatprep.subr.bf16.mxu0 0
    %937 = vmatpush1.bf16.msra.mxu0 0
    %938 = vmatprep.mubr.bf16.mxu0 0
    %939 = vmatmul.mubr.bf16.gmra.mrb[0].mxu0 %v904
    %v940 = vpop.f32.mrb[0].mxu0
    %v941 = vadd.f32 0.0, %v940
    %v942 = vpop.f32.mrb[0].mxu0
    %v943 = vpop.f32.mrb[0].mxu0
    %v944 = vadd.f32 0.0, %v943
    %v945 = vpop.f32.mrb[0].mxu0
    %946 = vdwg.mxu0
    %v947 = vpack.c.bf16 %v944, %v941
    %948 = vrot.lane.b32.xlu0 %v822, 112
    %v949 = vpop.permute.xlu0 %948
    %950 = vrot.lane.b32.xlu0 %v822, 80
    %v951 = vpop.permute.xlu0 %950
    %v953 = vsel %vm157, %v949, 0
    %v956 = vsel %vm157, %v951, 0
    %958 = vmatprep.subr.bf16.mxu0 0
    %959 = vmatpush1.bf16.xpose.msra.mxu0 %v956
    %960 = vmatprep.subr.bf16.mxu0 0
    %961 = vmatpush1.bf16.xpose.msra.mxu0 0
    %962 = vmatprep.subr.bf16.mxu0 0
    %963 = vmatpush1.bf16.xpose.msra.mxu0 0
    %964 = vmatprep.subr.bf16.mxu0 0
    %965 = vmatpush1.bf16.xpose.msra.mxu0 0
    %966 = vmatprep.subr.bf16.mxu0 0
    %967 = vmatpush1.bf16.xpose.msra.mxu0 0
    %968 = vmatprep.subr.bf16.mxu0 0
    %969 = vmatpush1.bf16.xpose.msra.mxu0 0
    %970 = vmatprep.subr.bf16.mxu0 0
    %971 = vmatpush1.bf16.xpose.msra.mxu0 0
    %972 = vmatprep.subr.bf16.mxu0 0
    %973 = vmatpush1.bf16.xpose.msra.mxu0 0
    %974 = vmatprep.subr.bf16.mxu0 0
    %975 = vmatpush1.bf16.xpose.msra.mxu0 0
    %976 = vmatprep.subr.bf16.mxu0 0
    %977 = vmatpush1.bf16.xpose.msra.mxu0 0
    %978 = vmatprep.subr.bf16.mxu0 0
    %979 = vmatpush1.bf16.xpose.msra.mxu0 0
    %980 = vmatprep.subr.bf16.mxu0 0
    %981 = vmatpush1.bf16.xpose.msra.mxu0 0
    %982 = vmatprep.subr.bf16.mxu0 0
    %983 = vmatpush1.bf16.xpose.msra.mxu0 0
    %984 = vmatprep.subr.bf16.mxu0 0
    %985 = vmatpush1.bf16.xpose.msra.mxu0 0
    %986 = vmatprep.subr.bf16.mxu0 0
    %987 = vmatpush1.bf16.xpose.msra.mxu0 0
    %988 = vmatprep.subr.bf16.mxu0 0
    %989 = vmatpush1.bf16.xpose.msra.mxu0 0
    %990 = vmatprep.mubr.bf16.mxu0 0
    %991 = vmatmul.mubr.bf16.gmra.mrb[0].mxu0 %v953
    %v992 = vpop.f32.mrb[0].mxu0
    %v993 = vadd.f32 0.0, %v992
    %v994 = vpop.f32.mrb[0].mxu0
    %v995 = vpop.f32.mrb[0].mxu0
    %v996 = vadd.f32 0.0, %v995
    %v997 = vpop.f32.mrb[0].mxu0
    %998 = vdwg.mxu0
    %v999 = vmul.f32 %v993, 0.25
    %v1000 = vmul.f32 %v996, 0.25
    %v1001 = vadd.f32 %v999, %v23
    %v1002 = vadd.f32 %v1000, %v24
    %v1003 = vsel %vm157, %v1001, -inf
    %1004 = vmax.xlane.f32.xlu0 %v1003
    %v1005 = vpop.xlane.xlu0 %1004
    %v1006 = vsel %vm157, %v1002, -inf
    %1007 = vmax.xlane.f32.xlu0 %v1006
    %v1008 = vpop.xlane.xlu0 %1007
    %v1009 = vsub.f32 %v1001, %v1005
    %v1010 = vsub.f32 %v1002, %v1008
    %v1011 = vmul.f32 %v1009, 1.442695
    %v1012 = vpow.pop %v1011
    %v1013 = vmul.f32 %v1010, 1.442695
    %v1014 = vpow.pop %v1013
    %v1015 = vsel %vm157, %v1012, 0.0
    %1016 = vadd.xlane.f32.xlu0 %v1015
    %v1017 = vpop.xlane.xlu0 %1016
    %v1018 = vsel %vm157, %v1014, 0.0
    %1019 = vadd.xlane.f32.xlu0 %v1018
    %v1020 = vpop.xlane.xlu0 %1019
    %v1021 = vrcp.pop %v1017
    %v1022 = vrcp.pop %v1020
    %v1023 = vmul.f32 %v1012, %v1021
    %v1024 = vmul.f32 %v1014, %v1022
    %v1025 = vpack.c.bf16 %v1024, %v1023
    %1026 = vrot.lane.b32.xlu0 %v822, 48
    %v1027 = vpop.permute.xlu0 %1026
    %v1030 = vsel %vm157, %v1025, 0
    %1032 = vmatprep.subr.bf16.mxu0 0
    %1033 = vmatpush1.bf16.msra.mxu0 %v1027
    %1034 = vmatprep.subr.bf16.mxu0 0
    %1035 = vmatpush1.bf16.msra.mxu0 0
    %1036 = vmatprep.subr.bf16.mxu0 0
    %1037 = vmatpush1.bf16.msra.mxu0 0
    %1038 = vmatprep.subr.bf16.mxu0 0
    %1039 = vmatpush1.bf16.msra.mxu0 0
    %1040 = vmatprep.subr.bf16.mxu0 0
    %1041 = vmatpush1.bf16.msra.mxu0 0
    %1042 = vmatprep.subr.bf16.mxu0 0
    %1043 = vmatpush1.bf16.msra.mxu0 0
    %1044 = vmatprep.subr.bf16.mxu0 0
    %1045 = vmatpush1.bf16.msra.mxu0 0
    %1046 = vmatprep.subr.bf16.mxu0 0
    %1047 = vmatpush1.bf16.msra.mxu0 0
    %1048 = vmatprep.subr.bf16.mxu0 0
    %1049 = vmatpush1.bf16.msra.mxu0 0
    %1050 = vmatprep.subr.bf16.mxu0 0
    %1051 = vmatpush1.bf16.msra.mxu0 0
    %1052 = vmatprep.subr.bf16.mxu0 0
    %1053 = vmatpush1.bf16.msra.mxu0 0
    %1054 = vmatprep.subr.bf16.mxu0 0
    %1055 = vmatpush1.bf16.msra.mxu0 0
    %1056 = vmatprep.subr.bf16.mxu0 0
    %1057 = vmatpush1.bf16.msra.mxu0 0
    %1058 = vmatprep.subr.bf16.mxu0 0
    %1059 = vmatpush1.bf16.msra.mxu0 0
    %1060 = vmatprep.subr.bf16.mxu0 0
    %1061 = vmatpush1.bf16.msra.mxu0 0
    %1062 = vmatprep.subr.bf16.mxu0 0
    %1063 = vmatpush1.bf16.msra.mxu0 0
    %1064 = vmatprep.mubr.bf16.mxu0 0
    %1065 = vmatmul.mubr.bf16.gmra.mrb[0].mxu0 %v1030
    %v1066 = vpop.f32.mrb[0].mxu0
    %v1067 = vadd.f32 0.0, %v1066
    %v1068 = vpop.f32.mrb[0].mxu0
    %v1069 = vpop.f32.mrb[0].mxu0
    %v1070 = vadd.f32 0.0, %v1069
    %v1071 = vpop.f32.mrb[0].mxu0
    %1072 = vdwg.mxu0
    %v1073 = vpack.c.bf16 %v1070, %v1067
    %v1076 = vunpack.c.l.b16 %v819
    %v1077 = vunpack.c.l.b16 %v820
    %v1078 = vpack.c.b16 %v1077, %v1076
    %v1081 = vsel %vm157, %v1073, 0
    %1083 = vmatprep.subr.bf16.mxu0 0
    %1084 = vmatpush1.bf16.msra.mxu0 %v1078
    %1085 = vmatprep.subr.bf16.mxu0 0
    %1086 = vmatpush1.bf16.msra.mxu0 0
    %1087 = vmatprep.subr.bf16.mxu0 0
    %1088 = vmatpush1.bf16.msra.mxu0 0
    %1089 = vmatprep.subr.bf16.mxu0 0
    %1090 = vmatpush1.bf16.msra.mxu0 0
    %1091 = vmatprep.subr.bf16.mxu0 0
    %1092 = vmatpush1.bf16.msra.mxu0 0
    %1093 = vmatprep.subr.bf16.mxu0 0
    %1094 = vmatpush1.bf16.msra.mxu0 0
    %1095 = vmatprep.subr.bf16.mxu0 0
    %1096 = vmatpush1.bf16.msra.mxu0 0
    %1097 = vmatprep.subr.bf16.mxu0 0
    %1098 = vmatpush1.bf16.msra.mxu0 0
    %1099 = vmatprep.subr.bf16.mxu0 0
    %1100 = vmatpush1.bf16.msra.mxu0 0
    %1101 = vmatprep.subr.bf16.mxu0 0
    %1102 = vmatpush1.bf16.msra.mxu0 0
    %1103 = vmatprep.subr.bf16.mxu0 0
    %1104 = vmatpush1.bf16.msra.mxu0 0
    %1105 = vmatprep.subr.bf16.mxu0 0
    %1106 = vmatpush1.bf16.msra.mxu0 0
    %1107 = vmatprep.subr.bf16.mxu0 0
    %1108 = vmatpush1.bf16.msra.mxu0 0
    %1109 = vmatprep.subr.bf16.mxu0 0
    %1110 = vmatpush1.bf16.msra.mxu0 0
    %1111 = vmatprep.subr.bf16.mxu0 0
    %1112 = vmatpush1.bf16.msra.mxu0 0
    %1113 = vmatprep.subr.bf16.mxu0 0
    %1114 = vmatpush1.bf16.msra.mxu0 0
    %1115 = vmatprep.mubr.bf16.mxu0 0
    %1116 = vmatmul.mubr.bf16.gmra.mrb[0].mxu0 %v1081
    %v1117 = vpop.f32.mrb[0].mxu0
    %v1118 = vadd.f32 0.0, %v1117
    %v1119 = vpop.f32.mrb[0].mxu0
    %v1120 = vpop.f32.mrb[0].mxu0
    %v1121 = vadd.f32 0.0, %v1120
    %v1122 = vpop.f32.mrb[0].mxu0
    %1123 = vdwg.mxu0
    %v1126 = vunpack.c.l.b16 %v817
    %v1127 = vunpack.c.l.b16 %v818
    %v1128 = vpack.c.b16 %v1127, %v1126
    %v1131 = vsel %vm157, %v947, 0
    %1133 = vmatprep.subr.bf16.mxu0 0
    %1134 = vmatpush1.bf16.msra.mxu0 %v1128
    %1135 = vmatprep.subr.bf16.mxu0 0
    %1136 = vmatpush1.bf16.msra.mxu0 0
    %1137 = vmatprep.subr.bf16.mxu0 0
    %1138 = vmatpush1.bf16.msra.mxu0 0
    %1139 = vmatprep.subr.bf16.mxu0 0
    %1140 = vmatpush1.bf16.msra.mxu0 0
    %1141 = vmatprep.subr.bf16.mxu0 0
    %1142 = vmatpush1.bf16.msra.mxu0 0
    %1143 = vmatprep.subr.bf16.mxu0 0
    %1144 = vmatpush1.bf16.msra.mxu0 0
    %1145 = vmatprep.subr.bf16.mxu0 0
    %1146 = vmatpush1.bf16.msra.mxu0 0
    %1147 = vmatprep.subr.bf16.mxu0 0
    %1148 = vmatpush1.bf16.msra.mxu0 0
    %1149 = vmatprep.subr.bf16.mxu0 0
    %1150 = vmatpush1.bf16.msra.mxu0 0
    %1151 = vmatprep.subr.bf16.mxu0 0
    %1152 = vmatpush1.bf16.msra.mxu0 0
    %1153 = vmatprep.subr.bf16.mxu0 0
    %1154 = vmatpush1.bf16.msra.mxu0 0
    %1155 = vmatprep.subr.bf16.mxu0 0
    %1156 = vmatpush1.bf16.msra.mxu0 0
    %1157 = vmatprep.subr.bf16.mxu0 0
    %1158 = vmatpush1.bf16.msra.mxu0 0
    %1159 = vmatprep.subr.bf16.mxu0 0
    %1160 = vmatpush1.bf16.msra.mxu0 0
    %1161 = vmatprep.subr.bf16.mxu0 0
    %1162 = vmatpush1.bf16.msra.mxu0 0
    %1163 = vmatprep.subr.bf16.mxu0 0
    %1164 = vmatpush1.bf16.msra.mxu0 0
    %1165 = vmatprep.mubr.bf16.mxu0 0
    %1166 = vmatmul.mubr.bf16.gmra.mrb[0].mxu0 %v1131
    %v1167 = vpop.f32.mrb[0].mxu0
    %v1168 = vadd.f32 %v1118, %v1167
    %v1169 = vpop.f32.mrb[0].mxu0
    %v1170 = vpop.f32.mrb[0].mxu0
    %v1171 = vadd.f32 %v1121, %v1170
    %v1172 = vpop.f32.mrb[0].mxu0
    %1173 = vdwg.mxu0
    %v1174 = vlaneseq
    %v1175 = vshrl.u32 %v1174, 7
    %v1176 = vsub.s32 0, %v1175
    %v1177 = vrot.slane %v821, %v1176
    %v1178 = vadd.f32 %v1168, %v1177
    %v1179 = vadd.f32 %v1171, %v1177
    %v1180 = vadd.f32 %v1178, %v747
    %v1181 = vadd.f32 %v1179, %v748
    %v1182 = vld [vmem:[%s4 + $0xe] sm:$0x1]
    %v1183 = vld [vmem:[%s4 + $0xf] sm:$0x1]
    %v1184 = vsel %vm42, %v1180, 0.0
    %1185 = vadd.xlane.f32.xlu0 %v1184
    %v1186 = vpop.xlane.xlu0 %1185
    %v1187 = vsel %vm42, %v1181, 0.0
    %1188 = vadd.xlane.f32.xlu0 %v1187
    %v1189 = vpop.xlane.xlu0 %1188
    %v1190 = vmul.f32 %v1186, %v49
    %v1191 = vmul.f32 %v1189, %v49
    %v1192 = vsub.f32 %v1180, %v1190
    %v1193 = vsub.f32 %v1181, %v1191
    %v1194 = vmul.f32 %v1192, %v1192
    %v1195 = vmul.f32 %v1193, %v1193
    %v1196 = vsel %vm42, %v1194, 0.0
    %1197 = vadd.xlane.f32.xlu0 %v1196
    %v1198 = vpop.xlane.xlu0 %1197
    %v1199 = vsel %vm42, %v1195, 0.0
    %1200 = vadd.xlane.f32.xlu0 %v1199
    %v1201 = vpop.xlane.xlu0 %1200
    %v1202 = vmul.f32 %v1198, %v49
    %v1203 = vmul.f32 %v1201, %v49
    %v1204 = vadd.f32 %v1202, 1e-06
    %v1205 = vadd.f32 %v1203, 1e-06
    %v1206 = vrsqrt.pop %v1204
    %v1207 = vrsqrt.pop %v1205
    %v1208 = vmul.f32 %v1192, %v1206
    %v1209 = vmul.f32 %v1193, %v1207
    %v1210 = vlaneseq
    %v1211 = vshrl.u32 %v1210, 7
    %v1212 = vsub.s32 0, %v1211
    %v1213 = vrot.slane %v1182, %v1212
    %v1214 = vmul.f32 %v1208, %v1213
    %v1215 = vmul.f32 %v1209, %v1213
    %v1216 = vlaneseq
    %v1217 = vshrl.u32 %v1216, 7
    %v1218 = vsub.s32 0, %v1217
    %v1219 = vrot.slane %v1183, %v1218
    %v1220 = vadd.f32 %v1214, %v1219
    %v1221 = vadd.f32 %v1215, %v1219
    %s1222 = scalar_lea.vmem %s2, 48
    %v1223 = vld [vmem:[%s1222] sm:$0xf]
    %v1224 = vld [vmem:[%s1222 + $0x4] sm:$0xf]
    %v1225 = vld [vmem:[%s1222 + $0x8] sm:$0xf]
    %v1226 = vld [vmem:[%s1222 + $0xc] sm:$0xf]
    %v1227 = vpack.c.bf16 %v1221, %v1220
    %v1228 = vld [vmem:[%s4 + $0x10] sm:$0x1]
    %v1229 = vlaneseq
    %v1230 = vshrl.u32 %v1229, 7
    %v1231 = vsub.s32 0, %v1230
    %v1232 = vrot.slane %v1228, %v1231
    %v1237 = vunpack.c.l.b16 %v1223
    %v1238 = vunpack.c.l.b16 %v1224
    %v1239 = vunpack.c.l.b16 %v1225
    %v1240 = vunpack.c.l.b16 %v1226
    %v1241 = vpack.c.b16 %v1238, %v1237
    %v1242 = vpack.c.b16 %v1240, %v1239
    %v1246 = vsel %vm42, %v1227, 0
    %1248 = vmatprep.subr.bf16.mxu0 0
    %1249 = vmatpush1.bf16.msra.mxu0 %v1241
    %1250 = vmatprep.subr.bf16.mxu0 0
    %1251 = vmatpush1.bf16.msra.mxu0 %v1242
    %1252 = vmatprep.subr.bf16.mxu0 0
    %1253 = vmatpush1.bf16.msra.mxu0 0
    %1254 = vmatprep.subr.bf16.mxu0 0
    %1255 = vmatpush1.bf16.msra.mxu0 0
    %1256 = vmatprep.subr.bf16.mxu0 0
    %1257 = vmatpush1.bf16.msra.mxu0 0
    %1258 = vmatprep.subr.bf16.mxu0 0
    %1259 = vmatpush1.bf16.msra.mxu0 0
    %1260 = vmatprep.subr.bf16.mxu0 0
    %1261 = vmatpush1.bf16.msra.mxu0 0
    %1262 = vmatprep.subr.bf16.mxu0 0
    %1263 = vmatpush1.bf16.msra.mxu0 0
    %1264 = vmatprep.subr.bf16.mxu0 0
    %1265 = vmatpush1.bf16.msra.mxu0 0
    %1266 = vmatprep.subr.bf16.mxu0 0
    %1267 = vmatpush1.bf16.msra.mxu0 0
    %1268 = vmatprep.subr.bf16.mxu0 0
    %1269 = vmatpush1.bf16.msra.mxu0 0
    %1270 = vmatprep.subr.bf16.mxu0 0
    %1271 = vmatpush1.bf16.msra.mxu0 0
    %1272 = vmatprep.subr.bf16.mxu0 0
    %1273 = vmatpush1.bf16.msra.mxu0 0
    %1274 = vmatprep.subr.bf16.mxu0 0
    %1275 = vmatpush1.bf16.msra.mxu0 0
    %1276 = vmatprep.subr.bf16.mxu0 0
    %1277 = vmatpush1.bf16.msra.mxu0 0
    %1278 = vmatprep.subr.bf16.mxu0 0
    %1279 = vmatpush1.bf16.msra.mxu0 0
    %1280 = vmatprep.mubr.bf16.mxu0 0
    %1281 = vmatmul.mubr.bf16.gmra.mrb[0].mxu0 %v1246
    %v1282 = vpop.f32.mrb[0].mxu0
    %v1283 = vadd.f32 %v1232, %v1282
    %v1284 = vpop.f32.mrb[0].mxu0
    %v1285 = vpop.f32.mrb[0].mxu0
    %v1286 = vadd.f32 %v1232, %v1285
    %v1287 = vpop.f32.mrb[0].mxu0
    %1288 = vdwg.mxu0
    %v1289 = vmax.f32 %v1283, 0.0
    %v1290 = vmax.f32 %v1286, 0.0
    %s1291 = scalar_lea.vmem %s3, 192
    %v1292 = vld [vmem:[%s1291] sm:$0xf]
    %v1293 = vld [vmem:[%s1291 + $0x4] sm:$0xf]
    %v1294 = vld [vmem:[%s1291 + $0x8] sm:$0xf]
    %v1295 = vld [vmem:[%s1291 + $0xc] sm:$0xf]
    %v1296 = vld [vmem:[%s1291 + $0x10] sm:$0xf]
    %v1297 = vld [vmem:[%s1291 + $0x14] sm:$0xf]
    %v1298 = vld [vmem:[%s1291 + $0x18] sm:$0xf]
    %v1299 = vld [vmem:[%s1291 + $0x1c] sm:$0xf]
    %v1300 = vpack.c.bf16 %v1290, %v1289
    %v1301 = vld [vmem:[%s4 + $0x11] sm:$0x1]
    %v1302 = vlaneseq
    %v1303 = vshrl.u32 %v1302, 7
    %v1304 = vsub.s32 0, %v1303
    %v1305 = vrot.slane %v1301, %v1304
    %v1314 = vunpack.c.l.b16 %v1292
    %v1315 = vunpack.c.l.b16 %v1293
    %v1316 = vunpack.c.l.b16 %v1294
    %v1317 = vunpack.c.l.b16 %v1295
    %v1318 = vunpack.c.l.b16 %v1296
    %v1319 = vunpack.c.l.b16 %v1297
    %v1320 = vunpack.c.l.b16 %v1298
    %v1321 = vunpack.c.l.b16 %v1299
    %v1322 = vpack.c.b16 %v1315, %v1314
    %v1323 = vpack.c.b16 %v1317, %v1316
    %v1324 = vpack.c.b16 %v1319, %v1318
    %v1325 = vpack.c.b16 %v1321, %v1320
    %v1331 = vsel %vm662, %v1300, 0
    %1333 = vmatprep.subr.bf16.mxu0 0
    %1334 = vmatpush1.bf16.msra.mxu0 %v1322
    %1335 = vmatprep.subr.bf16.mxu0 0
    %1336 = vmatpush1.bf16.msra.mxu0 %v1323
    %1337 = vmatprep.subr.bf16.mxu0 0
    %1338 = vmatpush1.bf16.msra.mxu0 %v1324
    %1339 = vmatprep.subr.bf16.mxu0 0
    %1340 = vmatpush1.bf16.msra.mxu0 %v1325
    %1341 = vmatprep.subr.bf16.mxu0 0
    %1342 = vmatpush1.bf16.msra.mxu0 0
    %1343 = vmatprep.subr.bf16.mxu0 0
    %1344 = vmatpush1.bf16.msra.mxu0 0
    %1345 = vmatprep.subr.bf16.mxu0 0
    %1346 = vmatpush1.bf16.msra.mxu0 0
    %1347 = vmatprep.subr.bf16.mxu0 0
    %1348 = vmatpush1.bf16.msra.mxu0 0
    %1349 = vmatprep.subr.bf16.mxu0 0
    %1350 = vmatpush1.bf16.msra.mxu0 0
    %1351 = vmatprep.subr.bf16.mxu0 0
    %1352 = vmatpush1.bf16.msra.mxu0 0
    %1353 = vmatprep.subr.bf16.mxu0 0
    %1354 = vmatpush1.bf16.msra.mxu0 0
    %1355 = vmatprep.subr.bf16.mxu0 0
    %1356 = vmatpush1.bf16.msra.mxu0 0
    %1357 = vmatprep.subr.bf16.mxu0 0
    %1358 = vmatpush1.bf16.msra.mxu0 0
    %1359 = vmatprep.subr.bf16.mxu0 0
    %1360 = vmatpush1.bf16.msra.mxu0 0
    %1361 = vmatprep.subr.bf16.mxu0 0
    %1362 = vmatpush1.bf16.msra.mxu0 0
    %1363 = vmatprep.subr.bf16.mxu0 0
    %1364 = vmatpush1.bf16.msra.mxu0 0
    %1365 = vmatprep.mubr.bf16.mxu0 0
    %1366 = vmatmul.mubr.bf16.gmra.mrb[0].mxu0 %v1331
    %v1367 = vpop.f32.mrb[0].mxu0
    %v1368 = vadd.f32 %v1305, %v1367
    %v1369 = vpop.f32.mrb[0].mxu0
    %v1370 = vpop.f32.mrb[0].mxu0
    %v1371 = vadd.f32 %v1305, %v1370
    %v1372 = vpop.f32.mrb[0].mxu0
    %1373 = vdwg.mxu0
    %v1374 = vadd.f32 %v1368, %v1220
    %v1375 = vadd.f32 %v1371, %v1221
    %v1376 = vld [vmem:[%s4 + $0x12] sm:$0x1]
    %v1377 = vld [vmem:[%s4 + $0x13] sm:$0x1]
    %v1378 = vsel %vm42, %v1374, 0.0
    %1379 = vadd.xlane.f32.xlu0 %v1378
    %v1380 = vpop.xlane.xlu0 %1379
    %v1381 = vsel %vm42, %v1375, 0.0
    %1382 = vadd.xlane.f32.xlu0 %v1381
    %v1383 = vpop.xlane.xlu0 %1382
    %v1384 = vmul.f32 %v1380, %v49
    %v1385 = vmul.f32 %v1383, %v49
    %v1386 = vsub.f32 %v1374, %v1384
    %v1387 = vsub.f32 %v1375, %v1385
    %v1388 = vmul.f32 %v1386, %v1386
    %v1389 = vmul.f32 %v1387, %v1387
    %v1390 = vsel %vm42, %v1388, 0.0
    %1391 = vadd.xlane.f32.xlu0 %v1390
    %v1392 = vpop.xlane.xlu0 %1391
    %v1393 = vsel %vm42, %v1389, 0.0
    %1394 = vadd.xlane.f32.xlu0 %v1393
    %v1395 = vpop.xlane.xlu0 %1394
    %v1396 = vmul.f32 %v1392, %v49
    %v1397 = vmul.f32 %v1395, %v49
    %v1398 = vadd.f32 %v1396, 1e-06
    %v1399 = vadd.f32 %v1397, 1e-06
    %v1400 = vrsqrt.pop %v1398
    %v1401 = vrsqrt.pop %v1399
    %v1402 = vmul.f32 %v1386, %v1400
    %v1403 = vmul.f32 %v1387, %v1401
    %v1404 = vlaneseq
    %v1405 = vshrl.u32 %v1404, 7
    %v1406 = vsub.s32 0, %v1405
    %v1407 = vrot.slane %v1376, %v1406
    %v1408 = vmul.f32 %v1402, %v1407
    %v1409 = vmul.f32 %v1403, %v1407
    %v1410 = vlaneseq
    %v1411 = vshrl.u32 %v1410, 7
    %v1412 = vsub.s32 0, %v1411
    %v1413 = vrot.slane %v1377, %v1412
    %v1414 = vadd.f32 %v1408, %v1413
    %v1415 = vadd.f32 %v1409, %v1413
    %v1416 = vld [vmem:[%s1] sm:$0xff]
    %v1417 = vld [vmem:[%s1 + $0x8] sm:$0xff]
    %v1418 = vlaneseq
    %v1419 = vand.u32 %v1418, 127
    %1420 = vset.pattern.permute.xlu0 0
    %1421 = vperm.xlu0 %1420, %v1416
    %v1422 = vpop.permute.xlu0 %1421
    %1423 = vset.pattern.permute.xlu0 0
    %1424 = vperm.xlu0 %1423, %v1417
    %v1425 = vpop.permute.xlu0 %1424
    %vm1426 = vcmp.eq.s32.totalorder %v1419, %v1422
    %vm1427 = vcmp.eq.s32.totalorder %v1419, %v1425
    %v1428 = vsel %vm1426, 1, 0
    %v1429 = vsel %vm1427, 1, 0
    %v1430 = vcvt.s32.f32 %v1428
    %v1431 = vcvt.s32.f32 %v1429
    %v1432 = vpack.c.bf16 %v1431, %v1430
    %s1433 = scalar_lea.vmem %s3, 640
    %v1434 = vld [vmem:[%s1433] sm:$0xf]
    %v1435 = vld [vmem:[%s1433 + $0x4] sm:$0xf]
    %v1436 = vld [vmem:[%s1433 + $0x8] sm:$0xf]
    %v1437 = vld [vmem:[%s1433 + $0xc] sm:$0xf]
    %v1438 = vld [vmem:[%s1433 + $0x10] sm:$0xf]
    %v1439 = vld [vmem:[%s1433 + $0x14] sm:$0xf]
    %v1440 = vld [vmem:[%s1433 + $0x18] sm:$0xf]
    %v1441 = vld [vmem:[%s1433 + $0x1c] sm:$0xf]
    %v1442 = vld [vmem:[%s1433 + $0x20] sm:$0xf]
    %v1443 = vld [vmem:[%s1433 + $0x24] sm:$0xf]
    %v1444 = vld [vmem:[%s1433 + $0x28] sm:$0xf]
    %v1445 = vld [vmem:[%s1433 + $0x2c] sm:$0xf]
    %v1446 = vld [vmem:[%s1433 + $0x30] sm:$0xf]
    %v1447 = vld [vmem:[%s1433 + $0x34] sm:$0xf]
    %v1448 = vld [vmem:[%s1433 + $0x38] sm:$0xf]
    %v1449 = vld [vmem:[%s1433 + $0x3c] sm:$0xf]
    %s1450 = scalar_lea.vmem %s0, 32
    %v1451 = vld [vmem:[%s1450] sm:$0xff]
    %v1452 = vld [vmem:[%s1450 + $0x8] sm:$0xff]
    %v1469 = vunpack.c.l.b16 %v1434
    %v1470 = vunpack.c.l.b16 %v1435
    %v1471 = vunpack.c.l.b16 %v1436
    %v1472 = vunpack.c.l.b16 %v1437
    %v1473 = vunpack.c.l.b16 %v1438
    %v1474 = vunpack.c.l.b16 %v1439
    %v1475 = vunpack.c.l.b16 %v1440
    %v1476 = vunpack.c.l.b16 %v1441
    %v1477 = vunpack.c.l.b16 %v1442
    %v1478 = vunpack.c.l.b16 %v1443
    %v1479 = vunpack.c.l.b16 %v1444
    %v1480 = vunpack.c.l.b16 %v1445
    %v1481 = vunpack.c.l.b16 %v1446
    %v1482 = vunpack.c.l.b16 %v1447
    %v1483 = vunpack.c.l.b16 %v1448
    %v1484 = vunpack.c.l.b16 %v1449
    %v1485 = vpack.c.b16 %v1470, %v1469
    %v1486 = vpack.c.b16 %v1472, %v1471
    %v1487 = vpack.c.b16 %v1474, %v1473
    %v1488 = vpack.c.b16 %v1476, %v1475
    %v1489 = vpack.c.b16 %v1478, %v1477
    %v1490 = vpack.c.b16 %v1480, %v1479
    %v1491 = vpack.c.b16 %v1482, %v1481
    %v1492 = vpack.c.b16 %v1484, %v1483
    %1501 = vmatprep.subr.bf16.mxu0 0
    %1502 = vmatpush1.bf16.msra.mxu0 %v1485
    %1503 = vmatprep.subr.bf16.mxu0 0
    %1504 = vmatpush1.bf16.msra.mxu0 %v1486
    %1505 = vmatprep.subr.bf16.mxu0 0
    %1506 = vmatpush1.bf16.msra.mxu0 %v1487
    %1507 = vmatprep.subr.bf16.mxu0 0
    %1508 = vmatpush1.bf16.msra.mxu0 %v1488
    %1509 = vmatprep.subr.bf16.mxu0 0
    %1510 = vmatpush1.bf16.msra.mxu0 %v1489
    %1511 = vmatprep.subr.bf16.mxu0 0
    %1512 = vmatpush1.bf16.msra.mxu0 %v1490
    %1513 = vmatprep.subr.bf16.mxu0 0
    %1514 = vmatpush1.bf16.msra.mxu0 %v1491
    %1515 = vmatprep.subr.bf16.mxu0 0
    %1516 = vmatpush1.bf16.msra.mxu0 %v1492
    %1517 = vmatprep.subr.bf16.mxu0 0
    %1518 = vmatpush1.bf16.msra.mxu0 0
    %1519 = vmatprep.subr.bf16.mxu0 0
    %1520 = vmatpush1.bf16.msra.mxu0 0
    %1521 = vmatprep.subr.bf16.mxu0 0
    %1522 = vmatpush1.bf16.msra.mxu0 0
    %1523 = vmatprep.subr.bf16.mxu0 0
    %1524 = vmatpush1.bf16.msra.mxu0 0
    %1525 = vmatprep.subr.bf16.mxu0 0
    %1526 = vmatpush1.bf16.msra.mxu0 0
    %1527 = vmatprep.subr.bf16.mxu0 0
    %1528 = vmatpush1.bf16.msra.mxu0 0
    %1529 = vmatprep.subr.bf16.mxu0 0
    %1530 = vmatpush1.bf16.msra.mxu0 0
    %1531 = vmatprep.subr.bf16.mxu0 0
    %1532 = vmatpush1.bf16.msra.mxu0 0
    %1533 = vmatprep.mubr.bf16.mxu0 0
    %1534 = vmatmul.mubr.bf16.gmra.mrb[0].mxu0 %v1432
    %v1535 = vpop.f32.mrb[0].mxu0
    %v1536 = vadd.f32 %v1451, %v1535
    %v1537 = vpop.f32.mrb[0].mxu0
    %v1538 = vpop.f32.mrb[0].mxu0
    %v1539 = vadd.f32 %v1452, %v1538
    %v1540 = vpop.f32.mrb[0].mxu0
    %1541 = vdwg.mxu0
    %v1542 = vld [vmem:[%s4 + $0x2] sm:$0x1]
    %v1543 = vld [vmem:[%s4 + $0x3] sm:$0x1]
    %v1544 = vsel %vm42, %v1536, 0.0
    %1545 = vadd.xlane.f32.xlu0 %v1544
    %v1546 = vpop.xlane.xlu0 %1545
    %v1547 = vsel %vm42, %v1539, 0.0
    %1548 = vadd.xlane.f32.xlu0 %v1547
    %v1549 = vpop.xlane.xlu0 %1548
    %v1550 = vmul.f32 %v1546, %v49
    %v1551 = vmul.f32 %v1549, %v49
    %v1552 = vsub.f32 %v1536, %v1550
    %v1553 = vsub.f32 %v1539, %v1551
    %v1554 = vmul.f32 %v1552, %v1552
    %v1555 = vmul.f32 %v1553, %v1553
    %v1556 = vsel %vm42, %v1554, 0.0
    %1557 = vadd.xlane.f32.xlu0 %v1556
    %v1558 = vpop.xlane.xlu0 %1557
    %v1559 = vsel %vm42, %v1555, 0.0
    %1560 = vadd.xlane.f32.xlu0 %v1559
    %v1561 = vpop.xlane.xlu0 %1560
    %v1562 = vmul.f32 %v1558, %v49
    %v1563 = vmul.f32 %v1561, %v49
    %v1564 = vadd.f32 %v1562, 1e-06
    %v1565 = vadd.f32 %v1563, 1e-06
    %v1566 = vrsqrt.pop %v1564
    %v1567 = vrsqrt.pop %v1565
    %v1568 = vmul.f32 %v1552, %v1566
    %v1569 = vmul.f32 %v1553, %v1567
    %v1570 = vlaneseq
    %v1571 = vshrl.u32 %v1570, 7
    %v1572 = vsub.s32 0, %v1571
    %v1573 = vrot.slane %v1542, %v1572
    %v1574 = vmul.f32 %v1568, %v1573
    %v1575 = vmul.f32 %v1569, %v1573
    %v1576 = vlaneseq
    %v1577 = vshrl.u32 %v1576, 7
    %v1578 = vsub.s32 0, %v1577
    %v1579 = vrot.slane %v1543, %v1578
    %v1580 = vadd.f32 %v1574, %v1579
    %v1581 = vadd.f32 %v1575, %v1579
    %v1582 = vpack.c.bf16 %v1415, %v1414
    %s1583 = scalar_lea.vmem %s2, 128
    %v1584 = vld [vmem:[%s1583] sm:$0xf]
    %v1585 = vld [vmem:[%s1583 + $0x4] sm:$0xf]
    %v1586 = vld [vmem:[%s1583 + $0x8] sm:$0xf]
    %v1587 = vld [vmem:[%s1583 + $0xc] sm:$0xf]
    %v1588 = vld [vmem:[%s4 + $0x14] sm:$0x1]
    %v1589 = vlaneseq
    %v1590 = vshrl.u32 %v1589, 7
    %v1591 = vsub.s32 0, %v1590
    %v1592 = vrot.slane %v1588, %v1591
    %v1597 = vunpack.c.l.b16 %v1584
    %v1598 = vunpack.c.l.b16 %v1585
    %v1599 = vunpack.c.l.b16 %v1586
    %v1600 = vunpack.c.l.b16 %v1587
    %v1601 = vpack.c.b16 %v1598, %v1597
    %v1602 = vpack.c.b16 %v1600, %v1599
    %v1606 = vsel %vm42, %v1582, 0
    %1608 = vmatprep.subr.bf16.mxu0 0
    %1609 = vmatpush1.bf16.msra.mxu0 %v1601
    %1610 = vmatprep.subr.bf16.mxu0 0
    %1611 = vmatpush1.bf16.msra.mxu0 %v1602
    %1612 = vmatprep.subr.bf16.mxu0 0
    %1613 = vmatpush1.bf16.msra.mxu0 0
    %1614 = vmatprep.subr.bf16.mxu0 0
    %1615 = vmatpush1.bf16.msra.mxu0 0
    %1616 = vmatprep.subr.bf16.mxu0 0
    %1617 = vmatpush1.bf16.msra.mxu0 0
    %1618 = vmatprep.subr.bf16.mxu0 0
    %1619 = vmatpush1.bf16.msra.mxu0 0
    %1620 = vmatprep.subr.bf16.mxu0 0
    %1621 = vmatpush1.bf16.msra.mxu0 0
    %1622 = vmatprep.subr.bf16.mxu0 0
    %1623 = vmatpush1.bf16.msra.mxu0 0
    %1624 = vmatprep.subr.bf16.mxu0 0
    %1625 = vmatpush1.bf16.msra.mxu0 0
    %1626 = vmatprep.subr.bf16.mxu0 0
    %1627 = vmatpush1.bf16.msra.mxu0 0
    %1628 = vmatprep.subr.bf16.mxu0 0
    %1629 = vmatpush1.bf16.msra.mxu0 0
    %1630 = vmatprep.subr.bf16.mxu0 0
    %1631 = vmatpush1.bf16.msra.mxu0 0
    %1632 = vmatprep.subr.bf16.mxu0 0
    %1633 = vmatpush1.bf16.msra.mxu0 0
    %1634 = vmatprep.subr.bf16.mxu0 0
    %1635 = vmatpush1.bf16.msra.mxu0 0
    %1636 = vmatprep.subr.bf16.mxu0 0
    %1637 = vmatpush1.bf16.msra.mxu0 0
    %1638 = vmatprep.subr.bf16.mxu0 0
    %1639 = vmatpush1.bf16.msra.mxu0 0
    %1640 = vmatprep.mubr.bf16.mxu0 0
    %1641 = vmatmul.mubr.bf16.gmra.mrb[0].mxu0 %v1606
    %v1642 = vpop.f32.mrb[0].mxu0
    %v1643 = vadd.f32 %v1592, %v1642
    %v1644 = vpop.f32.mrb[0].mxu0
    %v1645 = vpop.f32.mrb[0].mxu0
    %v1646 = vadd.f32 %v1592, %v1645
    %v1647 = vpop.f32.mrb[0].mxu0
    %1648 = vdwg.mxu0
    %s1649 = scalar_lea.vmem %s2, 64
    %v1650 = vld [vmem:[%s1649] sm:$0xf]
    %v1651 = vld [vmem:[%s1649 + $0x4] sm:$0xf]
    %v1652 = vld [vmem:[%s1649 + $0x8] sm:$0xf]
    %v1653 = vld [vmem:[%s1649 + $0xc] sm:$0xf]
    %v1654 = vpack.c.bf16 %v1581, %v1580
    %v1655 = vld [vmem:[%s4 + $0x16] sm:$0x1]
    %v1656 = vlaneseq
    %v1657 = vshrl.u32 %v1656, 7
    %v1658 = vsub.s32 0, %v1657
    %v1659 = vrot.slane %v1655, %v1658
    %v1664 = vunpack.c.l.b16 %v1650
    %v1665 = vunpack.c.l.b16 %v1651
    %v1666 = vunpack.c.l.b16 %v1652
    %v1667 = vunpack.c.l.b16 %v1653
    %v1668 = vpack.c.b16 %v1665, %v1664
    %v1669 = vpack.c.b16 %v1667, %v1666
    %v1673 = vsel %vm42, %v1654, 0
    %1675 = vmatprep.subr.bf16.mxu0 0
    %1676 = vmatpush1.bf16.msra.mxu0 %v1668
    %1677 = vmatprep.subr.bf16.mxu0 0
    %1678 = vmatpush1.bf16.msra.mxu0 %v1669
    %1679 = vmatprep.subr.bf16.mxu0 0
    %1680 = vmatpush1.bf16.msra.mxu0 0
    %1681 = vmatprep.subr.bf16.mxu0 0
    %1682 = vmatpush1.bf16.msra.mxu0 0
    %1683 = vmatprep.subr.bf16.mxu0 0
    %1684 = vmatpush1.bf16.msra.mxu0 0
    %1685 = vmatprep.subr.bf16.mxu0 0
    %1686 = vmatpush1.bf16.msra.mxu0 0
    %1687 = vmatprep.subr.bf16.mxu0 0
    %1688 = vmatpush1.bf16.msra.mxu0 0
    %1689 = vmatprep.subr.bf16.mxu0 0
    %1690 = vmatpush1.bf16.msra.mxu0 0
    %1691 = vmatprep.subr.bf16.mxu0 0
    %1692 = vmatpush1.bf16.msra.mxu0 0
    %1693 = vmatprep.subr.bf16.mxu0 0
    %1694 = vmatpush1.bf16.msra.mxu0 0
    %1695 = vmatprep.subr.bf16.mxu0 0
    %1696 = vmatpush1.bf16.msra.mxu0 0
    %1697 = vmatprep.subr.bf16.mxu0 0
    %1698 = vmatpush1.bf16.msra.mxu0 0
    %1699 = vmatprep.subr.bf16.mxu0 0
    %1700 = vmatpush1.bf16.msra.mxu0 0
    %1701 = vmatprep.subr.bf16.mxu0 0
    %1702 = vmatpush1.bf16.msra.mxu0 0
    %1703 = vmatprep.subr.bf16.mxu0 0
    %1704 = vmatpush1.bf16.msra.mxu0 0
    %1705 = vmatprep.subr.bf16.mxu0 0
    %1706 = vmatpush1.bf16.msra.mxu0 0
    %1707 = vmatprep.mubr.bf16.mxu0 0
    %1708 = vmatmul.mubr.bf16.gmra.mrb[0].mxu0 %v1673
    %v1709 = vpop.f32.mrb[0].mxu0
    %v1710 = vadd.f32 %v1659, %v1709
    %v1711 = vpop.f32.mrb[0].mxu0
    %v1712 = vpop.f32.mrb[0].mxu0
    %v1713 = vadd.f32 %v1659, %v1712
    %v1714 = vpop.f32.mrb[0].mxu0
    %1715 = vdwg.mxu0
    %s1716 = scalar_lea.vmem %s3, 256
    %v1717 = vld [vmem:[%s1716] sm:$0xf]
    %v1718 = vld [vmem:[%s1716 + $0x4] sm:$0xf]
    %v1719 = vld [vmem:[%s1716 + $0x8] sm:$0xf]
    %v1720 = vld [vmem:[%s1716 + $0xc] sm:$0xf]
    %v1721 = vld [vmem:[%s4 + $0x17] sm:$0x1]
    %v1722 = vpack.c.bf16 %v1713, %v1710
    %1724 = vrot.lane.b32.xlu0 %v1722, 96
    %v1725 = vpop.permute.xlu0 %1724
    %v1727 = vsel %vm157, %v1722, 0
    %v1730 = vsel %vm157, %v1725, 0
    %1732 = vmatprep.subr.bf16.mxu0 0
    %1733 = vmatpush1.bf16.xpose.msra.mxu0 %v1730
    %1734 = vmatprep.subr.bf16.mxu0 0
    %1735 = vmatpush1.bf16.xpose.msra.mxu0 0
    %1736 = vmatprep.subr.bf16.mxu0 0
    %1737 = vmatpush1.bf16.xpose.msra.mxu0 0
    %1738 = vmatprep.subr.bf16.mxu0 0
    %1739 = vmatpush1.bf16.xpose.msra.mxu0 0
    %1740 = vmatprep.subr.bf16.mxu0 0
    %1741 = vmatpush1.bf16.xpose.msra.mxu0 0
    %1742 = vmatprep.subr.bf16.mxu0 0
    %1743 = vmatpush1.bf16.xpose.msra.mxu0 0
    %1744 = vmatprep.subr.bf16.mxu0 0
    %1745 = vmatpush1.bf16.xpose.msra.mxu0 0
    %1746 = vmatprep.subr.bf16.mxu0 0
    %1747 = vmatpush1.bf16.xpose.msra.mxu0 0
    %1748 = vmatprep.subr.bf16.mxu0 0
    %1749 = vmatpush1.bf16.xpose.msra.mxu0 0
    %1750 = vmatprep.subr.bf16.mxu0 0
    %1751 = vmatpush1.bf16.xpose.msra.mxu0 0
    %1752 = vmatprep.subr.bf16.mxu0 0
    %1753 = vmatpush1.bf16.xpose.msra.mxu0 0
    %1754 = vmatprep.subr.bf16.mxu0 0
    %1755 = vmatpush1.bf16.xpose.msra.mxu0 0
    %1756 = vmatprep.subr.bf16.mxu0 0
    %1757 = vmatpush1.bf16.xpose.msra.mxu0 0
    %1758 = vmatprep.subr.bf16.mxu0 0
    %1759 = vmatpush1.bf16.xpose.msra.mxu0 0
    %1760 = vmatprep.subr.bf16.mxu0 0
    %1761 = vmatpush1.bf16.xpose.msra.mxu0 0
    %1762 = vmatprep.subr.bf16.mxu0 0
    %1763 = vmatpush1.bf16.xpose.msra.mxu0 0
    %1764 = vmatprep.mubr.bf16.mxu0 0
    %1765 = vmatmul.mubr.bf16.gmra.mrb[0].mxu0 %v1727
    %v1766 = vpop.f32.mrb[0].mxu0
    %v1767 = vadd.f32 0.0, %v1766
    %v1768 = vpop.f32.mrb[0].mxu0
    %v1769 = vpop.f32.mrb[0].mxu0
    %v1770 = vadd.f32 0.0, %v1769
    %v1771 = vpop.f32.mrb[0].mxu0
    %1772 = vdwg.mxu0
    %v1773 = vmul.f32 %v1767, 0.25
    %v1774 = vmul.f32 %v1770, 0.25
    %v1775 = vadd.f32 %v1773, %v26
    %v1776 = vadd.f32 %v1774, %v27
    %v1777 = vsel %vm157, %v1775, -inf
    %1778 = vmax.xlane.f32.xlu0 %v1777
    %v1779 = vpop.xlane.xlu0 %1778
    %v1780 = vsel %vm157, %v1776, -inf
    %1781 = vmax.xlane.f32.xlu0 %v1780
    %v1782 = vpop.xlane.xlu0 %1781
    %v1783 = vsub.f32 %v1775, %v1779
    %v1784 = vsub.f32 %v1776, %v1782
    %v1785 = vmul.f32 %v1783, 1.442695
    %v1786 = vpow.pop %v1785
    %v1787 = vmul.f32 %v1784, 1.442695
    %v1788 = vpow.pop %v1787
    %v1789 = vsel %vm157, %v1786, 0.0
    %1790 = vadd.xlane.f32.xlu0 %v1789
    %v1791 = vpop.xlane.xlu0 %1790
    %v1792 = vsel %vm157, %v1788, 0.0
    %1793 = vadd.xlane.f32.xlu0 %v1792
    %v1794 = vpop.xlane.xlu0 %1793
    %v1795 = vrcp.pop %v1791
    %v1796 = vrcp.pop %v1794
    %v1797 = vmul.f32 %v1786, %v1795
    %v1798 = vmul.f32 %v1788, %v1796
    %v1799 = vpack.c.bf16 %v1798, %v1797
    %1800 = vrot.lane.b32.xlu0 %v1722, 64
    %v1801 = vpop.permute.xlu0 %1800
    %v1804 = vsel %vm157, %v1799, 0
    %1806 = vmatprep.subr.bf16.mxu0 0
    %1807 = vmatpush1.bf16.msra.mxu0 %v1801
    %1808 = vmatprep.subr.bf16.mxu0 0
    %1809 = vmatpush1.bf16.msra.mxu0 0
    %1810 = vmatprep.subr.bf16.mxu0 0
    %1811 = vmatpush1.bf16.msra.mxu0 0
    %1812 = vmatprep.subr.bf16.mxu0 0
    %1813 = vmatpush1.bf16.msra.mxu0 0
    %1814 = vmatprep.subr.bf16.mxu0 0
    %1815 = vmatpush1.bf16.msra.mxu0 0
    %1816 = vmatprep.subr.bf16.mxu0 0
    %1817 = vmatpush1.bf16.msra.mxu0 0
    %1818 = vmatprep.subr.bf16.mxu0 0
    %1819 = vmatpush1.bf16.msra.mxu0 0
    %1820 = vmatprep.subr.bf16.mxu0 0
    %1821 = vmatpush1.bf16.msra.mxu0 0
    %1822 = vmatprep.subr.bf16.mxu0 0
    %1823 = vmatpush1.bf16.msra.mxu0 0
    %1824 = vmatprep.subr.bf16.mxu0 0
    %1825 = vmatpush1.bf16.msra.mxu0 0
    %1826 = vmatprep.subr.bf16.mxu0 0
    %1827 = vmatpush1.bf16.msra.mxu0 0
    %1828 = vmatprep.subr.bf16.mxu0 0
    %1829 = vmatpush1.bf16.msra.mxu0 0
    %1830 = vmatprep.subr.bf16.mxu0 0
    %1831 = vmatpush1.bf16.msra.mxu0 0
    %1832 = vmatprep.subr.bf16.mxu0 0
    %1833 = vmatpush1.bf16.msra.mxu0 0
    %1834 = vmatprep.subr.bf16.mxu0 0
    %1835 = vmatpush1.bf16.msra.mxu0 0
    %1836 = vmatprep.subr.bf16.mxu0 0
    %1837 = vmatpush1.bf16.msra.mxu0 0
    %1838 = vmatprep.mubr.bf16.mxu0 0
    %1839 = vmatmul.mubr.bf16.gmra.mrb[0].mxu0 %v1804
    %v1840 = vpop.f32.mrb[0].mxu0
    %v1841 = vadd.f32 0.0, %v1840
    %v1842 = vpop.f32.mrb[0].mxu0
    %v1843 = vpop.f32.mrb[0].mxu0
    %v1844 = vadd.f32 0.0, %v1843
    %v1845 = vpop.f32.mrb[0].mxu0
    %1846 = vdwg.mxu0
    %v1847 = vpack.c.bf16 %v1844, %v1841
    %1848 = vrot.lane.b32.xlu0 %v1722, 112
    %v1849 = vpop.permute.xlu0 %1848
    %1850 = vrot.lane.b32.xlu0 %v1722, 80
    %v1851 = vpop.permute.xlu0 %1850
    %v1853 = vsel %vm157, %v1849, 0
    %v1856 = vsel %vm157, %v1851, 0
    %1858 = vmatprep.subr.bf16.mxu0 0
    %1859 = vmatpush1.bf16.xpose.msra.mxu0 %v1856
    %1860 = vmatprep.subr.bf16.mxu0 0
    %1861 = vmatpush1.bf16.xpose.msra.mxu0 0
    %1862 = vmatprep.subr.bf16.mxu0 0
    %1863 = vmatpush1.bf16.xpose.msra.mxu0 0
    %1864 = vmatprep.subr.bf16.mxu0 0
    %1865 = vmatpush1.bf16.xpose.msra.mxu0 0
    %1866 = vmatprep.subr.bf16.mxu0 0
    %1867 = vmatpush1.bf16.xpose.msra.mxu0 0
    %1868 = vmatprep.subr.bf16.mxu0 0
    %1869 = vmatpush1.bf16.xpose.msra.mxu0 0
    %1870 = vmatprep.subr.bf16.mxu0 0
    %1871 = vmatpush1.bf16.xpose.msra.mxu0 0
    %1872 = vmatprep.subr.bf16.mxu0 0
    %1873 = vmatpush1.bf16.xpose.msra.mxu0 0
    %1874 = vmatprep.subr.bf16.mxu0 0
    %1875 = vmatpush1.bf16.xpose.msra.mxu0 0
    %1876 = vmatprep.subr.bf16.mxu0 0
    %1877 = vmatpush1.bf16.xpose.msra.mxu0 0
    %1878 = vmatprep.subr.bf16.mxu0 0
    %1879 = vmatpush1.bf16.xpose.msra.mxu0 0
    %1880 = vmatprep.subr.bf16.mxu0 0
    %1881 = vmatpush1.bf16.xpose.msra.mxu0 0
    %1882 = vmatprep.subr.bf16.mxu0 0
    %1883 = vmatpush1.bf16.xpose.msra.mxu0 0
    %1884 = vmatprep.subr.bf16.mxu0 0
    %1885 = vmatpush1.bf16.xpose.msra.mxu0 0
    %1886 = vmatprep.subr.bf16.mxu0 0
    %1887 = vmatpush1.bf16.xpose.msra.mxu0 0
    %1888 = vmatprep.subr.bf16.mxu0 0
    %1889 = vmatpush1.bf16.xpose.msra.mxu0 0
    %1890 = vmatprep.mubr.bf16.mxu0 0
    %1891 = vmatmul.mubr.bf16.gmra.mrb[0].mxu0 %v1853
    %v1892 = vpop.f32.mrb[0].mxu0
    %v1893 = vadd.f32 0.0, %v1892
    %v1894 = vpop.f32.mrb[0].mxu0
    %v1895 = vpop.f32.mrb[0].mxu0
    %v1896 = vadd.f32 0.0, %v1895
    %v1897 = vpop.f32.mrb[0].mxu0
    %1898 = vdwg.mxu0
    %v1899 = vmul.f32 %v1893, 0.25
    %v1900 = vmul.f32 %v1896, 0.25
    %v1901 = vadd.f32 %v1899, %v26
    %v1902 = vadd.f32 %v1900, %v27
    %v1903 = vsel %vm157, %v1901, -inf
    %1904 = vmax.xlane.f32.xlu0 %v1903
    %v1905 = vpop.xlane.xlu0 %1904
    %v1906 = vsel %vm157, %v1902, -inf
    %1907 = vmax.xlane.f32.xlu0 %v1906
    %v1908 = vpop.xlane.xlu0 %1907
    %v1909 = vsub.f32 %v1901, %v1905
    %v1910 = vsub.f32 %v1902, %v1908
    %v1911 = vmul.f32 %v1909, 1.442695
    %v1912 = vpow.pop %v1911
    %v1913 = vmul.f32 %v1910, 1.442695
    %v1914 = vpow.pop %v1913
    %v1915 = vsel %vm157, %v1912, 0.0
    %1916 = vadd.xlane.f32.xlu0 %v1915
    %v1917 = vpop.xlane.xlu0 %1916
    %v1918 = vsel %vm157, %v1914, 0.0
    %1919 = vadd.xlane.f32.xlu0 %v1918
    %v1920 = vpop.xlane.xlu0 %1919
    %v1921 = vrcp.pop %v1917
    %v1922 = vrcp.pop %v1920
    %v1923 = vmul.f32 %v1912, %v1921
    %v1924 = vmul.f32 %v1914, %v1922
    %v1925 = vpack.c.bf16 %v1924, %v1923
    %1926 = vrot.lane.b32.xlu0 %v1722, 48
    %v1927 = vpop.permute.xlu0 %1926
    %v1930 = vsel %vm157, %v1925, 0
    %1932 = vmatprep.subr.bf16.mxu0 0
    %1933 = vmatpush1.bf16.msra.mxu0 %v1927
    %1934 = vmatprep.subr.bf16.mxu0 0
    %1935 = vmatpush1.bf16.msra.mxu0 0
    %1936 = vmatprep.subr.bf16.mxu0 0
    %1937 = vmatpush1.bf16.msra.mxu0 0
    %1938 = vmatprep.subr.bf16.mxu0 0
    %1939 = vmatpush1.bf16.msra.mxu0 0
    %1940 = vmatprep.subr.bf16.mxu0 0
    %1941 = vmatpush1.bf16.msra.mxu0 0
    %1942 = vmatprep.subr.bf16.mxu0 0
    %1943 = vmatpush1.bf16.msra.mxu0 0
    %1944 = vmatprep.subr.bf16.mxu0 0
    %1945 = vmatpush1.bf16.msra.mxu0 0
    %1946 = vmatprep.subr.bf16.mxu0 0
    %1947 = vmatpush1.bf16.msra.mxu0 0
    %1948 = vmatprep.subr.bf16.mxu0 0
    %1949 = vmatpush1.bf16.msra.mxu0 0
    %1950 = vmatprep.subr.bf16.mxu0 0
    %1951 = vmatpush1.bf16.msra.mxu0 0
    %1952 = vmatprep.subr.bf16.mxu0 0
    %1953 = vmatpush1.bf16.msra.mxu0 0
    %1954 = vmatprep.subr.bf16.mxu0 0
    %1955 = vmatpush1.bf16.msra.mxu0 0
    %1956 = vmatprep.subr.bf16.mxu0 0
    %1957 = vmatpush1.bf16.msra.mxu0 0
    %1958 = vmatprep.subr.bf16.mxu0 0
    %1959 = vmatpush1.bf16.msra.mxu0 0
    %1960 = vmatprep.subr.bf16.mxu0 0
    %1961 = vmatpush1.bf16.msra.mxu0 0
    %1962 = vmatprep.subr.bf16.mxu0 0
    %1963 = vmatpush1.bf16.msra.mxu0 0
    %1964 = vmatprep.mubr.bf16.mxu0 0
    %1965 = vmatmul.mubr.bf16.gmra.mrb[0].mxu0 %v1930
    %v1966 = vpop.f32.mrb[0].mxu0
    %v1967 = vadd.f32 0.0, %v1966
    %v1968 = vpop.f32.mrb[0].mxu0
    %v1969 = vpop.f32.mrb[0].mxu0
    %v1970 = vadd.f32 0.0, %v1969
    %v1971 = vpop.f32.mrb[0].mxu0
    %1972 = vdwg.mxu0
    %v1973 = vpack.c.bf16 %v1970, %v1967
    %v1976 = vunpack.c.l.b16 %v1719
    %v1977 = vunpack.c.l.b16 %v1720
    %v1978 = vpack.c.b16 %v1977, %v1976
    %v1981 = vsel %vm157, %v1973, 0
    %1983 = vmatprep.subr.bf16.mxu0 0
    %1984 = vmatpush1.bf16.msra.mxu0 %v1978
    %1985 = vmatprep.subr.bf16.mxu0 0
    %1986 = vmatpush1.bf16.msra.mxu0 0
    %1987 = vmatprep.subr.bf16.mxu0 0
    %1988 = vmatpush1.bf16.msra.mxu0 0
    %1989 = vmatprep.subr.bf16.mxu0 0
    %1990 = vmatpush1.bf16.msra.mxu0 0
    %1991 = vmatprep.subr.bf16.mxu0 0
    %1992 = vmatpush1.bf16.msra.mxu0 0
    %1993 = vmatprep.subr.bf16.mxu0 0
    %1994 = vmatpush1.bf16.msra.mxu0 0
    %1995 = vmatprep.subr.bf16.mxu0 0
    %1996 = vmatpush1.bf16.msra.mxu0 0
    %1997 = vmatprep.subr.bf16.mxu0 0
    %1998 = vmatpush1.bf16.msra.mxu0 0
    %1999 = vmatprep.subr.bf16.mxu0 0
    %2000 = vmatpush1.bf16.msra.mxu0 0
    %2001 = vmatprep.subr.bf16.mxu0 0
    %2002 = vmatpush1.bf16.msra.mxu0 0
    %2003 = vmatprep.subr.bf16.mxu0 0
    %2004 = vmatpush1.bf16.msra.mxu0 0
    %2005 = vmatprep.subr.bf16.mxu0 0
    %2006 = vmatpush1.bf16.msra.mxu0 0
    %2007 = vmatprep.subr.bf16.mxu0 0
    %2008 = vmatpush1.bf16.msra.mxu0 0
    %2009 = vmatprep.subr.bf16.mxu0 0
    %2010 = vmatpush1.bf16.msra.mxu0 0
    %2011 = vmatprep.subr.bf16.mxu0 0
    %2012 = vmatpush1.bf16.msra.mxu0 0
    %2013 = vmatprep.subr.bf16.mxu0 0
    %2014 = vmatpush1.bf16.msra.mxu0 0
    %2015 = vmatprep.mubr.bf16.mxu0 0
    %2016 = vmatmul.mubr.bf16.gmra.mrb[0].mxu0 %v1981
    %v2017 = vpop.f32.mrb[0].mxu0
    %v2018 = vadd.f32 0.0, %v2017
    %v2019 = vpop.f32.mrb[0].mxu0
    %v2020 = vpop.f32.mrb[0].mxu0
    %v2021 = vadd.f32 0.0, %v2020
    %v2022 = vpop.f32.mrb[0].mxu0
    %2023 = vdwg.mxu0
    %v2026 = vunpack.c.l.b16 %v1717
    %v2027 = vunpack.c.l.b16 %v1718
    %v2028 = vpack.c.b16 %v2027, %v2026
    %v2031 = vsel %vm157, %v1847, 0
    %2033 = vmatprep.subr.bf16.mxu0 0
    %2034 = vmatpush1.bf16.msra.mxu0 %v2028
    %2035 = vmatprep.subr.bf16.mxu0 0
    %2036 = vmatpush1.bf16.msra.mxu0 0
    %2037 = vmatprep.subr.bf16.mxu0 0
    %2038 = vmatpush1.bf16.msra.mxu0 0
    %2039 = vmatprep.subr.bf16.mxu0 0
    %2040 = vmatpush1.bf16.msra.mxu0 0
    %2041 = vmatprep.subr.bf16.mxu0 0
    %2042 = vmatpush1.bf16.msra.mxu0 0
    %2043 = vmatprep.subr.bf16.mxu0 0
    %2044 = vmatpush1.bf16.msra.mxu0 0
    %2045 = vmatprep.subr.bf16.mxu0 0
    %2046 = vmatpush1.bf16.msra.mxu0 0
    %2047 = vmatprep.subr.bf16.mxu0 0
    %2048 = vmatpush1.bf16.msra.mxu0 0
    %2049 = vmatprep.subr.bf16.mxu0 0
    %2050 = vmatpush1.bf16.msra.mxu0 0
    %2051 = vmatprep.subr.bf16.mxu0 0
    %2052 = vmatpush1.bf16.msra.mxu0 0
    %2053 = vmatprep.subr.bf16.mxu0 0
    %2054 = vmatpush1.bf16.msra.mxu0 0
    %2055 = vmatprep.subr.bf16.mxu0 0
    %2056 = vmatpush1.bf16.msra.mxu0 0
    %2057 = vmatprep.subr.bf16.mxu0 0
    %2058 = vmatpush1.bf16.msra.mxu0 0
    %2059 = vmatprep.subr.bf16.mxu0 0
    %2060 = vmatpush1.bf16.msra.mxu0 0
    %2061 = vmatprep.subr.bf16.mxu0 0
    %2062 = vmatpush1.bf16.msra.mxu0 0
    %2063 = vmatprep.subr.bf16.mxu0 0
    %2064 = vmatpush1.bf16.msra.mxu0 0
    %2065 = vmatprep.mubr.bf16.mxu0 0
    %2066 = vmatmul.mubr.bf16.gmra.mrb[0].mxu0 %v2031
    %v2067 = vpop.f32.mrb[0].mxu0
    %v2068 = vadd.f32 %v2018, %v2067
    %v2069 = vpop.f32.mrb[0].mxu0
    %v2070 = vpop.f32.mrb[0].mxu0
    %v2071 = vadd.f32 %v2021, %v2070
    %v2072 = vpop.f32.mrb[0].mxu0
    %2073 = vdwg.mxu0
    %v2074 = vlaneseq
    %v2075 = vshrl.u32 %v2074, 7
    %v2076 = vsub.s32 0, %v2075
    %v2077 = vrot.slane %v1721, %v2076
    %v2078 = vadd.f32 %v2068, %v2077
    %v2079 = vadd.f32 %v2071, %v2077
    %v2080 = vadd.f32 %v2078, %v1580
    %v2081 = vadd.f32 %v2079, %v1581
    %v2082 = vld [vmem:[%s4 + $0x18] sm:$0x1]
    %v2083 = vld [vmem:[%s4 + $0x19] sm:$0x1]
    %v2084 = vsel %vm42, %v2080, 0.0
    %2085 = vadd.xlane.f32.xlu0 %v2084
    %v2086 = vpop.xlane.xlu0 %2085
    %v2087 = vsel %vm42, %v2081, 0.0
    %2088 = vadd.xlane.f32.xlu0 %v2087
    %v2089 = vpop.xlane.xlu0 %2088
    %v2090 = vmul.f32 %v2086, %v49
    %v2091 = vmul.f32 %v2089, %v49
    %v2092 = vsub.f32 %v2080, %v2090
    %v2093 = vsub.f32 %v2081, %v2091
    %v2094 = vmul.f32 %v2092, %v2092
    %v2095 = vmul.f32 %v2093, %v2093
    %v2096 = vsel %vm42, %v2094, 0.0
    %2097 = vadd.xlane.f32.xlu0 %v2096
    %v2098 = vpop.xlane.xlu0 %2097
    %v2099 = vsel %vm42, %v2095, 0.0
    %2100 = vadd.xlane.f32.xlu0 %v2099
    %v2101 = vpop.xlane.xlu0 %2100
    %v2102 = vmul.f32 %v2098, %v49
    %v2103 = vmul.f32 %v2101, %v49
    %v2104 = vadd.f32 %v2102, 1e-06
    %v2105 = vadd.f32 %v2103, 1e-06
    %v2106 = vrsqrt.pop %v2104
    %v2107 = vrsqrt.pop %v2105
    %v2108 = vmul.f32 %v2092, %v2106
    %v2109 = vmul.f32 %v2093, %v2107
    %v2110 = vlaneseq
    %v2111 = vshrl.u32 %v2110, 7
    %v2112 = vsub.s32 0, %v2111
    %v2113 = vrot.slane %v2082, %v2112
    %v2114 = vmul.f32 %v2108, %v2113
    %v2115 = vmul.f32 %v2109, %v2113
    %v2116 = vlaneseq
    %v2117 = vshrl.u32 %v2116, 7
    %v2118 = vsub.s32 0, %v2117
    %v2119 = vrot.slane %v2083, %v2118
    %v2120 = vadd.f32 %v2114, %v2119
    %v2121 = vadd.f32 %v2115, %v2119
    %s2122 = scalar_lea.vmem %s2, 96
    %v2123 = vld [vmem:[%s2122] sm:$0xf]
    %v2124 = vld [vmem:[%s2122 + $0x4] sm:$0xf]
    %v2125 = vld [vmem:[%s2122 + $0x8] sm:$0xf]
    %v2126 = vld [vmem:[%s2122 + $0xc] sm:$0xf]
    %v2127 = vpack.c.bf16 %v2121, %v2120
    %v2128 = vld [vmem:[%s4 + $0x1a] sm:$0x1]
    %v2129 = vlaneseq
    %v2130 = vshrl.u32 %v2129, 7
    %v2131 = vsub.s32 0, %v2130
    %v2132 = vrot.slane %v2128, %v2131
    %v2137 = vunpack.c.l.b16 %v2123
    %v2138 = vunpack.c.l.b16 %v2124
    %v2139 = vunpack.c.l.b16 %v2125
    %v2140 = vunpack.c.l.b16 %v2126
    %v2141 = vpack.c.b16 %v2138, %v2137
    %v2142 = vpack.c.b16 %v2140, %v2139
    %v2146 = vsel %vm42, %v2127, 0
    %2148 = vmatprep.subr.bf16.mxu0 0
    %2149 = vmatpush1.bf16.msra.mxu0 %v2141
    %2150 = vmatprep.subr.bf16.mxu0 0
    %2151 = vmatpush1.bf16.msra.mxu0 %v2142
    %2152 = vmatprep.subr.bf16.mxu0 0
    %2153 = vmatpush1.bf16.msra.mxu0 0
    %2154 = vmatprep.subr.bf16.mxu0 0
    %2155 = vmatpush1.bf16.msra.mxu0 0
    %2156 = vmatprep.subr.bf16.mxu0 0
    %2157 = vmatpush1.bf16.msra.mxu0 0
    %2158 = vmatprep.subr.bf16.mxu0 0
    %2159 = vmatpush1.bf16.msra.mxu0 0
    %2160 = vmatprep.subr.bf16.mxu0 0
    %2161 = vmatpush1.bf16.msra.mxu0 0
    %2162 = vmatprep.subr.bf16.mxu0 0
    %2163 = vmatpush1.bf16.msra.mxu0 0
    %2164 = vmatprep.subr.bf16.mxu0 0
    %2165 = vmatpush1.bf16.msra.mxu0 0
    %2166 = vmatprep.subr.bf16.mxu0 0
    %2167 = vmatpush1.bf16.msra.mxu0 0
    %2168 = vmatprep.subr.bf16.mxu0 0
    %2169 = vmatpush1.bf16.msra.mxu0 0
    %2170 = vmatprep.subr.bf16.mxu0 0
    %2171 = vmatpush1.bf16.msra.mxu0 0
    %2172 = vmatprep.subr.bf16.mxu0 0
    %2173 = vmatpush1.bf16.msra.mxu0 0
    %2174 = vmatprep.subr.bf16.mxu0 0
    %2175 = vmatpush1.bf16.msra.mxu0 0
    %2176 = vmatprep.subr.bf16.mxu0 0
    %2177 = vmatpush1.bf16.msra.mxu0 0
    %2178 = vmatprep.subr.bf16.mxu0 0
    %2179 = vmatpush1.bf16.msra.mxu0 0
    %2180 = vmatprep.mubr.bf16.mxu0 0
    %2181 = vmatmul.mubr.bf16.gmra.mrb[0].mxu0 %v2146
    %v2182 = vpop.f32.mrb[0].mxu0
    %v2183 = vadd.f32 %v2132, %v2182
    %v2184 = vpop.f32.mrb[0].mxu0
    %v2185 = vpop.f32.mrb[0].mxu0
    %v2186 = vadd.f32 %v2132, %v2185
    %v2187 = vpop.f32.mrb[0].mxu0
    %2188 = vdwg.mxu0
    %s2189 = scalar_lea.vmem %s3, 384
    %v2190 = vld [vmem:[%s2189] sm:$0xf]
    %v2191 = vld [vmem:[%s2189 + $0x4] sm:$0xf]
    %v2192 = vld [vmem:[%s2189 + $0x8] sm:$0xf]
    %v2193 = vld [vmem:[%s2189 + $0xc] sm:$0xf]
    %v2194 = vld [vmem:[%s4 + $0x1b] sm:$0x1]
    %v2195 = vpack.c.bf16 %v2186, %v2183
    %v2196 = vpack.c.bf16 %v1646, %v1643
    %v2198 = vsel %vm157, %v2195, 0
    %v2201 = vsel %vm157, %v2196, 0
    %2203 = vmatprep.subr.bf16.mxu0 0
    %2204 = vmatpush1.bf16.xpose.msra.mxu0 %v2201
    %2205 = vmatprep.subr.bf16.mxu0 0
    %2206 = vmatpush1.bf16.xpose.msra.mxu0 0
    %2207 = vmatprep.subr.bf16.mxu0 0
    %2208 = vmatpush1.bf16.xpose.msra.mxu0 0
    %2209 = vmatprep.subr.bf16.mxu0 0
    %2210 = vmatpush1.bf16.xpose.msra.mxu0 0
    %2211 = vmatprep.subr.bf16.mxu0 0
    %2212 = vmatpush1.bf16.xpose.msra.mxu0 0
    %2213 = vmatprep.subr.bf16.mxu0 0
    %2214 = vmatpush1.bf16.xpose.msra.mxu0 0
    %2215 = vmatprep.subr.bf16.mxu0 0
    %2216 = vmatpush1.bf16.xpose.msra.mxu0 0
    %2217 = vmatprep.subr.bf16.mxu0 0
    %2218 = vmatpush1.bf16.xpose.msra.mxu0 0
    %2219 = vmatprep.subr.bf16.mxu0 0
    %2220 = vmatpush1.bf16.xpose.msra.mxu0 0
    %2221 = vmatprep.subr.bf16.mxu0 0
    %2222 = vmatpush1.bf16.xpose.msra.mxu0 0
    %2223 = vmatprep.subr.bf16.mxu0 0
    %2224 = vmatpush1.bf16.xpose.msra.mxu0 0
    %2225 = vmatprep.subr.bf16.mxu0 0
    %2226 = vmatpush1.bf16.xpose.msra.mxu0 0
    %2227 = vmatprep.subr.bf16.mxu0 0
    %2228 = vmatpush1.bf16.xpose.msra.mxu0 0
    %2229 = vmatprep.subr.bf16.mxu0 0
    %2230 = vmatpush1.bf16.xpose.msra.mxu0 0
    %2231 = vmatprep.subr.bf16.mxu0 0
    %2232 = vmatpush1.bf16.xpose.msra.mxu0 0
    %2233 = vmatprep.subr.bf16.mxu0 0
    %2234 = vmatpush1.bf16.xpose.msra.mxu0 0
    %2235 = vmatprep.mubr.bf16.mxu0 0
    %2236 = vmatmul.mubr.bf16.gmra.mrb[0].mxu0 %v2198
    %v2237 = vpop.f32.mrb[0].mxu0
    %v2238 = vadd.f32 0.0, %v2237
    %v2239 = vpop.f32.mrb[0].mxu0
    %v2240 = vpop.f32.mrb[0].mxu0
    %v2241 = vadd.f32 0.0, %v2240
    %v2242 = vpop.f32.mrb[0].mxu0
    %2243 = vdwg.mxu0
    %v2244 = vmul.f32 %v2238, 0.25
    %v2245 = vmul.f32 %v2241, 0.25
    %v2246 = vadd.f32 %v2244, %v29
    %v2247 = vadd.f32 %v2245, %v30
    %v2248 = vsel %vm157, %v2246, -inf
    %2249 = vmax.xlane.f32.xlu0 %v2248
    %v2250 = vpop.xlane.xlu0 %2249
    %v2251 = vsel %vm157, %v2247, -inf
    %2252 = vmax.xlane.f32.xlu0 %v2251
    %v2253 = vpop.xlane.xlu0 %2252
    %v2254 = vsub.f32 %v2246, %v2250
    %v2255 = vsub.f32 %v2247, %v2253
    %v2256 = vmul.f32 %v2254, 1.442695
    %v2257 = vpow.pop %v2256
    %v2258 = vmul.f32 %v2255, 1.442695
    %v2259 = vpow.pop %v2258
    %v2260 = vsel %vm157, %v2257, 0.0
    %2261 = vadd.xlane.f32.xlu0 %v2260
    %v2262 = vpop.xlane.xlu0 %2261
    %v2263 = vsel %vm157, %v2259, 0.0
    %2264 = vadd.xlane.f32.xlu0 %v2263
    %v2265 = vpop.xlane.xlu0 %2264
    %v2266 = vrcp.pop %v2262
    %v2267 = vrcp.pop %v2265
    %v2268 = vmul.f32 %v2257, %v2266
    %v2269 = vmul.f32 %v2259, %v2267
    %v2270 = vpack.c.bf16 %v2269, %v2268
    %2272 = vrot.lane.b32.xlu0 %v2196, 96
    %v2273 = vpop.permute.xlu0 %2272
    %v2276 = vsel %vm157, %v2270, 0
    %2278 = vmatprep.subr.bf16.mxu0 0
    %2279 = vmatpush1.bf16.msra.mxu0 %v2273
    %2280 = vmatprep.subr.bf16.mxu0 0
    %2281 = vmatpush1.bf16.msra.mxu0 0
    %2282 = vmatprep.subr.bf16.mxu0 0
    %2283 = vmatpush1.bf16.msra.mxu0 0
    %2284 = vmatprep.subr.bf16.mxu0 0
    %2285 = vmatpush1.bf16.msra.mxu0 0
    %2286 = vmatprep.subr.bf16.mxu0 0
    %2287 = vmatpush1.bf16.msra.mxu0 0
    %2288 = vmatprep.subr.bf16.mxu0 0
    %2289 = vmatpush1.bf16.msra.mxu0 0
    %2290 = vmatprep.subr.bf16.mxu0 0
    %2291 = vmatpush1.bf16.msra.mxu0 0
    %2292 = vmatprep.subr.bf16.mxu0 0
    %2293 = vmatpush1.bf16.msra.mxu0 0
    %2294 = vmatprep.subr.bf16.mxu0 0
    %2295 = vmatpush1.bf16.msra.mxu0 0
    %2296 = vmatprep.subr.bf16.mxu0 0
    %2297 = vmatpush1.bf16.msra.mxu0 0
    %2298 = vmatprep.subr.bf16.mxu0 0
    %2299 = vmatpush1.bf16.msra.mxu0 0
    %2300 = vmatprep.subr.bf16.mxu0 0
    %2301 = vmatpush1.bf16.msra.mxu0 0
    %2302 = vmatprep.subr.bf16.mxu0 0
    %2303 = vmatpush1.bf16.msra.mxu0 0
    %2304 = vmatprep.subr.bf16.mxu0 0
    %2305 = vmatpush1.bf16.msra.mxu0 0
    %2306 = vmatprep.subr.bf16.mxu0 0
    %2307 = vmatpush1.bf16.msra.mxu0 0
    %2308 = vmatprep.subr.bf16.mxu0 0
    %2309 = vmatpush1.bf16.msra.mxu0 0
    %2310 = vmatprep.mubr.bf16.mxu0 0
    %2311 = vmatmul.mubr.bf16.gmra.mrb[0].mxu0 %v2276
    %v2312 = vpop.f32.mrb[0].mxu0
    %v2313 = vadd.f32 0.0, %v2312
    %v2314 = vpop.f32.mrb[0].mxu0
    %v2315 = vpop.f32.mrb[0].mxu0
    %v2316 = vadd.f32 0.0, %v2315
    %v2317 = vpop.f32.mrb[0].mxu0
    %2318 = vdwg.mxu0
    %v2319 = vpack.c.bf16 %v2316, %v2313
    %2321 = vrot.lane.b32.xlu0 %v2195, 112
    %v2322 = vpop.permute.xlu0 %2321
    %2323 = vrot.lane.b32.xlu0 %v2196, 112
    %v2324 = vpop.permute.xlu0 %2323
    %v2326 = vsel %vm157, %v2322, 0
    %v2329 = vsel %vm157, %v2324, 0
    %2331 = vmatprep.subr.bf16.mxu0 0
    %2332 = vmatpush1.bf16.xpose.msra.mxu0 %v2329
    %2333 = vmatprep.subr.bf16.mxu0 0
    %2334 = vmatpush1.bf16.xpose.msra.mxu0 0
    %2335 = vmatprep.subr.bf16.mxu0 0
    %2336 = vmatpush1.bf16.xpose.msra.mxu0 0
    %2337 = vmatprep.subr.bf16.mxu0 0
    %2338 = vmatpush1.bf16.xpose.msra.mxu0 0
    %2339 = vmatprep.subr.bf16.mxu0 0
    %2340 = vmatpush1.bf16.xpose.msra.mxu0 0
    %2341 = vmatprep.subr.bf16.mxu0 0
    %2342 = vmatpush1.bf16.xpose.msra.mxu0 0
    %2343 = vmatprep.subr.bf16.mxu0 0
    %2344 = vmatpush1.bf16.xpose.msra.mxu0 0
    %2345 = vmatprep.subr.bf16.mxu0 0
    %2346 = vmatpush1.bf16.xpose.msra.mxu0 0
    %2347 = vmatprep.subr.bf16.mxu0 0
    %2348 = vmatpush1.bf16.xpose.msra.mxu0 0
    %2349 = vmatprep.subr.bf16.mxu0 0
    %2350 = vmatpush1.bf16.xpose.msra.mxu0 0
    %2351 = vmatprep.subr.bf16.mxu0 0
    %2352 = vmatpush1.bf16.xpose.msra.mxu0 0
    %2353 = vmatprep.subr.bf16.mxu0 0
    %2354 = vmatpush1.bf16.xpose.msra.mxu0 0
    %2355 = vmatprep.subr.bf16.mxu0 0
    %2356 = vmatpush1.bf16.xpose.msra.mxu0 0
    %2357 = vmatprep.subr.bf16.mxu0 0
    %2358 = vmatpush1.bf16.xpose.msra.mxu0 0
    %2359 = vmatprep.subr.bf16.mxu0 0
    %2360 = vmatpush1.bf16.xpose.msra.mxu0 0
    %2361 = vmatprep.subr.bf16.mxu0 0
    %2362 = vmatpush1.bf16.xpose.msra.mxu0 0
    %2363 = vmatprep.mubr.bf16.mxu0 0
    %2364 = vmatmul.mubr.bf16.gmra.mrb[0].mxu0 %v2326
    %v2365 = vpop.f32.mrb[0].mxu0
    %v2366 = vadd.f32 0.0, %v2365
    %v2367 = vpop.f32.mrb[0].mxu0
    %v2368 = vpop.f32.mrb[0].mxu0
    %v2369 = vadd.f32 0.0, %v2368
    %v2370 = vpop.f32.mrb[0].mxu0
    %2371 = vdwg.mxu0
    %v2372 = vmul.f32 %v2366, 0.25
    %v2373 = vmul.f32 %v2369, 0.25
    %v2374 = vadd.f32 %v2372, %v29
    %v2375 = vadd.f32 %v2373, %v30
    %v2376 = vsel %vm157, %v2374, -inf
    %2377 = vmax.xlane.f32.xlu0 %v2376
    %v2378 = vpop.xlane.xlu0 %2377
    %v2379 = vsel %vm157, %v2375, -inf
    %2380 = vmax.xlane.f32.xlu0 %v2379
    %v2381 = vpop.xlane.xlu0 %2380
    %v2382 = vsub.f32 %v2374, %v2378
    %v2383 = vsub.f32 %v2375, %v2381
    %v2384 = vmul.f32 %v2382, 1.442695
    %v2385 = vpow.pop %v2384
    %v2386 = vmul.f32 %v2383, 1.442695
    %v2387 = vpow.pop %v2386
    %v2388 = vsel %vm157, %v2385, 0.0
    %2389 = vadd.xlane.f32.xlu0 %v2388
    %v2390 = vpop.xlane.xlu0 %2389
    %v2391 = vsel %vm157, %v2387, 0.0
    %2392 = vadd.xlane.f32.xlu0 %v2391
    %v2393 = vpop.xlane.xlu0 %2392
    %v2394 = vrcp.pop %v2390
    %v2395 = vrcp.pop %v2393
    %v2396 = vmul.f32 %v2385, %v2394
    %v2397 = vmul.f32 %v2387, %v2395
    %v2398 = vpack.c.bf16 %v2397, %v2396
    %2399 = vrot.lane.b32.xlu0 %v2196, 80
    %v2400 = vpop.permute.xlu0 %2399
    %v2403 = vsel %vm157, %v2398, 0
    %2405 = vmatprep.subr.bf16.mxu0 0
    %2406 = vmatpush1.bf16.msra.mxu0 %v2400
    %2407 = vmatprep.subr.bf16.mxu0 0
    %2408 = vmatpush1.bf16.msra.mxu0 0
    %2409 = vmatprep.subr.bf16.mxu0 0
    %2410 = vmatpush1.bf16.msra.mxu0 0
    %2411 = vmatprep.subr.bf16.mxu0 0
    %2412 = vmatpush1.bf16.msra.mxu0 0
    %2413 = vmatprep.subr.bf16.mxu0 0
    %2414 = vmatpush1.bf16.msra.mxu0 0
    %2415 = vmatprep.subr.bf16.mxu0 0
    %2416 = vmatpush1.bf16.msra.mxu0 0
    %2417 = vmatprep.subr.bf16.mxu0 0
    %2418 = vmatpush1.bf16.msra.mxu0 0
    %2419 = vmatprep.subr.bf16.mxu0 0
    %2420 = vmatpush1.bf16.msra.mxu0 0
    %2421 = vmatprep.subr.bf16.mxu0 0
    %2422 = vmatpush1.bf16.msra.mxu0 0
    %2423 = vmatprep.subr.bf16.mxu0 0
    %2424 = vmatpush1.bf16.msra.mxu0 0
    %2425 = vmatprep.subr.bf16.mxu0 0
    %2426 = vmatpush1.bf16.msra.mxu0 0
    %2427 = vmatprep.subr.bf16.mxu0 0
    %2428 = vmatpush1.bf16.msra.mxu0 0
    %2429 = vmatprep.subr.bf16.mxu0 0
    %2430 = vmatpush1.bf16.msra.mxu0 0
    %2431 = vmatprep.subr.bf16.mxu0 0
    %2432 = vmatpush1.bf16.msra.mxu0 0
    %2433 = vmatprep.subr.bf16.mxu0 0
    %2434 = vmatpush1.bf16.msra.mxu0 0
    %2435 = vmatprep.subr.bf16.mxu0 0
    %2436 = vmatpush1.bf16.msra.mxu0 0
    %2437 = vmatprep.mubr.bf16.mxu0 0
    %2438 = vmatmul.mubr.bf16.gmra.mrb[0].mxu0 %v2403
    %v2439 = vpop.f32.mrb[0].mxu0
    %v2440 = vadd.f32 0.0, %v2439
    %v2441 = vpop.f32.mrb[0].mxu0
    %v2442 = vpop.f32.mrb[0].mxu0
    %v2443 = vadd.f32 0.0, %v2442
    %v2444 = vpop.f32.mrb[0].mxu0
    %2445 = vdwg.mxu0
    %v2446 = vpack.c.bf16 %v2443, %v2440
    %v2449 = vunpack.c.l.b16 %v2192
    %v2450 = vunpack.c.l.b16 %v2193
    %v2451 = vpack.c.b16 %v2450, %v2449
    %v2454 = vsel %vm157, %v2446, 0
    %2456 = vmatprep.subr.bf16.mxu0 0
    %2457 = vmatpush1.bf16.msra.mxu0 %v2451
    %2458 = vmatprep.subr.bf16.mxu0 0
    %2459 = vmatpush1.bf16.msra.mxu0 0
    %2460 = vmatprep.subr.bf16.mxu0 0
    %2461 = vmatpush1.bf16.msra.mxu0 0
    %2462 = vmatprep.subr.bf16.mxu0 0
    %2463 = vmatpush1.bf16.msra.mxu0 0
    %2464 = vmatprep.subr.bf16.mxu0 0
    %2465 = vmatpush1.bf16.msra.mxu0 0
    %2466 = vmatprep.subr.bf16.mxu0 0
    %2467 = vmatpush1.bf16.msra.mxu0 0
    %2468 = vmatprep.subr.bf16.mxu0 0
    %2469 = vmatpush1.bf16.msra.mxu0 0
    %2470 = vmatprep.subr.bf16.mxu0 0
    %2471 = vmatpush1.bf16.msra.mxu0 0
    %2472 = vmatprep.subr.bf16.mxu0 0
    %2473 = vmatpush1.bf16.msra.mxu0 0
    %2474 = vmatprep.subr.bf16.mxu0 0
    %2475 = vmatpush1.bf16.msra.mxu0 0
    %2476 = vmatprep.subr.bf16.mxu0 0
    %2477 = vmatpush1.bf16.msra.mxu0 0
    %2478 = vmatprep.subr.bf16.mxu0 0
    %2479 = vmatpush1.bf16.msra.mxu0 0
    %2480 = vmatprep.subr.bf16.mxu0 0
    %2481 = vmatpush1.bf16.msra.mxu0 0
    %2482 = vmatprep.subr.bf16.mxu0 0
    %2483 = vmatpush1.bf16.msra.mxu0 0
    %2484 = vmatprep.subr.bf16.mxu0 0
    %2485 = vmatpush1.bf16.msra.mxu0 0
    %2486 = vmatprep.subr.bf16.mxu0 0
    %2487 = vmatpush1.bf16.msra.mxu0 0
    %2488 = vmatprep.mubr.bf16.mxu0 0
    %2489 = vmatmul.mubr.bf16.gmra.mrb[0].mxu0 %v2454
    %v2490 = vpop.f32.mrb[0].mxu0
    %v2491 = vadd.f32 0.0, %v2490
    %v2492 = vpop.f32.mrb[0].mxu0
    %v2493 = vpop.f32.mrb[0].mxu0
    %v2494 = vadd.f32 0.0, %v2493
    %v2495 = vpop.f32.mrb[0].mxu0
    %2496 = vdwg.mxu0
    %v2499 = vunpack.c.l.b16 %v2190
    %v2500 = vunpack.c.l.b16 %v2191
    %v2501 = vpack.c.b16 %v2500, %v2499
    %v2504 = vsel %vm157, %v2319, 0
    %2506 = vmatprep.subr.bf16.mxu0 0
    %2507 = vmatpush1.bf16.msra.mxu0 %v2501
    %2508 = vmatprep.subr.bf16.mxu0 0
    %2509 = vmatpush1.bf16.msra.mxu0 0
    %2510 = vmatprep.subr.bf16.mxu0 0
    %2511 = vmatpush1.bf16.msra.mxu0 0
    %2512 = vmatprep.subr.bf16.mxu0 0
    %2513 = vmatpush1.bf16.msra.mxu0 0
    %2514 = vmatprep.subr.bf16.mxu0 0
    %2515 = vmatpush1.bf16.msra.mxu0 0
    %2516 = vmatprep.subr.bf16.mxu0 0
    %2517 = vmatpush1.bf16.msra.mxu0 0
    %2518 = vmatprep.subr.bf16.mxu0 0
    %2519 = vmatpush1.bf16.msra.mxu0 0
    %2520 = vmatprep.subr.bf16.mxu0 0
    %2521 = vmatpush1.bf16.msra.mxu0 0
    %2522 = vmatprep.subr.bf16.mxu0 0
    %2523 = vmatpush1.bf16.msra.mxu0 0
    %2524 = vmatprep.subr.bf16.mxu0 0
    %2525 = vmatpush1.bf16.msra.mxu0 0
    %2526 = vmatprep.subr.bf16.mxu0 0
    %2527 = vmatpush1.bf16.msra.mxu0 0
    %2528 = vmatprep.subr.bf16.mxu0 0
    %2529 = vmatpush1.bf16.msra.mxu0 0
    %2530 = vmatprep.subr.bf16.mxu0 0
    %2531 = vmatpush1.bf16.msra.mxu0 0
    %2532 = vmatprep.subr.bf16.mxu0 0
    %2533 = vmatpush1.bf16.msra.mxu0 0
    %2534 = vmatprep.subr.bf16.mxu0 0
    %2535 = vmatpush1.bf16.msra.mxu0 0
    %2536 = vmatprep.subr.bf16.mxu0 0
    %2537 = vmatpush1.bf16.msra.mxu0 0
    %2538 = vmatprep.mubr.bf16.mxu0 0
    %2539 = vmatmul.mubr.bf16.gmra.mrb[0].mxu0 %v2504
    %v2540 = vpop.f32.mrb[0].mxu0
    %v2541 = vadd.f32 %v2491, %v2540
    %v2542 = vpop.f32.mrb[0].mxu0
    %v2543 = vpop.f32.mrb[0].mxu0
    %v2544 = vadd.f32 %v2494, %v2543
    %v2545 = vpop.f32.mrb[0].mxu0
    %2546 = vdwg.mxu0
    %v2547 = vlaneseq
    %v2548 = vshrl.u32 %v2547, 7
    %v2549 = vsub.s32 0, %v2548
    %v2550 = vrot.slane %v2194, %v2549
    %v2551 = vadd.f32 %v2541, %v2550
    %v2552 = vadd.f32 %v2544, %v2550
    %v2553 = vadd.f32 %v2551, %v2120
    %v2554 = vadd.f32 %v2552, %v2121
    %v2555 = vld [vmem:[%s4 + $0x1c] sm:$0x1]
    %v2556 = vld [vmem:[%s4 + $0x1d] sm:$0x1]
    %v2557 = vsel %vm42, %v2553, 0.0
    %2558 = vadd.xlane.f32.xlu0 %v2557
    %v2559 = vpop.xlane.xlu0 %2558
    %v2560 = vsel %vm42, %v2554, 0.0
    %2561 = vadd.xlane.f32.xlu0 %v2560
    %v2562 = vpop.xlane.xlu0 %2561
    %v2563 = vmul.f32 %v2559, %v49
    %v2564 = vmul.f32 %v2562, %v49
    %v2565 = vsub.f32 %v2553, %v2563
    %v2566 = vsub.f32 %v2554, %v2564
    %v2567 = vmul.f32 %v2565, %v2565
    %v2568 = vmul.f32 %v2566, %v2566
    %v2569 = vsel %vm42, %v2567, 0.0
    %2570 = vadd.xlane.f32.xlu0 %v2569
    %v2571 = vpop.xlane.xlu0 %2570
    %v2572 = vsel %vm42, %v2568, 0.0
    %2573 = vadd.xlane.f32.xlu0 %v2572
    %v2574 = vpop.xlane.xlu0 %2573
    %v2575 = vmul.f32 %v2571, %v49
    %v2576 = vmul.f32 %v2574, %v49
    %v2577 = vadd.f32 %v2575, 1e-06
    %v2578 = vadd.f32 %v2576, 1e-06
    %v2579 = vrsqrt.pop %v2577
    %v2580 = vrsqrt.pop %v2578
    %v2581 = vmul.f32 %v2565, %v2579
    %v2582 = vmul.f32 %v2566, %v2580
    %v2583 = vlaneseq
    %v2584 = vshrl.u32 %v2583, 7
    %v2585 = vsub.s32 0, %v2584
    %v2586 = vrot.slane %v2555, %v2585
    %v2587 = vmul.f32 %v2581, %v2586
    %v2588 = vmul.f32 %v2582, %v2586
    %v2589 = vlaneseq
    %v2590 = vshrl.u32 %v2589, 7
    %v2591 = vsub.s32 0, %v2590
    %v2592 = vrot.slane %v2556, %v2591
    %v2593 = vadd.f32 %v2587, %v2592
    %v2594 = vadd.f32 %v2588, %v2592
    %s2595 = scalar_lea.vmem %s2, 144
    %v2596 = vld [vmem:[%s2595] sm:$0xf]
    %v2597 = vld [vmem:[%s2595 + $0x4] sm:$0xf]
    %v2598 = vld [vmem:[%s2595 + $0x8] sm:$0xf]
    %v2599 = vld [vmem:[%s2595 + $0xc] sm:$0xf]
    %v2600 = vpack.c.bf16 %v2594, %v2593
    %v2601 = vld [vmem:[%s4 + $0x1e] sm:$0x1]
    %v2602 = vlaneseq
    %v2603 = vshrl.u32 %v2602, 7
    %v2604 = vsub.s32 0, %v2603
    %v2605 = vrot.slane %v2601, %v2604
    %v2610 = vunpack.c.l.b16 %v2596
    %v2611 = vunpack.c.l.b16 %v2597
    %v2612 = vunpack.c.l.b16 %v2598
    %v2613 = vunpack.c.l.b16 %v2599
    %v2614 = vpack.c.b16 %v2611, %v2610
    %v2615 = vpack.c.b16 %v2613, %v2612
    %v2619 = vsel %vm42, %v2600, 0
    %2621 = vmatprep.subr.bf16.mxu0 0
    %2622 = vmatpush1.bf16.msra.mxu0 %v2614
    %2623 = vmatprep.subr.bf16.mxu0 0
    %2624 = vmatpush1.bf16.msra.mxu0 %v2615
    %2625 = vmatprep.subr.bf16.mxu0 0
    %2626 = vmatpush1.bf16.msra.mxu0 0
    %2627 = vmatprep.subr.bf16.mxu0 0
    %2628 = vmatpush1.bf16.msra.mxu0 0
    %2629 = vmatprep.subr.bf16.mxu0 0
    %2630 = vmatpush1.bf16.msra.mxu0 0
    %2631 = vmatprep.subr.bf16.mxu0 0
    %2632 = vmatpush1.bf16.msra.mxu0 0
    %2633 = vmatprep.subr.bf16.mxu0 0
    %2634 = vmatpush1.bf16.msra.mxu0 0
    %2635 = vmatprep.subr.bf16.mxu0 0
    %2636 = vmatpush1.bf16.msra.mxu0 0
    %2637 = vmatprep.subr.bf16.mxu0 0
    %2638 = vmatpush1.bf16.msra.mxu0 0
    %2639 = vmatprep.subr.bf16.mxu0 0
    %2640 = vmatpush1.bf16.msra.mxu0 0
    %2641 = vmatprep.subr.bf16.mxu0 0
    %2642 = vmatpush1.bf16.msra.mxu0 0
    %2643 = vmatprep.subr.bf16.mxu0 0
    %2644 = vmatpush1.bf16.msra.mxu0 0
    %2645 = vmatprep.subr.bf16.mxu0 0
    %2646 = vmatpush1.bf16.msra.mxu0 0
    %2647 = vmatprep.subr.bf16.mxu0 0
    %2648 = vmatpush1.bf16.msra.mxu0 0
    %2649 = vmatprep.subr.bf16.mxu0 0
    %2650 = vmatpush1.bf16.msra.mxu0 0
    %2651 = vmatprep.subr.bf16.mxu0 0
    %2652 = vmatpush1.bf16.msra.mxu0 0
    %2653 = vmatprep.mubr.bf16.mxu0 0
    %2654 = vmatmul.mubr.bf16.gmra.mrb[0].mxu0 %v2619
    %v2655 = vpop.f32.mrb[0].mxu0
    %v2656 = vadd.f32 %v2605, %v2655
    %v2657 = vpop.f32.mrb[0].mxu0
    %v2658 = vpop.f32.mrb[0].mxu0
    %v2659 = vadd.f32 %v2605, %v2658
    %v2660 = vpop.f32.mrb[0].mxu0
    %2661 = vdwg.mxu0
    %v2662 = vmax.f32 %v2656, 0.0
    %v2663 = vmax.f32 %v2659, 0.0
    %s2664 = scalar_lea.vmem %s3, 512
    %v2665 = vld [vmem:[%s2664] sm:$0xf]
    %v2666 = vld [vmem:[%s2664 + $0x4] sm:$0xf]
    %v2667 = vld [vmem:[%s2664 + $0x8] sm:$0xf]
    %v2668 = vld [vmem:[%s2664 + $0xc] sm:$0xf]
    %v2669 = vld [vmem:[%s2664 + $0x10] sm:$0xf]
    %v2670 = vld [vmem:[%s2664 + $0x14] sm:$0xf]
    %v2671 = vld [vmem:[%s2664 + $0x18] sm:$0xf]
    %v2672 = vld [vmem:[%s2664 + $0x1c] sm:$0xf]
    %v2673 = vpack.c.bf16 %v2663, %v2662
    %v2674 = vld [vmem:[%s4 + $0x1f] sm:$0x1]
    %v2675 = vlaneseq
    %v2676 = vshrl.u32 %v2675, 7
    %v2677 = vsub.s32 0, %v2676
    %v2678 = vrot.slane %v2674, %v2677
    %v2687 = vunpack.c.l.b16 %v2665
    %v2688 = vunpack.c.l.b16 %v2666
    %v2689 = vunpack.c.l.b16 %v2667
    %v2690 = vunpack.c.l.b16 %v2668
    %v2691 = vunpack.c.l.b16 %v2669
    %v2692 = vunpack.c.l.b16 %v2670
    %v2693 = vunpack.c.l.b16 %v2671
    %v2694 = vunpack.c.l.b16 %v2672
    %v2695 = vpack.c.b16 %v2688, %v2687
    %v2696 = vpack.c.b16 %v2690, %v2689
    %v2697 = vpack.c.b16 %v2692, %v2691
    %v2698 = vpack.c.b16 %v2694, %v2693
    %v2704 = vsel %vm662, %v2673, 0
    %2706 = vmatprep.subr.bf16.mxu0 0
    %2707 = vmatpush1.bf16.msra.mxu0 %v2695
    %2708 = vmatprep.subr.bf16.mxu0 0
    %2709 = vmatpush1.bf16.msra.mxu0 %v2696
    %2710 = vmatprep.subr.bf16.mxu0 0
    %2711 = vmatpush1.bf16.msra.mxu0 %v2697
    %2712 = vmatprep.subr.bf16.mxu0 0
    %2713 = vmatpush1.bf16.msra.mxu0 %v2698
    %2714 = vmatprep.subr.bf16.mxu0 0
    %2715 = vmatpush1.bf16.msra.mxu0 0
    %2716 = vmatprep.subr.bf16.mxu0 0
    %2717 = vmatpush1.bf16.msra.mxu0 0
    %2718 = vmatprep.subr.bf16.mxu0 0
    %2719 = vmatpush1.bf16.msra.mxu0 0
    %2720 = vmatprep.subr.bf16.mxu0 0
    %2721 = vmatpush1.bf16.msra.mxu0 0
    %2722 = vmatprep.subr.bf16.mxu0 0
    %2723 = vmatpush1.bf16.msra.mxu0 0
    %2724 = vmatprep.subr.bf16.mxu0 0
    %2725 = vmatpush1.bf16.msra.mxu0 0
    %2726 = vmatprep.subr.bf16.mxu0 0
    %2727 = vmatpush1.bf16.msra.mxu0 0
    %2728 = vmatprep.subr.bf16.mxu0 0
    %2729 = vmatpush1.bf16.msra.mxu0 0
    %2730 = vmatprep.subr.bf16.mxu0 0
    %2731 = vmatpush1.bf16.msra.mxu0 0
    %2732 = vmatprep.subr.bf16.mxu0 0
    %2733 = vmatpush1.bf16.msra.mxu0 0
    %2734 = vmatprep.subr.bf16.mxu0 0
    %2735 = vmatpush1.bf16.msra.mxu0 0
    %2736 = vmatprep.subr.bf16.mxu0 0
    %2737 = vmatpush1.bf16.msra.mxu0 0
    %2738 = vmatprep.mubr.bf16.mxu0 0
    %2739 = vmatmul.mubr.bf16.gmra.mrb[0].mxu0 %v2704
    %v2740 = vpop.f32.mrb[0].mxu0
    %v2741 = vadd.f32 %v2678, %v2740
    %v2742 = vpop.f32.mrb[0].mxu0
    %v2743 = vpop.f32.mrb[0].mxu0
    %v2744 = vadd.f32 %v2678, %v2743
    %v2745 = vpop.f32.mrb[0].mxu0
    %2746 = vdwg.mxu0
    %v2747 = vadd.f32 %v2741, %v2593
    %v2748 = vadd.f32 %v2744, %v2594
    %v2749 = vld [vmem:[%s4 + $0x20] sm:$0x1]
    %v2750 = vld [vmem:[%s4 + $0x21] sm:$0x1]
    %v2751 = vsel %vm42, %v2747, 0.0
    %2752 = vadd.xlane.f32.xlu0 %v2751
    %v2753 = vpop.xlane.xlu0 %2752
    %v2754 = vsel %vm42, %v2748, 0.0
    %2755 = vadd.xlane.f32.xlu0 %v2754
    %v2756 = vpop.xlane.xlu0 %2755
    %v2757 = vmul.f32 %v2753, %v49
    %v2758 = vmul.f32 %v2756, %v49
    %v2759 = vsub.f32 %v2747, %v2757
    %v2760 = vsub.f32 %v2748, %v2758
    %v2761 = vmul.f32 %v2759, %v2759
    %v2762 = vmul.f32 %v2760, %v2760
    %v2763 = vsel %vm42, %v2761, 0.0
    %2764 = vadd.xlane.f32.xlu0 %v2763
    %v2765 = vpop.xlane.xlu0 %2764
    %v2766 = vsel %vm42, %v2762, 0.0
    %2767 = vadd.xlane.f32.xlu0 %v2766
    %v2768 = vpop.xlane.xlu0 %2767
    %v2769 = vmul.f32 %v2765, %v49
    %v2770 = vmul.f32 %v2768, %v49
    %v2771 = vadd.f32 %v2769, 1e-06
    %v2772 = vadd.f32 %v2770, 1e-06
    %v2773 = vrsqrt.pop %v2771
    %v2774 = vrsqrt.pop %v2772
    %v2775 = vmul.f32 %v2759, %v2773
    %v2776 = vmul.f32 %v2760, %v2774
    %v2777 = vlaneseq
    %v2778 = vshrl.u32 %v2777, 7
    %v2779 = vsub.s32 0, %v2778
    %v2780 = vrot.slane %v2749, %v2779
    %v2781 = vmul.f32 %v2775, %v2780
    %v2782 = vmul.f32 %v2776, %v2780
    %v2783 = vlaneseq
    %v2784 = vshrl.u32 %v2783, 7
    %v2785 = vsub.s32 0, %v2784
    %v2786 = vrot.slane %v2750, %v2785
    %v2787 = vadd.f32 %v2781, %v2786
    %v2788 = vadd.f32 %v2782, %v2786
    %s2789 = scalar_lea.vmem %s2, 80
    %v2790 = vld [vmem:[%s2789] sm:$0xf]
    %v2791 = vld [vmem:[%s2789 + $0x4] sm:$0xf]
    %v2792 = vld [vmem:[%s2789 + $0x8] sm:$0xf]
    %v2793 = vld [vmem:[%s2789 + $0xc] sm:$0xf]
    %v2794 = vpack.c.bf16 %v2788, %v2787
    %v2795 = vld [vmem:[%s4 + $0x22] sm:$0x1]
    %v2796 = vlaneseq
    %v2797 = vshrl.u32 %v2796, 7
    %v2798 = vsub.s32 0, %v2797
    %v2799 = vrot.slane %v2795, %v2798
    %v2804 = vunpack.c.l.b16 %v2790
    %v2805 = vunpack.c.l.b16 %v2791
    %v2806 = vunpack.c.l.b16 %v2792
    %v2807 = vunpack.c.l.b16 %v2793
    %v2808 = vpack.c.b16 %v2805, %v2804
    %v2809 = vpack.c.b16 %v2807, %v2806
    %v2813 = vsel %vm42, %v2794, 0
    %2815 = vmatprep.subr.bf16.mxu0 0
    %2816 = vmatpush1.bf16.msra.mxu0 %v2808
    %2817 = vmatprep.subr.bf16.mxu0 0
    %2818 = vmatpush1.bf16.msra.mxu0 %v2809
    %2819 = vmatprep.subr.bf16.mxu0 0
    %2820 = vmatpush1.bf16.msra.mxu0 0
    %2821 = vmatprep.subr.bf16.mxu0 0
    %2822 = vmatpush1.bf16.msra.mxu0 0
    %2823 = vmatprep.subr.bf16.mxu0 0
    %2824 = vmatpush1.bf16.msra.mxu0 0
    %2825 = vmatprep.subr.bf16.mxu0 0
    %2826 = vmatpush1.bf16.msra.mxu0 0
    %2827 = vmatprep.subr.bf16.mxu0 0
    %2828 = vmatpush1.bf16.msra.mxu0 0
    %2829 = vmatprep.subr.bf16.mxu0 0
    %2830 = vmatpush1.bf16.msra.mxu0 0
    %2831 = vmatprep.subr.bf16.mxu0 0
    %2832 = vmatpush1.bf16.msra.mxu0 0
    %2833 = vmatprep.subr.bf16.mxu0 0
    %2834 = vmatpush1.bf16.msra.mxu0 0
    %2835 = vmatprep.subr.bf16.mxu0 0
    %2836 = vmatpush1.bf16.msra.mxu0 0
    %2837 = vmatprep.subr.bf16.mxu0 0
    %2838 = vmatpush1.bf16.msra.mxu0 0
    %2839 = vmatprep.subr.bf16.mxu0 0
    %2840 = vmatpush1.bf16.msra.mxu0 0
    %2841 = vmatprep.subr.bf16.mxu0 0
    %2842 = vmatpush1.bf16.msra.mxu0 0
    %2843 = vmatprep.subr.bf16.mxu0 0
    %2844 = vmatpush1.bf16.msra.mxu0 0
    %2845 = vmatprep.subr.bf16.mxu0 0
    %2846 = vmatpush1.bf16.msra.mxu0 0
    %2847 = vmatprep.mubr.bf16.mxu0 0
    %2848 = vmatmul.mubr.bf16.gmra.mrb[0].mxu0 %v2813
    %v2849 = vpop.f32.mrb[0].mxu0
    %v2850 = vadd.f32 %v2799, %v2849
    %v2851 = vpop.f32.mrb[0].mxu0
    %v2852 = vpop.f32.mrb[0].mxu0
    %v2853 = vadd.f32 %v2799, %v2852
    %v2854 = vpop.f32.mrb[0].mxu0
    %2855 = vdwg.mxu0
    %s2856 = scalar_lea.vmem %s3, 320
    %v2857 = vld [vmem:[%s2856] sm:$0xf]
    %v2858 = vld [vmem:[%s2856 + $0x4] sm:$0xf]
    %v2859 = vld [vmem:[%s2856 + $0x8] sm:$0xf]
    %v2860 = vld [vmem:[%s2856 + $0xc] sm:$0xf]
    %v2861 = vld [vmem:[%s4 + $0x23] sm:$0x1]
    %v2862 = vpack.c.bf16 %v2853, %v2850
    %2864 = vrot.lane.b32.xlu0 %v2862, 96
    %v2865 = vpop.permute.xlu0 %2864
    %v2867 = vsel %vm157, %v2862, 0
    %v2870 = vsel %vm157, %v2865, 0
    %2872 = vmatprep.subr.bf16.mxu0 0
    %2873 = vmatpush1.bf16.xpose.msra.mxu0 %v2870
    %2874 = vmatprep.subr.bf16.mxu0 0
    %2875 = vmatpush1.bf16.xpose.msra.mxu0 0
    %2876 = vmatprep.subr.bf16.mxu0 0
    %2877 = vmatpush1.bf16.xpose.msra.mxu0 0
    %2878 = vmatprep.subr.bf16.mxu0 0
    %2879 = vmatpush1.bf16.xpose.msra.mxu0 0
    %2880 = vmatprep.subr.bf16.mxu0 0
    %2881 = vmatpush1.bf16.xpose.msra.mxu0 0
    %2882 = vmatprep.subr.bf16.mxu0 0
    %2883 = vmatpush1.bf16.xpose.msra.mxu0 0
    %2884 = vmatprep.subr.bf16.mxu0 0
    %2885 = vmatpush1.bf16.xpose.msra.mxu0 0
    %2886 = vmatprep.subr.bf16.mxu0 0
    %2887 = vmatpush1.bf16.xpose.msra.mxu0 0
    %2888 = vmatprep.subr.bf16.mxu0 0
    %2889 = vmatpush1.bf16.xpose.msra.mxu0 0
    %2890 = vmatprep.subr.bf16.mxu0 0
    %2891 = vmatpush1.bf16.xpose.msra.mxu0 0
    %2892 = vmatprep.subr.bf16.mxu0 0
    %2893 = vmatpush1.bf16.xpose.msra.mxu0 0
    %2894 = vmatprep.subr.bf16.mxu0 0
    %2895 = vmatpush1.bf16.xpose.msra.mxu0 0
    %2896 = vmatprep.subr.bf16.mxu0 0
    %2897 = vmatpush1.bf16.xpose.msra.mxu0 0
    %2898 = vmatprep.subr.bf16.mxu0 0
    %2899 = vmatpush1.bf16.xpose.msra.mxu0 0
    %2900 = vmatprep.subr.bf16.mxu0 0
    %2901 = vmatpush1.bf16.xpose.msra.mxu0 0
    %2902 = vmatprep.subr.bf16.mxu0 0
    %2903 = vmatpush1.bf16.xpose.msra.mxu0 0
    %2904 = vmatprep.mubr.bf16.mxu0 0
    %2905 = vmatmul.mubr.bf16.gmra.mrb[0].mxu0 %v2867
    %v2906 = vpop.f32.mrb[0].mxu0
    %v2907 = vadd.f32 0.0, %v2906
    %v2908 = vpop.f32.mrb[0].mxu0
    %v2909 = vpop.f32.mrb[0].mxu0
    %v2910 = vadd.f32 0.0, %v2909
    %v2911 = vpop.f32.mrb[0].mxu0
    %2912 = vdwg.mxu0
    %v2913 = vmul.f32 %v2907, 0.25
    %v2914 = vmul.f32 %v2910, 0.25
    %v2915 = vadd.f32 %v2913, %v26
    %v2916 = vadd.f32 %v2914, %v27
    %v2917 = vsel %vm157, %v2915, -inf
    %2918 = vmax.xlane.f32.xlu0 %v2917
    %v2919 = vpop.xlane.xlu0 %2918
    %v2920 = vsel %vm157, %v2916, -inf
    %2921 = vmax.xlane.f32.xlu0 %v2920
    %v2922 = vpop.xlane.xlu0 %2921
    %v2923 = vsub.f32 %v2915, %v2919
    %v2924 = vsub.f32 %v2916, %v2922
    %v2925 = vmul.f32 %v2923, 1.442695
    %v2926 = vpow.pop %v2925
    %v2927 = vmul.f32 %v2924, 1.442695
    %v2928 = vpow.pop %v2927
    %v2929 = vsel %vm157, %v2926, 0.0
    %2930 = vadd.xlane.f32.xlu0 %v2929
    %v2931 = vpop.xlane.xlu0 %2930
    %v2932 = vsel %vm157, %v2928, 0.0
    %2933 = vadd.xlane.f32.xlu0 %v2932
    %v2934 = vpop.xlane.xlu0 %2933
    %v2935 = vrcp.pop %v2931
    %v2936 = vrcp.pop %v2934
    %v2937 = vmul.f32 %v2926, %v2935
    %v2938 = vmul.f32 %v2928, %v2936
    %v2939 = vpack.c.bf16 %v2938, %v2937
    %2940 = vrot.lane.b32.xlu0 %v2862, 64
    %v2941 = vpop.permute.xlu0 %2940
    %v2944 = vsel %vm157, %v2939, 0
    %2946 = vmatprep.subr.bf16.mxu0 0
    %2947 = vmatpush1.bf16.msra.mxu0 %v2941
    %2948 = vmatprep.subr.bf16.mxu0 0
    %2949 = vmatpush1.bf16.msra.mxu0 0
    %2950 = vmatprep.subr.bf16.mxu0 0
    %2951 = vmatpush1.bf16.msra.mxu0 0
    %2952 = vmatprep.subr.bf16.mxu0 0
    %2953 = vmatpush1.bf16.msra.mxu0 0
    %2954 = vmatprep.subr.bf16.mxu0 0
    %2955 = vmatpush1.bf16.msra.mxu0 0
    %2956 = vmatprep.subr.bf16.mxu0 0
    %2957 = vmatpush1.bf16.msra.mxu0 0
    %2958 = vmatprep.subr.bf16.mxu0 0
    %2959 = vmatpush1.bf16.msra.mxu0 0
    %2960 = vmatprep.subr.bf16.mxu0 0
    %2961 = vmatpush1.bf16.msra.mxu0 0
    %2962 = vmatprep.subr.bf16.mxu0 0
    %2963 = vmatpush1.bf16.msra.mxu0 0
    %2964 = vmatprep.subr.bf16.mxu0 0
    %2965 = vmatpush1.bf16.msra.mxu0 0
    %2966 = vmatprep.subr.bf16.mxu0 0
    %2967 = vmatpush1.bf16.msra.mxu0 0
    %2968 = vmatprep.subr.bf16.mxu0 0
    %2969 = vmatpush1.bf16.msra.mxu0 0
    %2970 = vmatprep.subr.bf16.mxu0 0
    %2971 = vmatpush1.bf16.msra.mxu0 0
    %2972 = vmatprep.subr.bf16.mxu0 0
    %2973 = vmatpush1.bf16.msra.mxu0 0
    %2974 = vmatprep.subr.bf16.mxu0 0
    %2975 = vmatpush1.bf16.msra.mxu0 0
    %2976 = vmatprep.subr.bf16.mxu0 0
    %2977 = vmatpush1.bf16.msra.mxu0 0
    %2978 = vmatprep.mubr.bf16.mxu0 0
    %2979 = vmatmul.mubr.bf16.gmra.mrb[0].mxu0 %v2944
    %v2980 = vpop.f32.mrb[0].mxu0
    %v2981 = vadd.f32 0.0, %v2980
    %v2982 = vpop.f32.mrb[0].mxu0
    %v2983 = vpop.f32.mrb[0].mxu0
    %v2984 = vadd.f32 0.0, %v2983
    %v2985 = vpop.f32.mrb[0].mxu0
    %2986 = vdwg.mxu0
    %v2987 = vpack.c.bf16 %v2984, %v2981
    %2988 = vrot.lane.b32.xlu0 %v2862, 112
    %v2989 = vpop.permute.xlu0 %2988
    %2990 = vrot.lane.b32.xlu0 %v2862, 80
    %v2991 = vpop.permute.xlu0 %2990
    %v2993 = vsel %vm157, %v2989, 0
    %v2996 = vsel %vm157, %v2991, 0
    %2998 = vmatprep.subr.bf16.mxu0 0
    %2999 = vmatpush1.bf16.xpose.msra.mxu0 %v2996
    %3000 = vmatprep.subr.bf16.mxu0 0
    %3001 = vmatpush1.bf16.xpose.msra.mxu0 0
    %3002 = vmatprep.subr.bf16.mxu0 0
    %3003 = vmatpush1.bf16.xpose.msra.mxu0 0
    %3004 = vmatprep.subr.bf16.mxu0 0
    %3005 = vmatpush1.bf16.xpose.msra.mxu0 0
    %3006 = vmatprep.subr.bf16.mxu0 0
    %3007 = vmatpush1.bf16.xpose.msra.mxu0 0
    %3008 = vmatprep.subr.bf16.mxu0 0
    %3009 = vmatpush1.bf16.xpose.msra.mxu0 0
    %3010 = vmatprep.subr.bf16.mxu0 0
    %3011 = vmatpush1.bf16.xpose.msra.mxu0 0
    %3012 = vmatprep.subr.bf16.mxu0 0
    %3013 = vmatpush1.bf16.xpose.msra.mxu0 0
    %3014 = vmatprep.subr.bf16.mxu0 0
    %3015 = vmatpush1.bf16.xpose.msra.mxu0 0
    %3016 = vmatprep.subr.bf16.mxu0 0
    %3017 = vmatpush1.bf16.xpose.msra.mxu0 0
    %3018 = vmatprep.subr.bf16.mxu0 0
    %3019 = vmatpush1.bf16.xpose.msra.mxu0 0
    %3020 = vmatprep.subr.bf16.mxu0 0
    %3021 = vmatpush1.bf16.xpose.msra.mxu0 0
    %3022 = vmatprep.subr.bf16.mxu0 0
    %3023 = vmatpush1.bf16.xpose.msra.mxu0 0
    %3024 = vmatprep.subr.bf16.mxu0 0
    %3025 = vmatpush1.bf16.xpose.msra.mxu0 0
    %3026 = vmatprep.subr.bf16.mxu0 0
    %3027 = vmatpush1.bf16.xpose.msra.mxu0 0
    %3028 = vmatprep.subr.bf16.mxu0 0
    %3029 = vmatpush1.bf16.xpose.msra.mxu0 0
    %3030 = vmatprep.mubr.bf16.mxu0 0
    %3031 = vmatmul.mubr.bf16.gmra.mrb[0].mxu0 %v2993
    %v3032 = vpop.f32.mrb[0].mxu0
    %v3033 = vadd.f32 0.0, %v3032
    %v3034 = vpop.f32.mrb[0].mxu0
    %v3035 = vpop.f32.mrb[0].mxu0
    %v3036 = vadd.f32 0.0, %v3035
    %v3037 = vpop.f32.mrb[0].mxu0
    %3038 = vdwg.mxu0
    %v3039 = vmul.f32 %v3033, 0.25
    %v3040 = vmul.f32 %v3036, 0.25
    %v3041 = vadd.f32 %v3039, %v26
    %v3042 = vadd.f32 %v3040, %v27
    %v3043 = vsel %vm157, %v3041, -inf
    %3044 = vmax.xlane.f32.xlu0 %v3043
    %v3045 = vpop.xlane.xlu0 %3044
    %v3046 = vsel %vm157, %v3042, -inf
    %3047 = vmax.xlane.f32.xlu0 %v3046
    %v3048 = vpop.xlane.xlu0 %3047
    %v3049 = vsub.f32 %v3041, %v3045
    %v3050 = vsub.f32 %v3042, %v3048
    %v3051 = vmul.f32 %v3049, 1.442695
    %v3052 = vpow.pop %v3051
    %v3053 = vmul.f32 %v3050, 1.442695
    %v3054 = vpow.pop %v3053
    %v3055 = vsel %vm157, %v3052, 0.0
    %3056 = vadd.xlane.f32.xlu0 %v3055
    %v3057 = vpop.xlane.xlu0 %3056
    %v3058 = vsel %vm157, %v3054, 0.0
    %3059 = vadd.xlane.f32.xlu0 %v3058
    %v3060 = vpop.xlane.xlu0 %3059
    %v3061 = vrcp.pop %v3057
    %v3062 = vrcp.pop %v3060
    %v3063 = vmul.f32 %v3052, %v3061
    %v3064 = vmul.f32 %v3054, %v3062
    %v3065 = vpack.c.bf16 %v3064, %v3063
    %3066 = vrot.lane.b32.xlu0 %v2862, 48
    %v3067 = vpop.permute.xlu0 %3066
    %v3070 = vsel %vm157, %v3065, 0
    %3072 = vmatprep.subr.bf16.mxu0 0
    %3073 = vmatpush1.bf16.msra.mxu0 %v3067
    %3074 = vmatprep.subr.bf16.mxu0 0
    %3075 = vmatpush1.bf16.msra.mxu0 0
    %3076 = vmatprep.subr.bf16.mxu0 0
    %3077 = vmatpush1.bf16.msra.mxu0 0
    %3078 = vmatprep.subr.bf16.mxu0 0
    %3079 = vmatpush1.bf16.msra.mxu0 0
    %3080 = vmatprep.subr.bf16.mxu0 0
    %3081 = vmatpush1.bf16.msra.mxu0 0
    %3082 = vmatprep.subr.bf16.mxu0 0
    %3083 = vmatpush1.bf16.msra.mxu0 0
    %3084 = vmatprep.subr.bf16.mxu0 0
    %3085 = vmatpush1.bf16.msra.mxu0 0
    %3086 = vmatprep.subr.bf16.mxu0 0
    %3087 = vmatpush1.bf16.msra.mxu0 0
    %3088 = vmatprep.subr.bf16.mxu0 0
    %3089 = vmatpush1.bf16.msra.mxu0 0
    %3090 = vmatprep.subr.bf16.mxu0 0
    %3091 = vmatpush1.bf16.msra.mxu0 0
    %3092 = vmatprep.subr.bf16.mxu0 0
    %3093 = vmatpush1.bf16.msra.mxu0 0
    %3094 = vmatprep.subr.bf16.mxu0 0
    %3095 = vmatpush1.bf16.msra.mxu0 0
    %3096 = vmatprep.subr.bf16.mxu0 0
    %3097 = vmatpush1.bf16.msra.mxu0 0
    %3098 = vmatprep.subr.bf16.mxu0 0
    %3099 = vmatpush1.bf16.msra.mxu0 0
    %3100 = vmatprep.subr.bf16.mxu0 0
    %3101 = vmatpush1.bf16.msra.mxu0 0
    %3102 = vmatprep.subr.bf16.mxu0 0
    %3103 = vmatpush1.bf16.msra.mxu0 0
    %3104 = vmatprep.mubr.bf16.mxu0 0
    %3105 = vmatmul.mubr.bf16.gmra.mrb[0].mxu0 %v3070
    %v3106 = vpop.f32.mrb[0].mxu0
    %v3107 = vadd.f32 0.0, %v3106
    %v3108 = vpop.f32.mrb[0].mxu0
    %v3109 = vpop.f32.mrb[0].mxu0
    %v3110 = vadd.f32 0.0, %v3109
    %v3111 = vpop.f32.mrb[0].mxu0
    %3112 = vdwg.mxu0
    %v3113 = vpack.c.bf16 %v3110, %v3107
    %v3116 = vunpack.c.l.b16 %v2859
    %v3117 = vunpack.c.l.b16 %v2860
    %v3118 = vpack.c.b16 %v3117, %v3116
    %v3121 = vsel %vm157, %v3113, 0
    %3123 = vmatprep.subr.bf16.mxu0 0
    %3124 = vmatpush1.bf16.msra.mxu0 %v3118
    %3125 = vmatprep.subr.bf16.mxu0 0
    %3126 = vmatpush1.bf16.msra.mxu0 0
    %3127 = vmatprep.subr.bf16.mxu0 0
    %3128 = vmatpush1.bf16.msra.mxu0 0
    %3129 = vmatprep.subr.bf16.mxu0 0
    %3130 = vmatpush1.bf16.msra.mxu0 0
    %3131 = vmatprep.subr.bf16.mxu0 0
    %3132 = vmatpush1.bf16.msra.mxu0 0
    %3133 = vmatprep.subr.bf16.mxu0 0
    %3134 = vmatpush1.bf16.msra.mxu0 0
    %3135 = vmatprep.subr.bf16.mxu0 0
    %3136 = vmatpush1.bf16.msra.mxu0 0
    %3137 = vmatprep.subr.bf16.mxu0 0
    %3138 = vmatpush1.bf16.msra.mxu0 0
    %3139 = vmatprep.subr.bf16.mxu0 0
    %3140 = vmatpush1.bf16.msra.mxu0 0
    %3141 = vmatprep.subr.bf16.mxu0 0
    %3142 = vmatpush1.bf16.msra.mxu0 0
    %3143 = vmatprep.subr.bf16.mxu0 0
    %3144 = vmatpush1.bf16.msra.mxu0 0
    %3145 = vmatprep.subr.bf16.mxu0 0
    %3146 = vmatpush1.bf16.msra.mxu0 0
    %3147 = vmatprep.subr.bf16.mxu0 0
    %3148 = vmatpush1.bf16.msra.mxu0 0
    %3149 = vmatprep.subr.bf16.mxu0 0
    %3150 = vmatpush1.bf16.msra.mxu0 0
    %3151 = vmatprep.subr.bf16.mxu0 0
    %3152 = vmatpush1.bf16.msra.mxu0 0
    %3153 = vmatprep.subr.bf16.mxu0 0
    %3154 = vmatpush1.bf16.msra.mxu0 0
    %3155 = vmatprep.mubr.bf16.mxu0 0
    %3156 = vmatmul.mubr.bf16.gmra.mrb[0].mxu0 %v3121
    %v3157 = vpop.f32.mrb[0].mxu0
    %v3158 = vadd.f32 0.0, %v3157
    %v3159 = vpop.f32.mrb[0].mxu0
    %v3160 = vpop.f32.mrb[0].mxu0
    %v3161 = vadd.f32 0.0, %v3160
    %v3162 = vpop.f32.mrb[0].mxu0
    %3163 = vdwg.mxu0
    %v3166 = vunpack.c.l.b16 %v2857
    %v3167 = vunpack.c.l.b16 %v2858
    %v3168 = vpack.c.b16 %v3167, %v3166
    %v3171 = vsel %vm157, %v2987, 0
    %3173 = vmatprep.subr.bf16.mxu0 0
    %3174 = vmatpush1.bf16.msra.mxu0 %v3168
    %3175 = vmatprep.subr.bf16.mxu0 0
    %3176 = vmatpush1.bf16.msra.mxu0 0
    %3177 = vmatprep.subr.bf16.mxu0 0
    %3178 = vmatpush1.bf16.msra.mxu0 0
    %3179 = vmatprep.subr.bf16.mxu0 0
    %3180 = vmatpush1.bf16.msra.mxu0 0
    %3181 = vmatprep.subr.bf16.mxu0 0
    %3182 = vmatpush1.bf16.msra.mxu0 0
    %3183 = vmatprep.subr.bf16.mxu0 0
    %3184 = vmatpush1.bf16.msra.mxu0 0
    %3185 = vmatprep.subr.bf16.mxu0 0
    %3186 = vmatpush1.bf16.msra.mxu0 0
    %3187 = vmatprep.subr.bf16.mxu0 0
    %3188 = vmatpush1.bf16.msra.mxu0 0
    %3189 = vmatprep.subr.bf16.mxu0 0
    %3190 = vmatpush1.bf16.msra.mxu0 0
    %3191 = vmatprep.subr.bf16.mxu0 0
    %3192 = vmatpush1.bf16.msra.mxu0 0
    %3193 = vmatprep.subr.bf16.mxu0 0
    %3194 = vmatpush1.bf16.msra.mxu0 0
    %3195 = vmatprep.subr.bf16.mxu0 0
    %3196 = vmatpush1.bf16.msra.mxu0 0
    %3197 = vmatprep.subr.bf16.mxu0 0
    %3198 = vmatpush1.bf16.msra.mxu0 0
    %3199 = vmatprep.subr.bf16.mxu0 0
    %3200 = vmatpush1.bf16.msra.mxu0 0
    %3201 = vmatprep.subr.bf16.mxu0 0
    %3202 = vmatpush1.bf16.msra.mxu0 0
    %3203 = vmatprep.subr.bf16.mxu0 0
    %3204 = vmatpush1.bf16.msra.mxu0 0
    %3205 = vmatprep.mubr.bf16.mxu0 0
    %3206 = vmatmul.mubr.bf16.gmra.mrb[0].mxu0 %v3171
    %v3207 = vpop.f32.mrb[0].mxu0
    %v3208 = vadd.f32 %v3158, %v3207
    %v3209 = vpop.f32.mrb[0].mxu0
    %v3210 = vpop.f32.mrb[0].mxu0
    %v3211 = vadd.f32 %v3161, %v3210
    %v3212 = vpop.f32.mrb[0].mxu0
    %3213 = vdwg.mxu0
    %v3214 = vlaneseq
    %v3215 = vshrl.u32 %v3214, 7
    %v3216 = vsub.s32 0, %v3215
    %v3217 = vrot.slane %v2861, %v3216
    %v3218 = vadd.f32 %v3208, %v3217
    %v3219 = vadd.f32 %v3211, %v3217
    %v3220 = vadd.f32 %v3218, %v2787
    %v3221 = vadd.f32 %v3219, %v2788
    %v3222 = vld [vmem:[%s4 + $0x24] sm:$0x1]
    %v3223 = vld [vmem:[%s4 + $0x25] sm:$0x1]
    %v3224 = vsel %vm42, %v3220, 0.0
    %3225 = vadd.xlane.f32.xlu0 %v3224
    %v3226 = vpop.xlane.xlu0 %3225
    %v3227 = vsel %vm42, %v3221, 0.0
    %3228 = vadd.xlane.f32.xlu0 %v3227
    %v3229 = vpop.xlane.xlu0 %3228
    %v3230 = vmul.f32 %v3226, %v49
    %v3231 = vmul.f32 %v3229, %v49
    %v3232 = vsub.f32 %v3220, %v3230
    %v3233 = vsub.f32 %v3221, %v3231
    %v3234 = vmul.f32 %v3232, %v3232
    %v3235 = vmul.f32 %v3233, %v3233
    %v3236 = vsel %vm42, %v3234, 0.0
    %3237 = vadd.xlane.f32.xlu0 %v3236
    %v3238 = vpop.xlane.xlu0 %3237
    %v3239 = vsel %vm42, %v3235, 0.0
    %3240 = vadd.xlane.f32.xlu0 %v3239
    %v3241 = vpop.xlane.xlu0 %3240
    %v3242 = vmul.f32 %v3238, %v49
    %v3243 = vmul.f32 %v3241, %v49
    %v3244 = vadd.f32 %v3242, 1e-06
    %v3245 = vadd.f32 %v3243, 1e-06
    %v3246 = vrsqrt.pop %v3244
    %v3247 = vrsqrt.pop %v3245
    %v3248 = vmul.f32 %v3232, %v3246
    %v3249 = vmul.f32 %v3233, %v3247
    %v3250 = vlaneseq
    %v3251 = vshrl.u32 %v3250, 7
    %v3252 = vsub.s32 0, %v3251
    %v3253 = vrot.slane %v3222, %v3252
    %v3254 = vmul.f32 %v3248, %v3253
    %v3255 = vmul.f32 %v3249, %v3253
    %v3256 = vlaneseq
    %v3257 = vshrl.u32 %v3256, 7
    %v3258 = vsub.s32 0, %v3257
    %v3259 = vrot.slane %v3223, %v3258
    %v3260 = vadd.f32 %v3254, %v3259
    %v3261 = vadd.f32 %v3255, %v3259
    %s3262 = scalar_lea.vmem %s2, 112
    %v3263 = vld [vmem:[%s3262] sm:$0xf]
    %v3264 = vld [vmem:[%s3262 + $0x4] sm:$0xf]
    %v3265 = vld [vmem:[%s3262 + $0x8] sm:$0xf]
    %v3266 = vld [vmem:[%s3262 + $0xc] sm:$0xf]
    %v3267 = vpack.c.bf16 %v3261, %v3260
    %v3268 = vld [vmem:[%s4 + $0x26] sm:$0x1]
    %v3269 = vlaneseq
    %v3270 = vshrl.u32 %v3269, 7
    %v3271 = vsub.s32 0, %v3270
    %v3272 = vrot.slane %v3268, %v3271
    %v3277 = vunpack.c.l.b16 %v3263
    %v3278 = vunpack.c.l.b16 %v3264
    %v3279 = vunpack.c.l.b16 %v3265
    %v3280 = vunpack.c.l.b16 %v3266
    %v3281 = vpack.c.b16 %v3278, %v3277
    %v3282 = vpack.c.b16 %v3280, %v3279
    %v3286 = vsel %vm42, %v3267, 0
    %3288 = vmatprep.subr.bf16.mxu0 0
    %3289 = vmatpush1.bf16.msra.mxu0 %v3281
    %3290 = vmatprep.subr.bf16.mxu0 0
    %3291 = vmatpush1.bf16.msra.mxu0 %v3282
    %3292 = vmatprep.subr.bf16.mxu0 0
    %3293 = vmatpush1.bf16.msra.mxu0 0
    %3294 = vmatprep.subr.bf16.mxu0 0
    %3295 = vmatpush1.bf16.msra.mxu0 0
    %3296 = vmatprep.subr.bf16.mxu0 0
    %3297 = vmatpush1.bf16.msra.mxu0 0
    %3298 = vmatprep.subr.bf16.mxu0 0
    %3299 = vmatpush1.bf16.msra.mxu0 0
    %3300 = vmatprep.subr.bf16.mxu0 0
    %3301 = vmatpush1.bf16.msra.mxu0 0
    %3302 = vmatprep.subr.bf16.mxu0 0
    %3303 = vmatpush1.bf16.msra.mxu0 0
    %3304 = vmatprep.subr.bf16.mxu0 0
    %3305 = vmatpush1.bf16.msra.mxu0 0
    %3306 = vmatprep.subr.bf16.mxu0 0
    %3307 = vmatpush1.bf16.msra.mxu0 0
    %3308 = vmatprep.subr.bf16.mxu0 0
    %3309 = vmatpush1.bf16.msra.mxu0 0
    %3310 = vmatprep.subr.bf16.mxu0 0
    %3311 = vmatpush1.bf16.msra.mxu0 0
    %3312 = vmatprep.subr.bf16.mxu0 0
    %3313 = vmatpush1.bf16.msra.mxu0 0
    %3314 = vmatprep.subr.bf16.mxu0 0
    %3315 = vmatpush1.bf16.msra.mxu0 0
    %3316 = vmatprep.subr.bf16.mxu0 0
    %3317 = vmatpush1.bf16.msra.mxu0 0
    %3318 = vmatprep.subr.bf16.mxu0 0
    %3319 = vmatpush1.bf16.msra.mxu0 0
    %3320 = vmatprep.mubr.bf16.mxu0 0
    %3321 = vmatmul.mubr.bf16.gmra.mrb[0].mxu0 %v3286
    %v3322 = vpop.f32.mrb[0].mxu0
    %v3323 = vadd.f32 %v3272, %v3322
    %v3324 = vpop.f32.mrb[0].mxu0
    %v3325 = vpop.f32.mrb[0].mxu0
    %v3326 = vadd.f32 %v3272, %v3325
    %v3327 = vpop.f32.mrb[0].mxu0
    %3328 = vdwg.mxu0
    %s3329 = scalar_lea.vmem %s3, 448
    %v3330 = vld [vmem:[%s3329] sm:$0xf]
    %v3331 = vld [vmem:[%s3329 + $0x4] sm:$0xf]
    %v3332 = vld [vmem:[%s3329 + $0x8] sm:$0xf]
    %v3333 = vld [vmem:[%s3329 + $0xc] sm:$0xf]
    %v3334 = vld [vmem:[%s4 + $0x27] sm:$0x1]
    %v3335 = vpack.c.bf16 %v3326, %v3323
    %3336 = vrot.lane.b32.xlu0 %v2196, 64
    %v3337 = vpop.permute.xlu0 %3336
    %v3339 = vsel %vm157, %v3335, 0
    %v3342 = vsel %vm157, %v3337, 0
    %3344 = vmatprep.subr.bf16.mxu0 0
    %3345 = vmatpush1.bf16.xpose.msra.mxu0 %v3342
    %3346 = vmatprep.subr.bf16.mxu0 0
    %3347 = vmatpush1.bf16.xpose.msra.mxu0 0
    %3348 = vmatprep.subr.bf16.mxu0 0
    %3349 = vmatpush1.bf16.xpose.msra.mxu0 0
    %3350 = vmatprep.subr.bf16.mxu0 0
    %3351 = vmatpush1.bf16.xpose.msra.mxu0 0
    %3352 = vmatprep.subr.bf16.mxu0 0
    %3353 = vmatpush1.bf16.xpose.msra.mxu0 0
    %3354 = vmatprep.subr.bf16.mxu0 0
    %3355 = vmatpush1.bf16.xpose.msra.mxu0 0
    %3356 = vmatprep.subr.bf16.mxu0 0
    %3357 = vmatpush1.bf16.xpose.msra.mxu0 0
    %3358 = vmatprep.subr.bf16.mxu0 0
    %3359 = vmatpush1.bf16.xpose.msra.mxu0 0
    %3360 = vmatprep.subr.bf16.mxu0 0
    %3361 = vmatpush1.bf16.xpose.msra.mxu0 0
    %3362 = vmatprep.subr.bf16.mxu0 0
    %3363 = vmatpush1.bf16.xpose.msra.mxu0 0
    %3364 = vmatprep.subr.bf16.mxu0 0
    %3365 = vmatpush1.bf16.xpose.msra.mxu0 0
    %3366 = vmatprep.subr.bf16.mxu0 0
    %3367 = vmatpush1.bf16.xpose.msra.mxu0 0
    %3368 = vmatprep.subr.bf16.mxu0 0
    %3369 = vmatpush1.bf16.xpose.msra.mxu0 0
    %3370 = vmatprep.subr.bf16.mxu0 0
    %3371 = vmatpush1.bf16.xpose.msra.mxu0 0
    %3372 = vmatprep.subr.bf16.mxu0 0
    %3373 = vmatpush1.bf16.xpose.msra.mxu0 0
    %3374 = vmatprep.subr.bf16.mxu0 0
    %3375 = vmatpush1.bf16.xpose.msra.mxu0 0
    %3376 = vmatprep.mubr.bf16.mxu0 0
    %3377 = vmatmul.mubr.bf16.gmra.mrb[0].mxu0 %v3339
    %v3378 = vpop.f32.mrb[0].mxu0
    %v3379 = vadd.f32 0.0, %v3378
    %v3380 = vpop.f32.mrb[0].mxu0
    %v3381 = vpop.f32.mrb[0].mxu0
    %v3382 = vadd.f32 0.0, %v3381
    %v3383 = vpop.f32.mrb[0].mxu0
    %3384 = vdwg.mxu0
    %v3385 = vmul.f32 %v3379, 0.25
    %v3386 = vmul.f32 %v3382, 0.25
    %v3387 = vadd.f32 %v3385, %v29
    %v3388 = vadd.f32 %v3386, %v30
    %v3389 = vsel %vm157, %v3387, -inf
    %3390 = vmax.xlane.f32.xlu0 %v3389
    %v3391 = vpop.xlane.xlu0 %3390
    %v3392 = vsel %vm157, %v3388, -inf
    %3393 = vmax.xlane.f32.xlu0 %v3392
    %v3394 = vpop.xlane.xlu0 %3393
    %v3395 = vsub.f32 %v3387, %v3391
    %v3396 = vsub.f32 %v3388, %v3394
    %v3397 = vmul.f32 %v3395, 1.442695
    %v3398 = vpow.pop %v3397
    %v3399 = vmul.f32 %v3396, 1.442695
    %v3400 = vpow.pop %v3399
    %v3401 = vsel %vm157, %v3398, 0.0
    %3402 = vadd.xlane.f32.xlu0 %v3401
    %v3403 = vpop.xlane.xlu0 %3402
    %v3404 = vsel %vm157, %v3400, 0.0
    %3405 = vadd.xlane.f32.xlu0 %v3404
    %v3406 = vpop.xlane.xlu0 %3405
    %v3407 = vrcp.pop %v3403
    %v3408 = vrcp.pop %v3406
    %v3409 = vmul.f32 %v3398, %v3407
    %v3410 = vmul.f32 %v3400, %v3408
    %v3411 = vpack.c.bf16 %v3410, %v3409
    %3412 = vrot.lane.b32.xlu0 %v2196, 32
    %v3413 = vpop.permute.xlu0 %3412
    %v3416 = vsel %vm157, %v3411, 0
    %3418 = vmatprep.subr.bf16.mxu0 0
    %3419 = vmatpush1.bf16.msra.mxu0 %v3413
    %3420 = vmatprep.subr.bf16.mxu0 0
    %3421 = vmatpush1.bf16.msra.mxu0 0
    %3422 = vmatprep.subr.bf16.mxu0 0
    %3423 = vmatpush1.bf16.msra.mxu0 0
    %3424 = vmatprep.subr.bf16.mxu0 0
    %3425 = vmatpush1.bf16.msra.mxu0 0
    %3426 = vmatprep.subr.bf16.mxu0 0
    %3427 = vmatpush1.bf16.msra.mxu0 0
    %3428 = vmatprep.subr.bf16.mxu0 0
    %3429 = vmatpush1.bf16.msra.mxu0 0
    %3430 = vmatprep.subr.bf16.mxu0 0
    %3431 = vmatpush1.bf16.msra.mxu0 0
    %3432 = vmatprep.subr.bf16.mxu0 0
    %3433 = vmatpush1.bf16.msra.mxu0 0
    %3434 = vmatprep.subr.bf16.mxu0 0
    %3435 = vmatpush1.bf16.msra.mxu0 0
    %3436 = vmatprep.subr.bf16.mxu0 0
    %3437 = vmatpush1.bf16.msra.mxu0 0
    %3438 = vmatprep.subr.bf16.mxu0 0
    %3439 = vmatpush1.bf16.msra.mxu0 0
    %3440 = vmatprep.subr.bf16.mxu0 0
    %3441 = vmatpush1.bf16.msra.mxu0 0
    %3442 = vmatprep.subr.bf16.mxu0 0
    %3443 = vmatpush1.bf16.msra.mxu0 0
    %3444 = vmatprep.subr.bf16.mxu0 0
    %3445 = vmatpush1.bf16.msra.mxu0 0
    %3446 = vmatprep.subr.bf16.mxu0 0
    %3447 = vmatpush1.bf16.msra.mxu0 0
    %3448 = vmatprep.subr.bf16.mxu0 0
    %3449 = vmatpush1.bf16.msra.mxu0 0
    %3450 = vmatprep.mubr.bf16.mxu0 0
    %3451 = vmatmul.mubr.bf16.gmra.mrb[0].mxu0 %v3416
    %v3452 = vpop.f32.mrb[0].mxu0
    %v3453 = vadd.f32 0.0, %v3452
    %v3454 = vpop.f32.mrb[0].mxu0
    %v3455 = vpop.f32.mrb[0].mxu0
    %v3456 = vadd.f32 0.0, %v3455
    %v3457 = vpop.f32.mrb[0].mxu0
    %3458 = vdwg.mxu0
    %v3459 = vpack.c.bf16 %v3456, %v3453
    %3461 = vrot.lane.b32.xlu0 %v3335, 112
    %v3462 = vpop.permute.xlu0 %3461
    %3463 = vrot.lane.b32.xlu0 %v2196, 48
    %v3464 = vpop.permute.xlu0 %3463
    %v3466 = vsel %vm157, %v3462, 0
    %v3469 = vsel %vm157, %v3464, 0
    %3471 = vmatprep.subr.bf16.mxu0 0
    %3472 = vmatpush1.bf16.xpose.msra.mxu0 %v3469
    %3473 = vmatprep.subr.bf16.mxu0 0
    %3474 = vmatpush1.bf16.xpose.msra.mxu0 0
    %3475 = vmatprep.subr.bf16.mxu0 0
    %3476 = vmatpush1.bf16.xpose.msra.mxu0 0
    %3477 = vmatprep.subr.bf16.mxu0 0
    %3478 = vmatpush1.bf16.xpose.msra.mxu0 0
    %3479 = vmatprep.subr.bf16.mxu0 0
    %3480 = vmatpush1.bf16.xpose.msra.mxu0 0
    %3481 = vmatprep.subr.bf16.mxu0 0
    %3482 = vmatpush1.bf16.xpose.msra.mxu0 0
    %3483 = vmatprep.subr.bf16.mxu0 0
    %3484 = vmatpush1.bf16.xpose.msra.mxu0 0
    %3485 = vmatprep.subr.bf16.mxu0 0
    %3486 = vmatpush1.bf16.xpose.msra.mxu0 0
    %3487 = vmatprep.subr.bf16.mxu0 0
    %3488 = vmatpush1.bf16.xpose.msra.mxu0 0
    %3489 = vmatprep.subr.bf16.mxu0 0
    %3490 = vmatpush1.bf16.xpose.msra.mxu0 0
    %3491 = vmatprep.subr.bf16.mxu0 0
    %3492 = vmatpush1.bf16.xpose.msra.mxu0 0
    %3493 = vmatprep.subr.bf16.mxu0 0
    %3494 = vmatpush1.bf16.xpose.msra.mxu0 0
    %3495 = vmatprep.subr.bf16.mxu0 0
    %3496 = vmatpush1.bf16.xpose.msra.mxu0 0
    %3497 = vmatprep.subr.bf16.mxu0 0
    %3498 = vmatpush1.bf16.xpose.msra.mxu0 0
    %3499 = vmatprep.subr.bf16.mxu0 0
    %3500 = vmatpush1.bf16.xpose.msra.mxu0 0
    %3501 = vmatprep.subr.bf16.mxu0 0
    %3502 = vmatpush1.bf16.xpose.msra.mxu0 0
    %3503 = vmatprep.mubr.bf16.mxu0 0
    %3504 = vmatmul.mubr.bf16.gmra.mrb[0].mxu0 %v3466
    %v3505 = vpop.f32.mrb[0].mxu0
    %v3506 = vadd.f32 0.0, %v3505
    %v3507 = vpop.f32.mrb[0].mxu0
    %v3508 = vpop.f32.mrb[0].mxu0
    %v3509 = vadd.f32 0.0, %v3508
    %v3510 = vpop.f32.mrb[0].mxu0
    %3511 = vdwg.mxu0
    %v3512 = vmul.f32 %v3506, 0.25
    %v3513 = vmul.f32 %v3509, 0.25
    %v3514 = vadd.f32 %v3512, %v29
    %v3515 = vadd.f32 %v3513, %v30
    %v3516 = vsel %vm157, %v3514, -inf
    %3517 = vmax.xlane.f32.xlu0 %v3516
    %v3518 = vpop.xlane.xlu0 %3517
    %v3519 = vsel %vm157, %v3515, -inf
    %3520 = vmax.xlane.f32.xlu0 %v3519
    %v3521 = vpop.xlane.xlu0 %3520
    %v3522 = vsub.f32 %v3514, %v3518
    %v3523 = vsub.f32 %v3515, %v3521
    %v3524 = vmul.f32 %v3522, 1.442695
    %v3525 = vpow.pop %v3524
    %v3526 = vmul.f32 %v3523, 1.442695
    %v3527 = vpow.pop %v3526
    %v3528 = vsel %vm157, %v3525, 0.0
    %3529 = vadd.xlane.f32.xlu0 %v3528
    %v3530 = vpop.xlane.xlu0 %3529
    %v3531 = vsel %vm157, %v3527, 0.0
    %3532 = vadd.xlane.f32.xlu0 %v3531
    %v3533 = vpop.xlane.xlu0 %3532
    %v3534 = vrcp.pop %v3530
    %v3535 = vrcp.pop %v3533
    %v3536 = vmul.f32 %v3525, %v3534
    %v3537 = vmul.f32 %v3527, %v3535
    %v3538 = vpack.c.bf16 %v3537, %v3536
    %3539 = vrot.lane.b32.xlu0 %v2196, 16
    %v3540 = vpop.permute.xlu0 %3539
    %v3543 = vsel %vm157, %v3538, 0
    %3545 = vmatprep.subr.bf16.mxu0 0
    %3546 = vmatpush1.bf16.msra.mxu0 %v3540
    %3547 = vmatprep.subr.bf16.mxu0 0
    %3548 = vmatpush1.bf16.msra.mxu0 0
    %3549 = vmatprep.subr.bf16.mxu0 0
    %3550 = vmatpush1.bf16.msra.mxu0 0
    %3551 = vmatprep.subr.bf16.mxu0 0
    %3552 = vmatpush1.bf16.msra.mxu0 0
    %3553 = vmatprep.subr.bf16.mxu0 0
    %3554 = vmatpush1.bf16.msra.mxu0 0
    %3555 = vmatprep.subr.bf16.mxu0 0
    %3556 = vmatpush1.bf16.msra.mxu0 0
    %3557 = vmatprep.subr.bf16.mxu0 0
    %3558 = vmatpush1.bf16.msra.mxu0 0
    %3559 = vmatprep.subr.bf16.mxu0 0
    %3560 = vmatpush1.bf16.msra.mxu0 0
    %3561 = vmatprep.subr.bf16.mxu0 0
    %3562 = vmatpush1.bf16.msra.mxu0 0
    %3563 = vmatprep.subr.bf16.mxu0 0
    %3564 = vmatpush1.bf16.msra.mxu0 0
    %3565 = vmatprep.subr.bf16.mxu0 0
    %3566 = vmatpush1.bf16.msra.mxu0 0
    %3567 = vmatprep.subr.bf16.mxu0 0
    %3568 = vmatpush1.bf16.msra.mxu0 0
    %3569 = vmatprep.subr.bf16.mxu0 0
    %3570 = vmatpush1.bf16.msra.mxu0 0
    %3571 = vmatprep.subr.bf16.mxu0 0
    %3572 = vmatpush1.bf16.msra.mxu0 0
    %3573 = vmatprep.subr.bf16.mxu0 0
    %3574 = vmatpush1.bf16.msra.mxu0 0
    %3575 = vmatprep.subr.bf16.mxu0 0
    %3576 = vmatpush1.bf16.msra.mxu0 0
    %3577 = vmatprep.mubr.bf16.mxu0 0
    %3578 = vmatmul.mubr.bf16.gmra.mrb[0].mxu0 %v3543
    %v3579 = vpop.f32.mrb[0].mxu0
    %v3580 = vadd.f32 0.0, %v3579
    %v3581 = vpop.f32.mrb[0].mxu0
    %v3582 = vpop.f32.mrb[0].mxu0
    %v3583 = vadd.f32 0.0, %v3582
    %v3584 = vpop.f32.mrb[0].mxu0
    %3585 = vdwg.mxu0
    %v3586 = vpack.c.bf16 %v3583, %v3580
    %v3589 = vunpack.c.l.b16 %v3332
    %v3590 = vunpack.c.l.b16 %v3333
    %v3591 = vpack.c.b16 %v3590, %v3589
    %v3594 = vsel %vm157, %v3586, 0
    %3596 = vmatprep.subr.bf16.mxu0 0
    %3597 = vmatpush1.bf16.msra.mxu0 %v3591
    %3598 = vmatprep.subr.bf16.mxu0 0
    %3599 = vmatpush1.bf16.msra.mxu0 0
    %3600 = vmatprep.subr.bf16.mxu0 0
    %3601 = vmatpush1.bf16.msra.mxu0 0
    %3602 = vmatprep.subr.bf16.mxu0 0
    %3603 = vmatpush1.bf16.msra.mxu0 0
    %3604 = vmatprep.subr.bf16.mxu0 0
    %3605 = vmatpush1.bf16.msra.mxu0 0
    %3606 = vmatprep.subr.bf16.mxu0 0
    %3607 = vmatpush1.bf16.msra.mxu0 0
    %3608 = vmatprep.subr.bf16.mxu0 0
    %3609 = vmatpush1.bf16.msra.mxu0 0
    %3610 = vmatprep.subr.bf16.mxu0 0
    %3611 = vmatpush1.bf16.msra.mxu0 0
    %3612 = vmatprep.subr.bf16.mxu0 0
    %3613 = vmatpush1.bf16.msra.mxu0 0
    %3614 = vmatprep.subr.bf16.mxu0 0
    %3615 = vmatpush1.bf16.msra.mxu0 0
    %3616 = vmatprep.subr.bf16.mxu0 0
    %3617 = vmatpush1.bf16.msra.mxu0 0
    %3618 = vmatprep.subr.bf16.mxu0 0
    %3619 = vmatpush1.bf16.msra.mxu0 0
    %3620 = vmatprep.subr.bf16.mxu0 0
    %3621 = vmatpush1.bf16.msra.mxu0 0
    %3622 = vmatprep.subr.bf16.mxu0 0
    %3623 = vmatpush1.bf16.msra.mxu0 0
    %3624 = vmatprep.subr.bf16.mxu0 0
    %3625 = vmatpush1.bf16.msra.mxu0 0
    %3626 = vmatprep.subr.bf16.mxu0 0
    %3627 = vmatpush1.bf16.msra.mxu0 0
    %3628 = vmatprep.mubr.bf16.mxu0 0
    %3629 = vmatmul.mubr.bf16.gmra.mrb[0].mxu0 %v3594
    %v3630 = vpop.f32.mrb[0].mxu0
    %v3631 = vadd.f32 0.0, %v3630
    %v3632 = vpop.f32.mrb[0].mxu0
    %v3633 = vpop.f32.mrb[0].mxu0
    %v3634 = vadd.f32 0.0, %v3633
    %v3635 = vpop.f32.mrb[0].mxu0
    %3636 = vdwg.mxu0
    %v3639 = vunpack.c.l.b16 %v3330
    %v3640 = vunpack.c.l.b16 %v3331
    %v3641 = vpack.c.b16 %v3640, %v3639
    %v3644 = vsel %vm157, %v3459, 0
    %3646 = vmatprep.subr.bf16.mxu0 0
    %3647 = vmatpush1.bf16.msra.mxu0 %v3641
    %3648 = vmatprep.subr.bf16.mxu0 0
    %3649 = vmatpush1.bf16.msra.mxu0 0
    %3650 = vmatprep.subr.bf16.mxu0 0
    %3651 = vmatpush1.bf16.msra.mxu0 0
    %3652 = vmatprep.subr.bf16.mxu0 0
    %3653 = vmatpush1.bf16.msra.mxu0 0
    %3654 = vmatprep.subr.bf16.mxu0 0
    %3655 = vmatpush1.bf16.msra.mxu0 0
    %3656 = vmatprep.subr.bf16.mxu0 0
    %3657 = vmatpush1.bf16.msra.mxu0 0
    %3658 = vmatprep.subr.bf16.mxu0 0
    %3659 = vmatpush1.bf16.msra.mxu0 0
    %3660 = vmatprep.subr.bf16.mxu0 0
    %3661 = vmatpush1.bf16.msra.mxu0 0
    %3662 = vmatprep.subr.bf16.mxu0 0
    %3663 = vmatpush1.bf16.msra.mxu0 0
    %3664 = vmatprep.subr.bf16.mxu0 0
    %3665 = vmatpush1.bf16.msra.mxu0 0
    %3666 = vmatprep.subr.bf16.mxu0 0
    %3667 = vmatpush1.bf16.msra.mxu0 0
    %3668 = vmatprep.subr.bf16.mxu0 0
    %3669 = vmatpush1.bf16.msra.mxu0 0
    %3670 = vmatprep.subr.bf16.mxu0 0
    %3671 = vmatpush1.bf16.msra.mxu0 0
    %3672 = vmatprep.subr.bf16.mxu0 0
    %3673 = vmatpush1.bf16.msra.mxu0 0
    %3674 = vmatprep.subr.bf16.mxu0 0
    %3675 = vmatpush1.bf16.msra.mxu0 0
    %3676 = vmatprep.subr.bf16.mxu0 0
    %3677 = vmatpush1.bf16.msra.mxu0 0
    %3678 = vmatprep.mubr.bf16.mxu0 0
    %3679 = vmatmul.mubr.bf16.gmra.mrb[0].mxu0 %v3644
    %v3680 = vpop.f32.mrb[0].mxu0
    %v3681 = vadd.f32 %v3631, %v3680
    %v3682 = vpop.f32.mrb[0].mxu0
    %v3683 = vpop.f32.mrb[0].mxu0
    %v3684 = vadd.f32 %v3634, %v3683
    %v3685 = vpop.f32.mrb[0].mxu0
    %3686 = vdwg.mxu0
    %v3687 = vlaneseq
    %v3688 = vshrl.u32 %v3687, 7
    %v3689 = vsub.s32 0, %v3688
    %v3690 = vrot.slane %v3334, %v3689
    %v3691 = vadd.f32 %v3681, %v3690
    %v3692 = vadd.f32 %v3684, %v3690
    %v3693 = vadd.f32 %v3691, %v3260
    %v3694 = vadd.f32 %v3692, %v3261
    %v3695 = vld [vmem:[%s4 + $0x28] sm:$0x1]
    %v3696 = vld [vmem:[%s4 + $0x29] sm:$0x1]
    %v3697 = vsel %vm42, %v3693, 0.0
    %3698 = vadd.xlane.f32.xlu0 %v3697
    %v3699 = vpop.xlane.xlu0 %3698
    %v3700 = vsel %vm42, %v3694, 0.0
    %3701 = vadd.xlane.f32.xlu0 %v3700
    %v3702 = vpop.xlane.xlu0 %3701
    %v3703 = vmul.f32 %v3699, %v49
    %v3704 = vmul.f32 %v3702, %v49
    %v3705 = vsub.f32 %v3693, %v3703
    %v3706 = vsub.f32 %v3694, %v3704
    %v3707 = vmul.f32 %v3705, %v3705
    %v3708 = vmul.f32 %v3706, %v3706
    %v3709 = vsel %vm42, %v3707, 0.0
    %3710 = vadd.xlane.f32.xlu0 %v3709
    %v3711 = vpop.xlane.xlu0 %3710
    %v3712 = vsel %vm42, %v3708, 0.0
    %3713 = vadd.xlane.f32.xlu0 %v3712
    %v3714 = vpop.xlane.xlu0 %3713
    %v3715 = vmul.f32 %v3711, %v49
    %v3716 = vmul.f32 %v3714, %v49
    %v3717 = vadd.f32 %v3715, 1e-06
    %v3718 = vadd.f32 %v3716, 1e-06
    %v3719 = vrsqrt.pop %v3717
    %v3720 = vrsqrt.pop %v3718
    %v3721 = vmul.f32 %v3705, %v3719
    %v3722 = vmul.f32 %v3706, %v3720
    %v3723 = vlaneseq
    %v3724 = vshrl.u32 %v3723, 7
    %v3725 = vsub.s32 0, %v3724
    %v3726 = vrot.slane %v3695, %v3725
    %v3727 = vmul.f32 %v3721, %v3726
    %v3728 = vmul.f32 %v3722, %v3726
    %v3729 = vlaneseq
    %v3730 = vshrl.u32 %v3729, 7
    %v3731 = vsub.s32 0, %v3730
    %v3732 = vrot.slane %v3696, %v3731
    %v3733 = vadd.f32 %v3727, %v3732
    %v3734 = vadd.f32 %v3728, %v3732
    %s3735 = scalar_lea.vmem %s2, 160
    %v3736 = vld [vmem:[%s3735] sm:$0xf]
    %v3737 = vld [vmem:[%s3735 + $0x4] sm:$0xf]
    %v3738 = vld [vmem:[%s3735 + $0x8] sm:$0xf]
    %v3739 = vld [vmem:[%s3735 + $0xc] sm:$0xf]
    %v3740 = vpack.c.bf16 %v3734, %v3733
    %v3741 = vld [vmem:[%s4 + $0x2a] sm:$0x1]
    %v3742 = vlaneseq
    %v3743 = vshrl.u32 %v3742, 7
    %v3744 = vsub.s32 0, %v3743
    %v3745 = vrot.slane %v3741, %v3744
    %v3750 = vunpack.c.l.b16 %v3736
    %v3751 = vunpack.c.l.b16 %v3737
    %v3752 = vunpack.c.l.b16 %v3738
    %v3753 = vunpack.c.l.b16 %v3739
    %v3754 = vpack.c.b16 %v3751, %v3750
    %v3755 = vpack.c.b16 %v3753, %v3752
    %v3759 = vsel %vm42, %v3740, 0
    %3761 = vmatprep.subr.bf16.mxu0 0
    %3762 = vmatpush1.bf16.msra.mxu0 %v3754
    %3763 = vmatprep.subr.bf16.mxu0 0
    %3764 = vmatpush1.bf16.msra.mxu0 %v3755
    %3765 = vmatprep.subr.bf16.mxu0 0
    %3766 = vmatpush1.bf16.msra.mxu0 0
    %3767 = vmatprep.subr.bf16.mxu0 0
    %3768 = vmatpush1.bf16.msra.mxu0 0
    %3769 = vmatprep.subr.bf16.mxu0 0
    %3770 = vmatpush1.bf16.msra.mxu0 0
    %3771 = vmatprep.subr.bf16.mxu0 0
    %3772 = vmatpush1.bf16.msra.mxu0 0
    %3773 = vmatprep.subr.bf16.mxu0 0
    %3774 = vmatpush1.bf16.msra.mxu0 0
    %3775 = vmatprep.subr.bf16.mxu0 0
    %3776 = vmatpush1.bf16.msra.mxu0 0
    %3777 = vmatprep.subr.bf16.mxu0 0
    %3778 = vmatpush1.bf16.msra.mxu0 0
    %3779 = vmatprep.subr.bf16.mxu0 0
    %3780 = vmatpush1.bf16.msra.mxu0 0
    %3781 = vmatprep.subr.bf16.mxu0 0
    %3782 = vmatpush1.bf16.msra.mxu0 0
    %3783 = vmatprep.subr.bf16.mxu0 0
    %3784 = vmatpush1.bf16.msra.mxu0 0
    %3785 = vmatprep.subr.bf16.mxu0 0
    %3786 = vmatpush1.bf16.msra.mxu0 0
    %3787 = vmatprep.subr.bf16.mxu0 0
    %3788 = vmatpush1.bf16.msra.mxu0 0
    %3789 = vmatprep.subr.bf16.mxu0 0
    %3790 = vmatpush1.bf16.msra.mxu0 0
    %3791 = vmatprep.subr.bf16.mxu0 0
    %3792 = vmatpush1.bf16.msra.mxu0 0
    %3793 = vmatprep.mubr.bf16.mxu0 0
    %3794 = vmatmul.mubr.bf16.gmra.mrb[0].mxu0 %v3759
    %v3795 = vpop.f32.mrb[0].mxu0
    %v3796 = vadd.f32 %v3745, %v3795
    %v3797 = vpop.f32.mrb[0].mxu0
    %v3798 = vpop.f32.mrb[0].mxu0
    %v3799 = vadd.f32 %v3745, %v3798
    %v3800 = vpop.f32.mrb[0].mxu0
    %3801 = vdwg.mxu0
    %v3802 = vmax.f32 %v3796, 0.0
    %v3803 = vmax.f32 %v3799, 0.0
    %s3804 = scalar_lea.vmem %s3, 576
    %v3805 = vld [vmem:[%s3804] sm:$0xf]
    %v3806 = vld [vmem:[%s3804 + $0x4] sm:$0xf]
    %v3807 = vld [vmem:[%s3804 + $0x8] sm:$0xf]
    %v3808 = vld [vmem:[%s3804 + $0xc] sm:$0xf]
    %v3809 = vld [vmem:[%s3804 + $0x10] sm:$0xf]
    %v3810 = vld [vmem:[%s3804 + $0x14] sm:$0xf]
    %v3811 = vld [vmem:[%s3804 + $0x18] sm:$0xf]
    %v3812 = vld [vmem:[%s3804 + $0x1c] sm:$0xf]
    %v3813 = vpack.c.bf16 %v3803, %v3802
    %v3814 = vld [vmem:[%s4 + $0x2b] sm:$0x1]
    %v3815 = vlaneseq
    %v3816 = vshrl.u32 %v3815, 7
    %v3817 = vsub.s32 0, %v3816
    %v3818 = vrot.slane %v3814, %v3817
    %v3827 = vunpack.c.l.b16 %v3805
    %v3828 = vunpack.c.l.b16 %v3806
    %v3829 = vunpack.c.l.b16 %v3807
    %v3830 = vunpack.c.l.b16 %v3808
    %v3831 = vunpack.c.l.b16 %v3809
    %v3832 = vunpack.c.l.b16 %v3810
    %v3833 = vunpack.c.l.b16 %v3811
    %v3834 = vunpack.c.l.b16 %v3812
    %v3835 = vpack.c.b16 %v3828, %v3827
    %v3836 = vpack.c.b16 %v3830, %v3829
    %v3837 = vpack.c.b16 %v3832, %v3831
    %v3838 = vpack.c.b16 %v3834, %v3833
    %v3844 = vsel %vm662, %v3813, 0
    %3846 = vmatprep.subr.bf16.mxu0 0
    %3847 = vmatpush1.bf16.msra.mxu0 %v3835
    %3848 = vmatprep.subr.bf16.mxu0 0
    %3849 = vmatpush1.bf16.msra.mxu0 %v3836
    %3850 = vmatprep.subr.bf16.mxu0 0
    %3851 = vmatpush1.bf16.msra.mxu0 %v3837
    %3852 = vmatprep.subr.bf16.mxu0 0
    %3853 = vmatpush1.bf16.msra.mxu0 %v3838
    %3854 = vmatprep.subr.bf16.mxu0 0
    %3855 = vmatpush1.bf16.msra.mxu0 0
    %3856 = vmatprep.subr.bf16.mxu0 0
    %3857 = vmatpush1.bf16.msra.mxu0 0
    %3858 = vmatprep.subr.bf16.mxu0 0
    %3859 = vmatpush1.bf16.msra.mxu0 0
    %3860 = vmatprep.subr.bf16.mxu0 0
    %3861 = vmatpush1.bf16.msra.mxu0 0
    %3862 = vmatprep.subr.bf16.mxu0 0
    %3863 = vmatpush1.bf16.msra.mxu0 0
    %3864 = vmatprep.subr.bf16.mxu0 0
    %3865 = vmatpush1.bf16.msra.mxu0 0
    %3866 = vmatprep.subr.bf16.mxu0 0
    %3867 = vmatpush1.bf16.msra.mxu0 0
    %3868 = vmatprep.subr.bf16.mxu0 0
    %3869 = vmatpush1.bf16.msra.mxu0 0
    %3870 = vmatprep.subr.bf16.mxu0 0
    %3871 = vmatpush1.bf16.msra.mxu0 0
    %3872 = vmatprep.subr.bf16.mxu0 0
    %3873 = vmatpush1.bf16.msra.mxu0 0
    %3874 = vmatprep.subr.bf16.mxu0 0
    %3875 = vmatpush1.bf16.msra.mxu0 0
    %3876 = vmatprep.subr.bf16.mxu0 0
    %3877 = vmatpush1.bf16.msra.mxu0 0
    %3878 = vmatprep.mubr.bf16.mxu0 0
    %3879 = vmatmul.mubr.bf16.gmra.mrb[0].mxu0 %v3844
    %v3880 = vpop.f32.mrb[0].mxu0
    %v3881 = vadd.f32 %v3818, %v3880
    %v3882 = vpop.f32.mrb[0].mxu0
    %v3883 = vpop.f32.mrb[0].mxu0
    %v3884 = vadd.f32 %v3818, %v3883
    %v3885 = vpop.f32.mrb[0].mxu0
    %3886 = vdwg.mxu0
    %v3887 = vadd.f32 %v3881, %v3733
    %v3888 = vadd.f32 %v3884, %v3734
    %v3889 = vld [vmem:[%s4 + $0x2c] sm:$0x1]
    %v3890 = vld [vmem:[%s4 + $0x2d] sm:$0x1]
    %v3891 = vsel %vm42, %v3887, 0.0
    %3892 = vadd.xlane.f32.xlu0 %v3891
    %v3893 = vpop.xlane.xlu0 %3892
    %v3894 = vsel %vm42, %v3888, 0.0
    %3895 = vadd.xlane.f32.xlu0 %v3894
    %v3896 = vpop.xlane.xlu0 %3895
    %v3897 = vmul.f32 %v3893, %v49
    %v3898 = vmul.f32 %v3896, %v49
    %v3899 = vsub.f32 %v3887, %v3897
    %v3900 = vsub.f32 %v3888, %v3898
    %v3901 = vmul.f32 %v3899, %v3899
    %v3902 = vmul.f32 %v3900, %v3900
    %v3903 = vsel %vm42, %v3901, 0.0
    %3904 = vadd.xlane.f32.xlu0 %v3903
    %v3905 = vpop.xlane.xlu0 %3904
    %v3906 = vsel %vm42, %v3902, 0.0
    %3907 = vadd.xlane.f32.xlu0 %v3906
    %v3908 = vpop.xlane.xlu0 %3907
    %v3909 = vmul.f32 %v3905, %v49
    %v3910 = vmul.f32 %v3908, %v49
    %v3911 = vadd.f32 %v3909, 1e-06
    %v3912 = vadd.f32 %v3910, 1e-06
    %v3913 = vrsqrt.pop %v3911
    %v3914 = vrsqrt.pop %v3912
    %v3915 = vmul.f32 %v3899, %v3913
    %v3916 = vmul.f32 %v3900, %v3914
    %v3917 = vlaneseq
    %v3918 = vshrl.u32 %v3917, 7
    %v3919 = vsub.s32 0, %v3918
    %v3920 = vrot.slane %v3889, %v3919
    %v3921 = vmul.f32 %v3915, %v3920
    %v3922 = vmul.f32 %v3916, %v3920
    %v3923 = vlaneseq
    %v3924 = vshrl.u32 %v3923, 7
    %v3925 = vsub.s32 0, %v3924
    %v3926 = vrot.slane %v3890, %v3925
    %v3927 = vadd.f32 %v3921, %v3926
    %v3928 = vadd.f32 %v3922, %v3926
    %v3929 = vpack.c.bf16 %v3928, %v3927
    %s3930 = scalar_lea.vmem %s2, 176
    %v3931 = vld [vmem:[%s3930] sm:$0xf]
    %v3932 = vld [vmem:[%s3930 + $0x4] sm:$0xf]
    %v3933 = vld [vmem:[%s3930 + $0x8] sm:$0xf]
    %v3934 = vld [vmem:[%s3930 + $0xc] sm:$0xf]
    %v3935 = vld [vmem:[%s4 + $0x15] sm:$0x1]
    %v3936 = vlaneseq
    %v3937 = vshrl.u32 %v3936, 7
    %v3938 = vsub.s32 0, %v3937
    %v3939 = vrot.slane %v3935, %v3938
    %v3944 = vunpack.c.l.b16 %v3931
    %v3945 = vunpack.c.l.b16 %v3932
    %v3946 = vunpack.c.l.b16 %v3933
    %v3947 = vunpack.c.l.b16 %v3934
    %v3948 = vpack.c.b16 %v3945, %v3944
    %v3949 = vpack.c.b16 %v3947, %v3946
    %v3953 = vsel %vm42, %v3929, 0
    %3955 = vmatprep.subr.bf16.mxu0 0
    %3956 = vmatpush1.bf16.msra.mxu0 %v3948
    %3957 = vmatprep.subr.bf16.mxu0 0
    %3958 = vmatpush1.bf16.msra.mxu0 %v3949
    %3959 = vmatprep.subr.bf16.mxu0 0
    %3960 = vmatpush1.bf16.msra.mxu0 0
    %3961 = vmatprep.subr.bf16.mxu0 0
    %3962 = vmatpush1.bf16.msra.mxu0 0
    %3963 = vmatprep.subr.bf16.mxu0 0
    %3964 = vmatpush1.bf16.msra.mxu0 0
    %3965 = vmatprep.subr.bf16.mxu0 0
    %3966 = vmatpush1.bf16.msra.mxu0 0
    %3967 = vmatprep.subr.bf16.mxu0 0
    %3968 = vmatpush1.bf16.msra.mxu0 0
    %3969 = vmatprep.subr.bf16.mxu0 0
    %3970 = vmatpush1.bf16.msra.mxu0 0
    %3971 = vmatprep.subr.bf16.mxu0 0
    %3972 = vmatpush1.bf16.msra.mxu0 0
    %3973 = vmatprep.subr.bf16.mxu0 0
    %3974 = vmatpush1.bf16.msra.mxu0 0
    %3975 = vmatprep.subr.bf16.mxu0 0
    %3976 = vmatpush1.bf16.msra.mxu0 0
    %3977 = vmatprep.subr.bf16.mxu0 0
    %3978 = vmatpush1.bf16.msra.mxu0 0
    %3979 = vmatprep.subr.bf16.mxu0 0
    %3980 = vmatpush1.bf16.msra.mxu0 0
    %3981 = vmatprep.subr.bf16.mxu0 0
    %3982 = vmatpush1.bf16.msra.mxu0 0
    %3983 = vmatprep.subr.bf16.mxu0 0
    %3984 = vmatpush1.bf16.msra.mxu0 0
    %3985 = vmatprep.subr.bf16.mxu0 0
    %3986 = vmatpush1.bf16.msra.mxu0 0
    %3987 = vmatprep.mubr.bf16.mxu0 0
    %3988 = vmatmul.mubr.bf16.gmra.mrb[0].mxu0 %v3953
    %v3989 = vpop.f32.mrb[0].mxu0
    %v3990 = vadd.f32 %v3939, %v3989
    %v3991 = vpop.f32.mrb[0].mxu0
    %v3992 = vpop.f32.mrb[0].mxu0
    %v3993 = vadd.f32 %v3939, %v3992
    %v3994 = vpop.f32.mrb[0].mxu0
    %3995 = vdwg.mxu0
    %3996 = vst [vmem:[#allocation2] sm:$0xff] %v3990
    %3997 = vst [vmem:[#allocation2 + $0x8] sm:$0xff] %v3993
    // Predicated region
    $region22: #{transformer_translate_forward.1} parent=1 // pred_check
      _
    $region23: #{transformer_translate_forward.1} parent=1 // pred_check_branch
      %3999 = sbr.rel (0) target = $region25
    $region24: #{transformer_translate_forward.1} parent=1 // pred_region
      %s4001 = ssub.s32 256, 256
      %4002 = vsyncadd [#allocation3], %s4001
      %s4003 = sshll.u32 [#allocation2], 4
      %s4004 = int_to_ptr.vmem [resolvable:$true] %s4003
      %4009 = dma.vmem_to_hbm [thread:$0]  %s4004, 256, %s5, [#allocation3], 128, 128, 8
    $region25: #{transformer_translate_forward.1} parent=1 // pred_fallthru
      _
    // Predicated region
    $region26: #{transformer_translate_forward.1} parent=1 // pred_check
      _
    $region27: #{transformer_translate_forward.1} parent=1 // pred_check_branch
      %4011 = sbr.rel (0) target = $region29
    $region28: #{transformer_translate_forward.1} parent=1 // pred_region
      %4012 = dma.done [#allocation3], 256
    $region29: #{transformer_translate_forward.1} parent=1 // pred_fallthru
      _
    %4013 = vsyncpa [#allocation3], 1

</llo_original>
